<compile_context>
chip_gen: v6e
topology: v6e:2x2x1
jax: 0.10.0
libtpu: 0.0.40
codegen_flags: <defaults>
</compile_context>

<pallas_src>
import math
import functools

import jax
import jax.numpy as jnp
import numpy as np
from jax.experimental import pallas as pl
from jax.experimental.pallas import tpu as pltpu  # noqa: F401  (kept for TPU-specific tuning hooks)

# ----------------------- small synthetic configuration -----------------------
N = 2            # batch
C_IN = 3         # input image channels
H_IN = W_IN = 16
C_FEAT = 8       # stand-in "densenet161" feature channels (real model: 2208)
K_FEAT = 3       # stand-in feature-extractor conv kernel
S_FEAT = 2       # stand-in feature-extractor conv stride
NUM_CLASSES = 5  # classifier output size (undefined in the PyTorch module)
NLV_BCD = 6      # GDCB levels -> 5 pooling scales

_HIGH = jax.lax.Precision.HIGHEST


# --------------------------------- kernel ------------------------------------
def _fused_forward_kernel(a_ref, wf_ref, bf_ref, w1_ref, b1_ref, wc_ref, bc_ref,
                          ind_ref, out_ref, *, n, H, W, nlv, xc, denom):
    """Whole myModel forward in one kernel (all intermediates stay in VMEM).

    a_ref   : (n*H*W, Cin*k*k) im2col patches of the input image
    wf/bf   : stand-in densenet161 feature conv weights (as matmul)
    w1/b1   : 1x1 conv (self.conv1)
    wc/bc   : linear classifier (self.classifier)
    ind_ref : (H*W, nlv-1) 0/1 indicator of valid pooling-window origins
    out_ref : (n, num_classes) logits
    """
    hw = H * W

    # Stage 1: stand-in `self.features` as a single im2col matmul + ReLU (MXU).
    # TODO(synk): pretrained densenet161 backbone cannot be reproduced
    # in-script; a deterministic 3x3/stride-2 conv stands in for it.
    feat = jnp.dot(a_ref[...], wf_ref[...],
                   preferred_element_type=jnp.float32, precision=_HIGH)
    feat = jnp.maximum(feat + bf_ref[...], 0.0)                       # (n*hw, C)

    # Stage 2 (fused): identity = sigmoid(feat);
    #                  out = relu(conv1_1x1(feat)) - identity
    y = jnp.dot(feat, w1_ref[...],
                preferred_element_type=jnp.float32, precision=_HIGH) + b1_ref[...]
    y = jnp.maximum(y, 0.0)
    out = y - jax.nn.sigmoid(feat)   # exp/recip on EUP               # (n*hw, C)

    out3_rows = []
    for b in range(n):                                   # n == 2, fully unrolled
        ob = out[b * hw:(b + 1) * hw, :]                               # (hw, C)

        # out1 = adaptive_avg_pool2d((1,1)).view(N, C)
        out1 = jnp.mean(ob, axis=0, keepdims=True)                     # (1, C)

        # out2 = GDCB(out): 5 max-pools + spatial sums + log2 + regression.
        # Vectorized: running max over W via k-1 shifted slab maxes, running
        # max over H via k-1 W-row shifts, then a masked sublane reduction
        # over valid window origins (indicator passed in as a kernel input).
        ys = []
        for i in range(nlv - 1):
            k = i + 2
            s = (i + 2) // 2
            # running max over W
            L1 = hw - (k - 1)
            wmax = ob[0:L1, :]
            for d in range(1, k):
                wmax = jnp.maximum(wmax, ob[d:d + L1, :])
            # running max over H
            L2 = L1 - (k - 1) * W
            hwmax = wmax[0:L2, :]
            for d in range(1, k):
                hwmax = jnp.maximum(hwmax, wmax[d * W:d * W + L2, :])
            # spatial sum over valid pooling-window origins (masked reduce)
            ind_col = ind_ref[0:L2, i:i + 1]                           # (L2, 1)
            lvl = jnp.sum(hwmax * ind_col, axis=0, keepdims=True)      # (1, C)
            ys.append(jnp.log2(jnp.maximum(lvl, 0.0) + 1.0))

        mean_y = sum(ys) * (1.0 / (nlv - 1))
        frac = sum((ys[i] - mean_y) * xc[i] for i in range(nlv - 1)) / denom
        out3_rows.append(out1 * frac)                      # out3 = out1 * out2

    out3 = jnp.concatenate(out3_rows, axis=0)                          # (n, C)
    # classifier (tiny matmul; mostly MXU padding but cheaper than restructuring)
    out_ref[...] = jnp.dot(out3, wc_ref[...],
                           preferred_element_type=jnp.float32,
                           precision=_HIGH) + bc_ref[...]


# ------------------------------- glue (JAX) -----------------------------------
def _im2col(x_nchw, k, s):
    n, cin, h, w = x_nchw.shape
    oh = (h - k) // s + 1
    ow = (w - k) // s + 1
    cols = []
    for dh in range(k):
        for dw in range(k):
            cols.append(x_nchw[:, :, dh:dh + s * oh:s, dw:dw + s * ow:s])
    p = jnp.stack(cols, axis=1)                   # (N, k*k, Cin, OH, OW)
    p = p.transpose(0, 3, 4, 2, 1)                # (N, OH, OW, Cin, k*k)
    return p.reshape(n, oh, ow, cin * k * k), oh, ow


def _pool_origin_indicator(H, W, nlv):
    """(H*W, nlv-1) 0/1 mask: row r is a valid window origin for level i."""
    ind = np.zeros((H * W, nlv - 1), np.float32)
    for i in range(nlv - 1):
        k = i + 2
        s = (i + 2) // 2
        noh = (H - k) // s + 1
        now = (W - k) // s + 1
        for a in range(noh):
            for b in range(now):
                ind[a * s * W + b * s, i] = 1.0
    return ind


def my_model_forward(x, params):
    nb = x.shape[0]
    # TODO(synk): at real densenet161 scale move the im2col into the kernel
    # (index_map patch gather / manual DMA) instead of materializing in HBM.
    patches, oh, ow = _im2col(x, K_FEAT, S_FEAT)
    m = nb * oh * ow
    a = patches.reshape(m, C_IN * K_FEAT * K_FEAT)

    # GDCB regression constants (passed as Python floats -> no captured arrays)
    xs = np.array([-math.log(i + 2, 2) for i in range(NLV_BCD - 1)], np.float64)
    xcen = xs - xs.mean()
    denom = float((xcen * xcen).sum())
    xc = tuple(float(v) for v in xcen)

    ind = jnp.asarray(_pool_origin_indicator(oh, ow, NLV_BCD))

    kern = functools.partial(_fused_forward_kernel, n=nb, H=oh, W=ow,
                             nlv=NLV_BCD, xc=xc, denom=denom)
    return pl.pallas_call(
        kern,
        out_shape=jax.ShapeDtypeStruct((nb, NUM_CLASSES), jnp.float32),
    )(a, params["w_feat"], params["b_feat"], params["w_conv1"],
      params["b_conv1"], params["w_cls"], params["b_cls"], ind)


# --------------------------- numpy reference check ----------------------------
def _reference(x, p):
    x = np.asarray(x, np.float64)
    wf = np.asarray(p["w_feat"], np.float64); bf = np.asarray(p["b_feat"], np.float64)
    w1 = np.asarray(p["w_conv1"], np.float64); b1 = np.asarray(p["b_conv1"], np.float64)
    wc = np.asarray(p["w_cls"], np.float64); bc = np.asarray(p["b_cls"], np.float64)
    n, cin, h, w = x.shape
    oh = (h - K_FEAT) // S_FEAT + 1
    ow = (w - K_FEAT) // S_FEAT + 1
    cols = []
    for dh in range(K_FEAT):
        for dw in range(K_FEAT):
            cols.append(x[:, :, dh:dh + S_FEAT * oh:S_FEAT, dw:dw + S_FEAT * ow:S_FEAT])
    p_ = np.stack(cols, axis=1).transpose(0, 3, 4, 2, 1).reshape(n, oh, ow, cin * K_FEAT * K_FEAT)
    feat = np.maximum(p_ @ wf + bf, 0.0)
    out = np.maximum(feat @ w1 + b1, 0.0) - 1.0 / (1.0 + np.exp(-feat))
    out1 = out.mean(axis=(1, 2))
    levels = []
    for i in range(NLV_BCD - 1):
        k = i + 2; s = (i + 2) // 2
        noh = (oh - k) // s + 1; now = (ow - k) // s + 1
        acc = np.zeros((n, C_FEAT))
        for a in range(noh):
            for b in range(now):
                acc += out[:, a * s:a * s + k, b * s:b * s + k, :].max(axis=(1, 2))
        levels.append(acc)
    y = np.log2(np.maximum(np.stack(levels, axis=1), 0.0) + 1.0)
    xs = np.array([-math.log(i + 2, 2) for i in range(NLV_BCD - 1)])
    xcen = xs - xs.mean()
    frac = ((y - y.mean(axis=1, keepdims=True)) * xcen[None, :, None]).sum(axis=1) / (xcen * xcen).sum()
    return (out1 * frac) @ wc + bc


# ------------------------------------ main -------------------------------------
if __name__ == "__main__":
    key = jax.random.PRNGKey(0)
    kx, k1, k2, k3, k4, k5, k6 = jax.random.split(key, 7)
    x = jax.random.normal(kx, (N, C_IN, H_IN, W_IN), jnp.float32)
    params = {
        "w_feat": jax.random.normal(k1, (C_IN * K_FEAT * K_FEAT, C_FEAT), jnp.float32)
                  / math.sqrt(C_IN * K_FEAT * K_FEAT),
        "b_feat": jax.random.normal(k2, (1, C_FEAT), jnp.float32) * 0.1,
        "w_conv1": jax.random.normal(k3, (C_FEAT, C_FEAT), jnp.float32) / math.sqrt(C_FEAT),
        "b_conv1": jax.random.normal(k4, (1, C_FEAT), jnp.float32) * 0.1,
        "w_cls": jax.random.normal(k5, (C_FEAT, NUM_CLASSES), jnp.float32) / math.sqrt(C_FEAT),
        "b_cls": jax.random.normal(k6, (1, NUM_CLASSES), jnp.float32) * 0.1,
    }

    logits = jax.jit(my_model_forward)(x, params)
    logits = jax.block_until_ready(logits)

    ref = _reference(np.asarray(x), {k: np.asarray(v) for k, v in params.items()})
    np.testing.assert_allclose(np.asarray(logits), ref, rtol=1e-2, atol=1e-2)
    print("KERNEL_OK")
</pallas_src>

<mosaic_0001>
module attributes {stable_mosaic.version = 11 : i64} {
  func.func @_fused_forward_kernel(%arg0: memref<98x27xf32, #tpu.memory_space<vmem>>, %arg1: memref<27x8xf32, #tpu.memory_space<vmem>>, %arg2: memref<1x8xf32, #tpu.memory_space<vmem>>, %arg3: memref<8x8xf32, #tpu.memory_space<vmem>>, %arg4: memref<1x8xf32, #tpu.memory_space<vmem>>, %arg5: memref<8x5xf32, #tpu.memory_space<vmem>>, %arg6: memref<1x5xf32, #tpu.memory_space<vmem>>, %arg7: memref<49x5xf32, #tpu.memory_space<vmem>>, %arg8: memref<2x5xf32, #tpu.memory_space<vmem>>) attributes {dimension_semantics = [], scalar_prefetch = 0 : i64, scratch_operands = 0 : i64, tpu.core_type = #tpu.core_type<tc>} {
    %c0 = arith.constant 0 : index
    %c0_0 = arith.constant 0 : index
    %0 = vector.load %arg0[%c0, %c0_0] : memref<98x27xf32, #tpu.memory_space<vmem>>, vector<98x27xf32>
    %c0_1 = arith.constant 0 : index
    %c0_2 = arith.constant 0 : index
    %1 = vector.load %arg1[%c0_1, %c0_2] : memref<27x8xf32, #tpu.memory_space<vmem>>, vector<27x8xf32>
    %cst = arith.constant dense<0.000000e+00> : vector<98x8xf32>
    %2 = tpu.matmul %0, %1, %cst {dimension_numbers = #tpu.dot_dimension_numbers<[1], [0], [0], [1], [0, 0, 1, 1], [], []>, precision = #tpu.contract_precision<fp32>} : vector<98x27xf32>, vector<27x8xf32>, vector<98x8xf32> -> vector<98x8xf32>
    %c0_3 = arith.constant 0 : index
    %c0_4 = arith.constant 0 : index
    %3 = vector.load %arg2[%c0_3, %c0_4] : memref<1x8xf32, #tpu.memory_space<vmem>>, vector<1x8xf32>
    %4 = vector.broadcast %3 : vector<1x8xf32> to vector<98x8xf32>
    %5 = arith.addf %2, %4 : vector<98x8xf32>
    %cst_5 = arith.constant 0.000000e+00 : f32
    %6 = vector.broadcast %cst_5 : f32 to vector<98x8xf32>
    %7 = arith.maximumf %5, %6 : vector<98x8xf32>
    %c0_6 = arith.constant 0 : index
    %c0_7 = arith.constant 0 : index
    %8 = vector.load %arg3[%c0_6, %c0_7] : memref<8x8xf32, #tpu.memory_space<vmem>>, vector<8x8xf32>
    %cst_8 = arith.constant dense<0.000000e+00> : vector<98x8xf32>
    %9 = tpu.matmul %7, %8, %cst_8 {dimension_numbers = #tpu.dot_dimension_numbers<[1], [0], [0], [1], [0, 0, 1, 1], [], []>, precision = #tpu.contract_precision<fp32>} : vector<98x8xf32>, vector<8x8xf32>, vector<98x8xf32> -> vector<98x8xf32>
    %c0_9 = arith.constant 0 : index
    %c0_10 = arith.constant 0 : index
    %10 = vector.load %arg4[%c0_9, %c0_10] : memref<1x8xf32, #tpu.memory_space<vmem>>, vector<1x8xf32>
    %11 = vector.broadcast %10 : vector<1x8xf32> to vector<98x8xf32>
    %12 = arith.addf %9, %11 : vector<98x8xf32>
    %cst_11 = arith.constant 0.000000e+00 : f32
    %13 = vector.broadcast %cst_11 : f32 to vector<98x8xf32>
    %14 = arith.maximumf %12, %13 : vector<98x8xf32>
    %15 = arith.negf %7 : vector<98x8xf32>
    %16 = math.exp %15 : vector<98x8xf32>
    %cst_12 = arith.constant 1.000000e+00 : f32
    %17 = vector.broadcast %cst_12 : f32 to vector<98x8xf32>
    %18 = arith.addf %17, %16 : vector<98x8xf32>
    %19 = arith.divf %17, %18 : vector<98x8xf32>
    %20 = arith.subf %14, %19 : vector<98x8xf32>
    %21 = vector.extract_strided_slice %20 {offsets = [0, 0], sizes = [49, 8], strides = [1, 1]} : vector<98x8xf32> to vector<49x8xf32>
    %cst_13 = arith.constant dense<0.000000e+00> : vector<8xf32>
    %22 = vector.multi_reduction <add>, %21, %cst_13 [0] : vector<49x8xf32> to vector<8xf32>
    %23 = vector.shape_cast %22 : vector<8xf32> to vector<1x8xf32>
    %cst_14 = arith.constant 4.900000e+01 : f32
    %24 = vector.broadcast %cst_14 : f32 to vector<1x8xf32>
    %25 = arith.divf %23, %24 : vector<1x8xf32>
    %26 = vector.extract_strided_slice %21 {offsets = [0, 0], sizes = [48, 8], strides = [1, 1]} : vector<49x8xf32> to vector<48x8xf32>
    %27 = vector.extract_strided_slice %21 {offsets = [1, 0], sizes = [48, 8], strides = [1, 1]} : vector<49x8xf32> to vector<48x8xf32>
    %28 = arith.maximumf %26, %27 : vector<48x8xf32>
    %29 = vector.extract_strided_slice %28 {offsets = [0, 0], sizes = [41, 8], strides = [1, 1]} : vector<48x8xf32> to vector<41x8xf32>
    %30 = vector.extract_strided_slice %28 {offsets = [7, 0], sizes = [41, 8], strides = [1, 1]} : vector<48x8xf32> to vector<41x8xf32>
    %31 = arith.maximumf %29, %30 : vector<41x8xf32>
    %c0_15 = arith.constant 0 : index
    %c0_16 = arith.constant 0 : index
    %32 = vector.load %arg7[%c0_15, %c0_16] : memref<49x5xf32, #tpu.memory_space<vmem>>, vector<41x1xf32>
    %33 = vector.broadcast %32 : vector<41x1xf32> to vector<41x8xf32>
    %34 = arith.mulf %31, %33 : vector<41x8xf32>
    %cst_17 = arith.constant dense<0.000000e+00> : vector<8xf32>
    %35 = vector.multi_reduction <add>, %34, %cst_17 [0] : vector<41x8xf32> to vector<8xf32>
    %36 = vector.shape_cast %35 : vector<8xf32> to vector<1x8xf32>
    %cst_18 = arith.constant 0.000000e+00 : f32
    %37 = vector.broadcast %cst_18 : f32 to vector<1x8xf32>
    %38 = arith.maximumf %36, %37 : vector<1x8xf32>
    %cst_19 = arith.constant 1.000000e+00 : f32
    %39 = vector.broadcast %cst_19 : f32 to vector<1x8xf32>
    %40 = arith.addf %38, %39 : vector<1x8xf32>
    %41 = math.log %40 : vector<1x8xf32>
    %cst_20 = arith.constant 2.000000e+00 : f32
    %42 = math.log %cst_20 : f32
    %43 = vector.broadcast %42 : f32 to vector<1x8xf32>
    %44 = arith.divf %41, %43 : vector<1x8xf32>
    %45 = vector.extract_strided_slice %21 {offsets = [0, 0], sizes = [47, 8], strides = [1, 1]} : vector<49x8xf32> to vector<47x8xf32>
    %46 = vector.extract_strided_slice %21 {offsets = [1, 0], sizes = [47, 8], strides = [1, 1]} : vector<49x8xf32> to vector<47x8xf32>
    %47 = arith.maximumf %45, %46 : vector<47x8xf32>
    %48 = vector.extract_strided_slice %21 {offsets = [2, 0], sizes = [47, 8], strides = [1, 1]} : vector<49x8xf32> to vector<47x8xf32>
    %49 = arith.maximumf %47, %48 : vector<47x8xf32>
    %50 = vector.extract_strided_slice %49 {offsets = [0, 0], sizes = [33, 8], strides = [1, 1]} : vector<47x8xf32> to vector<33x8xf32>
    %51 = vector.extract_strided_slice %49 {offsets = [7, 0], sizes = [33, 8], strides = [1, 1]} : vector<47x8xf32> to vector<33x8xf32>
    %52 = arith.maximumf %50, %51 : vector<33x8xf32>
    %53 = vector.extract_strided_slice %49 {offsets = [14, 0], sizes = [33, 8], strides = [1, 1]} : vector<47x8xf32> to vector<33x8xf32>
    %54 = arith.maximumf %52, %53 : vector<33x8xf32>
    %c0_21 = arith.constant 0 : index
    %c1 = arith.constant 1 : index
    %55 = vector.load %arg7[%c0_21, %c1] : memref<49x5xf32, #tpu.memory_space<vmem>>, vector<33x1xf32>
    %56 = vector.broadcast %55 : vector<33x1xf32> to vector<33x8xf32>
    %57 = arith.mulf %54, %56 : vector<33x8xf32>
    %cst_22 = arith.constant dense<0.000000e+00> : vector<8xf32>
    %58 = vector.multi_reduction <add>, %57, %cst_22 [0] : vector<33x8xf32> to vector<8xf32>
    %59 = vector.shape_cast %58 : vector<8xf32> to vector<1x8xf32>
    %cst_23 = arith.constant 0.000000e+00 : f32
    %60 = vector.broadcast %cst_23 : f32 to vector<1x8xf32>
    %61 = arith.maximumf %59, %60 : vector<1x8xf32>
    %cst_24 = arith.constant 1.000000e+00 : f32
    %62 = vector.broadcast %cst_24 : f32 to vector<1x8xf32>
    %63 = arith.addf %61, %62 : vector<1x8xf32>
    %64 = math.log %63 : vector<1x8xf32>
    %cst_25 = arith.constant 2.000000e+00 : f32
    %65 = math.log %cst_25 : f32
    %66 = vector.broadcast %65 : f32 to vector<1x8xf32>
    %67 = arith.divf %64, %66 : vector<1x8xf32>
    %68 = vector.extract_strided_slice %21 {offsets = [0, 0], sizes = [46, 8], strides = [1, 1]} : vector<49x8xf32> to vector<46x8xf32>
    %69 = vector.extract_strided_slice %21 {offsets = [1, 0], sizes = [46, 8], strides = [1, 1]} : vector<49x8xf32> to vector<46x8xf32>
    %70 = arith.maximumf %68, %69 : vector<46x8xf32>
    %71 = vector.extract_strided_slice %21 {offsets = [2, 0], sizes = [46, 8], strides = [1, 1]} : vector<49x8xf32> to vector<46x8xf32>
    %72 = arith.maximumf %70, %71 : vector<46x8xf32>
    %73 = vector.extract_strided_slice %21 {offsets = [3, 0], sizes = [46, 8], strides = [1, 1]} : vector<49x8xf32> to vector<46x8xf32>
    %74 = arith.maximumf %72, %73 : vector<46x8xf32>
    %75 = vector.extract_strided_slice %74 {offsets = [0, 0], sizes = [25, 8], strides = [1, 1]} : vector<46x8xf32> to vector<25x8xf32>
    %76 = vector.extract_strided_slice %74 {offsets = [7, 0], sizes = [25, 8], strides = [1, 1]} : vector<46x8xf32> to vector<25x8xf32>
    %77 = arith.maximumf %75, %76 : vector<25x8xf32>
    %78 = vector.extract_strided_slice %74 {offsets = [14, 0], sizes = [25, 8], strides = [1, 1]} : vector<46x8xf32> to vector<25x8xf32>
    %79 = arith.maximumf %77, %78 : vector<25x8xf32>
    %80 = vector.extract_strided_slice %74 {offsets = [21, 0], sizes = [25, 8], strides = [1, 1]} : vector<46x8xf32> to vector<25x8xf32>
    %81 = arith.maximumf %79, %80 : vector<25x8xf32>
    %c0_26 = arith.constant 0 : index
    %c2 = arith.constant 2 : index
    %82 = vector.load %arg7[%c0_26, %c2] : memref<49x5xf32, #tpu.memory_space<vmem>>, vector<25x1xf32>
    %83 = vector.broadcast %82 : vector<25x1xf32> to vector<25x8xf32>
    %84 = arith.mulf %81, %83 : vector<25x8xf32>
    %cst_27 = arith.constant dense<0.000000e+00> : vector<8xf32>
    %85 = vector.multi_reduction <add>, %84, %cst_27 [0] : vector<25x8xf32> to vector<8xf32>
    %86 = vector.shape_cast %85 : vector<8xf32> to vector<1x8xf32>
    %cst_28 = arith.constant 0.000000e+00 : f32
    %87 = vector.broadcast %cst_28 : f32 to vector<1x8xf32>
    %88 = arith.maximumf %86, %87 : vector<1x8xf32>
    %cst_29 = arith.constant 1.000000e+00 : f32
    %89 = vector.broadcast %cst_29 : f32 to vector<1x8xf32>
    %90 = arith.addf %88, %89 : vector<1x8xf32>
    %91 = math.log %90 : vector<1x8xf32>
    %cst_30 = arith.constant 2.000000e+00 : f32
    %92 = math.log %cst_30 : f32
    %93 = vector.broadcast %92 : f32 to vector<1x8xf32>
    %94 = arith.divf %91, %93 : vector<1x8xf32>
    %95 = vector.extract_strided_slice %21 {offsets = [0, 0], sizes = [45, 8], strides = [1, 1]} : vector<49x8xf32> to vector<45x8xf32>
    %96 = vector.extract_strided_slice %21 {offsets = [1, 0], sizes = [45, 8], strides = [1, 1]} : vector<49x8xf32> to vector<45x8xf32>
    %97 = arith.maximumf %95, %96 : vector<45x8xf32>
    %98 = vector.extract_strided_slice %21 {offsets = [2, 0], sizes = [45, 8], strides = [1, 1]} : vector<49x8xf32> to vector<45x8xf32>
    %99 = arith.maximumf %97, %98 : vector<45x8xf32>
    %100 = vector.extract_strided_slice %21 {offsets = [3, 0], sizes = [45, 8], strides = [1, 1]} : vector<49x8xf32> to vector<45x8xf32>
    %101 = arith.maximumf %99, %100 : vector<45x8xf32>
    %102 = vector.extract_strided_slice %21 {offsets = [4, 0], sizes = [45, 8], strides = [1, 1]} : vector<49x8xf32> to vector<45x8xf32>
    %103 = arith.maximumf %101, %102 : vector<45x8xf32>
    %104 = vector.extract_strided_slice %103 {offsets = [0, 0], sizes = [17, 8], strides = [1, 1]} : vector<45x8xf32> to vector<17x8xf32>
    %105 = vector.extract_strided_slice %103 {offsets = [7, 0], sizes = [17, 8], strides = [1, 1]} : vector<45x8xf32> to vector<17x8xf32>
    %106 = arith.maximumf %104, %105 : vector<17x8xf32>
    %107 = vector.extract_strided_slice %103 {offsets = [14, 0], sizes = [17, 8], strides = [1, 1]} : vector<45x8xf32> to vector<17x8xf32>
    %108 = arith.maximumf %106, %107 : vector<17x8xf32>
    %109 = vector.extract_strided_slice %103 {offsets = [21, 0], sizes = [17, 8], strides = [1, 1]} : vector<45x8xf32> to vector<17x8xf32>
    %110 = arith.maximumf %108, %109 : vector<17x8xf32>
    %111 = vector.extract_strided_slice %103 {offsets = [28, 0], sizes = [17, 8], strides = [1, 1]} : vector<45x8xf32> to vector<17x8xf32>
    %112 = arith.maximumf %110, %111 : vector<17x8xf32>
    %c0_31 = arith.constant 0 : index
    %c3 = arith.constant 3 : index
    %113 = vector.load %arg7[%c0_31, %c3] : memref<49x5xf32, #tpu.memory_space<vmem>>, vector<17x1xf32>
    %114 = vector.broadcast %113 : vector<17x1xf32> to vector<17x8xf32>
    %115 = arith.mulf %112, %114 : vector<17x8xf32>
    %cst_32 = arith.constant dense<0.000000e+00> : vector<8xf32>
    %116 = vector.multi_reduction <add>, %115, %cst_32 [0] : vector<17x8xf32> to vector<8xf32>
    %117 = vector.shape_cast %116 : vector<8xf32> to vector<1x8xf32>
    %cst_33 = arith.constant 0.000000e+00 : f32
    %118 = vector.broadcast %cst_33 : f32 to vector<1x8xf32>
    %119 = arith.maximumf %117, %118 : vector<1x8xf32>
    %cst_34 = arith.constant 1.000000e+00 : f32
    %120 = vector.broadcast %cst_34 : f32 to vector<1x8xf32>
    %121 = arith.addf %119, %120 : vector<1x8xf32>
    %122 = math.log %121 : vector<1x8xf32>
    %cst_35 = arith.constant 2.000000e+00 : f32
    %123 = math.log %cst_35 : f32
    %124 = vector.broadcast %123 : f32 to vector<1x8xf32>
    %125 = arith.divf %122, %124 : vector<1x8xf32>
    %126 = vector.extract_strided_slice %21 {offsets = [0, 0], sizes = [44, 8], strides = [1, 1]} : vector<49x8xf32> to vector<44x8xf32>
    %127 = vector.extract_strided_slice %21 {offsets = [1, 0], sizes = [44, 8], strides = [1, 1]} : vector<49x8xf32> to vector<44x8xf32>
    %128 = arith.maximumf %126, %127 : vector<44x8xf32>
    %129 = vector.extract_strided_slice %21 {offsets = [2, 0], sizes = [44, 8], strides = [1, 1]} : vector<49x8xf32> to vector<44x8xf32>
    %130 = arith.maximumf %128, %129 : vector<44x8xf32>
    %131 = vector.extract_strided_slice %21 {offsets = [3, 0], sizes = [44, 8], strides = [1, 1]} : vector<49x8xf32> to vector<44x8xf32>
    %132 = arith.maximumf %130, %131 : vector<44x8xf32>
    %133 = vector.extract_strided_slice %21 {offsets = [4, 0], sizes = [44, 8], strides = [1, 1]} : vector<49x8xf32> to vector<44x8xf32>
    %134 = arith.maximumf %132, %133 : vector<44x8xf32>
    %135 = vector.extract_strided_slice %21 {offsets = [5, 0], sizes = [44, 8], strides = [1, 1]} : vector<49x8xf32> to vector<44x8xf32>
    %136 = arith.maximumf %134, %135 : vector<44x8xf32>
    %137 = vector.extract_strided_slice %136 {offsets = [0, 0], sizes = [9, 8], strides = [1, 1]} : vector<44x8xf32> to vector<9x8xf32>
    %138 = vector.extract_strided_slice %136 {offsets = [7, 0], sizes = [9, 8], strides = [1, 1]} : vector<44x8xf32> to vector<9x8xf32>
    %139 = arith.maximumf %137, %138 : vector<9x8xf32>
    %140 = vector.extract_strided_slice %136 {offsets = [14, 0], sizes = [9, 8], strides = [1, 1]} : vector<44x8xf32> to vector<9x8xf32>
    %141 = arith.maximumf %139, %140 : vector<9x8xf32>
    %142 = vector.extract_strided_slice %136 {offsets = [21, 0], sizes = [9, 8], strides = [1, 1]} : vector<44x8xf32> to vector<9x8xf32>
    %143 = arith.maximumf %141, %142 : vector<9x8xf32>
    %144 = vector.extract_strided_slice %136 {offsets = [28, 0], sizes = [9, 8], strides = [1, 1]} : vector<44x8xf32> to vector<9x8xf32>
    %145 = arith.maximumf %143, %144 : vector<9x8xf32>
    %146 = vector.extract_strided_slice %136 {offsets = [35, 0], sizes = [9, 8], strides = [1, 1]} : vector<44x8xf32> to vector<9x8xf32>
    %147 = arith.maximumf %145, %146 : vector<9x8xf32>
    %c0_36 = arith.constant 0 : index
    %c4 = arith.constant 4 : index
    %148 = vector.load %arg7[%c0_36, %c4] : memref<49x5xf32, #tpu.memory_space<vmem>>, vector<9x1xf32>
    %149 = vector.broadcast %148 : vector<9x1xf32> to vector<9x8xf32>
    %150 = arith.mulf %147, %149 : vector<9x8xf32>
    %cst_37 = arith.constant dense<0.000000e+00> : vector<8xf32>
    %151 = vector.multi_reduction <add>, %150, %cst_37 [0] : vector<9x8xf32> to vector<8xf32>
    %152 = vector.shape_cast %151 : vector<8xf32> to vector<1x8xf32>
    %cst_38 = arith.constant 0.000000e+00 : f32
    %153 = vector.broadcast %cst_38 : f32 to vector<1x8xf32>
    %154 = arith.maximumf %152, %153 : vector<1x8xf32>
    %cst_39 = arith.constant 1.000000e+00 : f32
    %155 = vector.broadcast %cst_39 : f32 to vector<1x8xf32>
    %156 = arith.addf %154, %155 : vector<1x8xf32>
    %157 = math.log %156 : vector<1x8xf32>
    %cst_40 = arith.constant 2.000000e+00 : f32
    %158 = math.log %cst_40 : f32
    %159 = vector.broadcast %158 : f32 to vector<1x8xf32>
    %160 = arith.divf %157, %159 : vector<1x8xf32>
    %cst_41 = arith.constant 0.000000e+00 : f32
    %161 = vector.broadcast %cst_41 : f32 to vector<1x8xf32>
    %162 = arith.addf %161, %44 : vector<1x8xf32>
    %163 = arith.addf %162, %67 : vector<1x8xf32>
    %164 = arith.addf %163, %94 : vector<1x8xf32>
    %165 = arith.addf %164, %125 : vector<1x8xf32>
    %166 = arith.addf %165, %160 : vector<1x8xf32>
    %cst_42 = arith.constant 2.000000e-01 : f32
    %167 = vector.broadcast %cst_42 : f32 to vector<1x8xf32>
    %168 = arith.mulf %166, %167 : vector<1x8xf32>
    %169 = arith.subf %44, %168 : vector<1x8xf32>
    %cst_43 = arith.constant 0.898370623 : f32
    %170 = vector.broadcast %cst_43 : f32 to vector<1x8xf32>
    %171 = arith.mulf %169, %170 : vector<1x8xf32>
    %cst_44 = arith.constant 0.000000e+00 : f32
    %172 = vector.broadcast %cst_44 : f32 to vector<1x8xf32>
    %173 = arith.addf %172, %171 : vector<1x8xf32>
    %174 = arith.subf %67, %168 : vector<1x8xf32>
    %cst_45 = arith.constant 0.313408107 : f32
    %175 = vector.broadcast %cst_45 : f32 to vector<1x8xf32>
    %176 = arith.mulf %174, %175 : vector<1x8xf32>
    %177 = arith.addf %173, %176 : vector<1x8xf32>
    %178 = arith.subf %94, %168 : vector<1x8xf32>
    %cst_46 = arith.constant -0.101629384 : f32
    %179 = vector.broadcast %cst_46 : f32 to vector<1x8xf32>
    %180 = arith.mulf %178, %179 : vector<1x8xf32>
    %181 = arith.addf %177, %180 : vector<1x8xf32>
    %182 = arith.subf %125, %168 : vector<1x8xf32>
    %cst_47 = arith.constant -0.42355749 : f32
    %183 = vector.broadcast %cst_47 : f32 to vector<1x8xf32>
    %184 = arith.mulf %182, %183 : vector<1x8xf32>
    %185 = arith.addf %181, %184 : vector<1x8xf32>
    %186 = arith.subf %160, %168 : vector<1x8xf32>
    %cst_48 = arith.constant -0.686591864 : f32
    %187 = vector.broadcast %cst_48 : f32 to vector<1x8xf32>
    %188 = arith.mulf %186, %187 : vector<1x8xf32>
    %189 = arith.addf %185, %188 : vector<1x8xf32>
    %cst_49 = arith.constant 1.56643224 : f32
    %190 = vector.broadcast %cst_49 : f32 to vector<1x8xf32>
    %191 = arith.divf %189, %190 : vector<1x8xf32>
    %192 = arith.mulf %25, %191 : vector<1x8xf32>
    %193 = vector.extract_strided_slice %20 {offsets = [49, 0], sizes = [49, 8], strides = [1, 1]} : vector<98x8xf32> to vector<49x8xf32>
    %cst_50 = arith.constant dense<0.000000e+00> : vector<8xf32>
    %194 = vector.multi_reduction <add>, %193, %cst_50 [0] : vector<49x8xf32> to vector<8xf32>
    %195 = vector.shape_cast %194 : vector<8xf32> to vector<1x8xf32>
    %cst_51 = arith.constant 4.900000e+01 : f32
    %196 = vector.broadcast %cst_51 : f32 to vector<1x8xf32>
    %197 = arith.divf %195, %196 : vector<1x8xf32>
    %198 = vector.extract_strided_slice %193 {offsets = [0, 0], sizes = [48, 8], strides = [1, 1]} : vector<49x8xf32> to vector<48x8xf32>
    %199 = vector.extract_strided_slice %193 {offsets = [1, 0], sizes = [48, 8], strides = [1, 1]} : vector<49x8xf32> to vector<48x8xf32>
    %200 = arith.maximumf %198, %199 : vector<48x8xf32>
    %201 = vector.extract_strided_slice %200 {offsets = [0, 0], sizes = [41, 8], strides = [1, 1]} : vector<48x8xf32> to vector<41x8xf32>
    %202 = vector.extract_strided_slice %200 {offsets = [7, 0], sizes = [41, 8], strides = [1, 1]} : vector<48x8xf32> to vector<41x8xf32>
    %203 = arith.maximumf %201, %202 : vector<41x8xf32>
    %c0_52 = arith.constant 0 : index
    %c0_53 = arith.constant 0 : index
    %204 = vector.load %arg7[%c0_52, %c0_53] : memref<49x5xf32, #tpu.memory_space<vmem>>, vector<41x1xf32>
    %205 = vector.broadcast %204 : vector<41x1xf32> to vector<41x8xf32>
    %206 = arith.mulf %203, %205 : vector<41x8xf32>
    %cst_54 = arith.constant dense<0.000000e+00> : vector<8xf32>
    %207 = vector.multi_reduction <add>, %206, %cst_54 [0] : vector<41x8xf32> to vector<8xf32>
    %208 = vector.shape_cast %207 : vector<8xf32> to vector<1x8xf32>
    %cst_55 = arith.constant 0.000000e+00 : f32
    %209 = vector.broadcast %cst_55 : f32 to vector<1x8xf32>
    %210 = arith.maximumf %208, %209 : vector<1x8xf32>
    %cst_56 = arith.constant 1.000000e+00 : f32
    %211 = vector.broadcast %cst_56 : f32 to vector<1x8xf32>
    %212 = arith.addf %210, %211 : vector<1x8xf32>
    %213 = math.log %212 : vector<1x8xf32>
    %cst_57 = arith.constant 2.000000e+00 : f32
    %214 = math.log %cst_57 : f32
    %215 = vector.broadcast %214 : f32 to vector<1x8xf32>
    %216 = arith.divf %213, %215 : vector<1x8xf32>
    %217 = vector.extract_strided_slice %193 {offsets = [0, 0], sizes = [47, 8], strides = [1, 1]} : vector<49x8xf32> to vector<47x8xf32>
    %218 = vector.extract_strided_slice %193 {offsets = [1, 0], sizes = [47, 8], strides = [1, 1]} : vector<49x8xf32> to vector<47x8xf32>
    %219 = arith.maximumf %217, %218 : vector<47x8xf32>
    %220 = vector.extract_strided_slice %193 {offsets = [2, 0], sizes = [47, 8], strides = [1, 1]} : vector<49x8xf32> to vector<47x8xf32>
    %221 = arith.maximumf %219, %220 : vector<47x8xf32>
    %222 = vector.extract_strided_slice %221 {offsets = [0, 0], sizes = [33, 8], strides = [1, 1]} : vector<47x8xf32> to vector<33x8xf32>
    %223 = vector.extract_strided_slice %221 {offsets = [7, 0], sizes = [33, 8], strides = [1, 1]} : vector<47x8xf32> to vector<33x8xf32>
    %224 = arith.maximumf %222, %223 : vector<33x8xf32>
    %225 = vector.extract_strided_slice %221 {offsets = [14, 0], sizes = [33, 8], strides = [1, 1]} : vector<47x8xf32> to vector<33x8xf32>
    %226 = arith.maximumf %224, %225 : vector<33x8xf32>
    %c0_58 = arith.constant 0 : index
    %c1_59 = arith.constant 1 : index
    %227 = vector.load %arg7[%c0_58, %c1_59] : memref<49x5xf32, #tpu.memory_space<vmem>>, vector<33x1xf32>
    %228 = vector.broadcast %227 : vector<33x1xf32> to vector<33x8xf32>
    %229 = arith.mulf %226, %228 : vector<33x8xf32>
    %cst_60 = arith.constant dense<0.000000e+00> : vector<8xf32>
    %230 = vector.multi_reduction <add>, %229, %cst_60 [0] : vector<33x8xf32> to vector<8xf32>
    %231 = vector.shape_cast %230 : vector<8xf32> to vector<1x8xf32>
    %cst_61 = arith.constant 0.000000e+00 : f32
    %232 = vector.broadcast %cst_61 : f32 to vector<1x8xf32>
    %233 = arith.maximumf %231, %232 : vector<1x8xf32>
    %cst_62 = arith.constant 1.000000e+00 : f32
    %234 = vector.broadcast %cst_62 : f32 to vector<1x8xf32>
    %235 = arith.addf %233, %234 : vector<1x8xf32>
    %236 = math.log %235 : vector<1x8xf32>
    %cst_63 = arith.constant 2.000000e+00 : f32
    %237 = math.log %cst_63 : f32
    %238 = vector.broadcast %237 : f32 to vector<1x8xf32>
    %239 = arith.divf %236, %238 : vector<1x8xf32>
    %240 = vector.extract_strided_slice %193 {offsets = [0, 0], sizes = [46, 8], strides = [1, 1]} : vector<49x8xf32> to vector<46x8xf32>
    %241 = vector.extract_strided_slice %193 {offsets = [1, 0], sizes = [46, 8], strides = [1, 1]} : vector<49x8xf32> to vector<46x8xf32>
    %242 = arith.maximumf %240, %241 : vector<46x8xf32>
    %243 = vector.extract_strided_slice %193 {offsets = [2, 0], sizes = [46, 8], strides = [1, 1]} : vector<49x8xf32> to vector<46x8xf32>
    %244 = arith.maximumf %242, %243 : vector<46x8xf32>
    %245 = vector.extract_strided_slice %193 {offsets = [3, 0], sizes = [46, 8], strides = [1, 1]} : vector<49x8xf32> to vector<46x8xf32>
    %246 = arith.maximumf %244, %245 : vector<46x8xf32>
    %247 = vector.extract_strided_slice %246 {offsets = [0, 0], sizes = [25, 8], strides = [1, 1]} : vector<46x8xf32> to vector<25x8xf32>
    %248 = vector.extract_strided_slice %246 {offsets = [7, 0], sizes = [25, 8], strides = [1, 1]} : vector<46x8xf32> to vector<25x8xf32>
    %249 = arith.maximumf %247, %248 : vector<25x8xf32>
    %250 = vector.extract_strided_slice %246 {offsets = [14, 0], sizes = [25, 8], strides = [1, 1]} : vector<46x8xf32> to vector<25x8xf32>
    %251 = arith.maximumf %249, %250 : vector<25x8xf32>
    %252 = vector.extract_strided_slice %246 {offsets = [21, 0], sizes = [25, 8], strides = [1, 1]} : vector<46x8xf32> to vector<25x8xf32>
    %253 = arith.maximumf %251, %252 : vector<25x8xf32>
    %c0_64 = arith.constant 0 : index
    %c2_65 = arith.constant 2 : index
    %254 = vector.load %arg7[%c0_64, %c2_65] : memref<49x5xf32, #tpu.memory_space<vmem>>, vector<25x1xf32>
    %255 = vector.broadcast %254 : vector<25x1xf32> to vector<25x8xf32>
    %256 = arith.mulf %253, %255 : vector<25x8xf32>
    %cst_66 = arith.constant dense<0.000000e+00> : vector<8xf32>
    %257 = vector.multi_reduction <add>, %256, %cst_66 [0] : vector<25x8xf32> to vector<8xf32>
    %258 = vector.shape_cast %257 : vector<8xf32> to vector<1x8xf32>
    %cst_67 = arith.constant 0.000000e+00 : f32
    %259 = vector.broadcast %cst_67 : f32 to vector<1x8xf32>
    %260 = arith.maximumf %258, %259 : vector<1x8xf32>
    %cst_68 = arith.constant 1.000000e+00 : f32
    %261 = vector.broadcast %cst_68 : f32 to vector<1x8xf32>
    %262 = arith.addf %260, %261 : vector<1x8xf32>
    %263 = math.log %262 : vector<1x8xf32>
    %cst_69 = arith.constant 2.000000e+00 : f32
    %264 = math.log %cst_69 : f32
    %265 = vector.broadcast %264 : f32 to vector<1x8xf32>
    %266 = arith.divf %263, %265 : vector<1x8xf32>
    %267 = vector.extract_strided_slice %193 {offsets = [0, 0], sizes = [45, 8], strides = [1, 1]} : vector<49x8xf32> to vector<45x8xf32>
    %268 = vector.extract_strided_slice %193 {offsets = [1, 0], sizes = [45, 8], strides = [1, 1]} : vector<49x8xf32> to vector<45x8xf32>
    %269 = arith.maximumf %267, %268 : vector<45x8xf32>
    %270 = vector.extract_strided_slice %193 {offsets = [2, 0], sizes = [45, 8], strides = [1, 1]} : vector<49x8xf32> to vector<45x8xf32>
    %271 = arith.maximumf %269, %270 : vector<45x8xf32>
    %272 = vector.extract_strided_slice %193 {offsets = [3, 0], sizes = [45, 8], strides = [1, 1]} : vector<49x8xf32> to vector<45x8xf32>
    %273 = arith.maximumf %271, %272 : vector<45x8xf32>
    %274 = vector.extract_strided_slice %193 {offsets = [4, 0], sizes = [45, 8], strides = [1, 1]} : vector<49x8xf32> to vector<45x8xf32>
    %275 = arith.maximumf %273, %274 : vector<45x8xf32>
    %276 = vector.extract_strided_slice %275 {offsets = [0, 0], sizes = [17, 8], strides = [1, 1]} : vector<45x8xf32> to vector<17x8xf32>
    %277 = vector.extract_strided_slice %275 {offsets = [7, 0], sizes = [17, 8], strides = [1, 1]} : vector<45x8xf32> to vector<17x8xf32>
    %278 = arith.maximumf %276, %277 : vector<17x8xf32>
    %279 = vector.extract_strided_slice %275 {offsets = [14, 0], sizes = [17, 8], strides = [1, 1]} : vector<45x8xf32> to vector<17x8xf32>
    %280 = arith.maximumf %278, %279 : vector<17x8xf32>
    %281 = vector.extract_strided_slice %275 {offsets = [21, 0], sizes = [17, 8], strides = [1, 1]} : vector<45x8xf32> to vector<17x8xf32>
    %282 = arith.maximumf %280, %281 : vector<17x8xf32>
    %283 = vector.extract_strided_slice %275 {offsets = [28, 0], sizes = [17, 8], strides = [1, 1]} : vector<45x8xf32> to vector<17x8xf32>
    %284 = arith.maximumf %282, %283 : vector<17x8xf32>
    %c0_70 = arith.constant 0 : index
    %c3_71 = arith.constant 3 : index
    %285 = vector.load %arg7[%c0_70, %c3_71] : memref<49x5xf32, #tpu.memory_space<vmem>>, vector<17x1xf32>
    %286 = vector.broadcast %285 : vector<17x1xf32> to vector<17x8xf32>
    %287 = arith.mulf %284, %286 : vector<17x8xf32>
    %cst_72 = arith.constant dense<0.000000e+00> : vector<8xf32>
    %288 = vector.multi_reduction <add>, %287, %cst_72 [0] : vector<17x8xf32> to vector<8xf32>
    %289 = vector.shape_cast %288 : vector<8xf32> to vector<1x8xf32>
    %cst_73 = arith.constant 0.000000e+00 : f32
    %290 = vector.broadcast %cst_73 : f32 to vector<1x8xf32>
    %291 = arith.maximumf %289, %290 : vector<1x8xf32>
    %cst_74 = arith.constant 1.000000e+00 : f32
    %292 = vector.broadcast %cst_74 : f32 to vector<1x8xf32>
    %293 = arith.addf %291, %292 : vector<1x8xf32>
    %294 = math.log %293 : vector<1x8xf32>
    %cst_75 = arith.constant 2.000000e+00 : f32
    %295 = math.log %cst_75 : f32
    %296 = vector.broadcast %295 : f32 to vector<1x8xf32>
    %297 = arith.divf %294, %296 : vector<1x8xf32>
    %298 = vector.extract_strided_slice %193 {offsets = [0, 0], sizes = [44, 8], strides = [1, 1]} : vector<49x8xf32> to vector<44x8xf32>
    %299 = vector.extract_strided_slice %193 {offsets = [1, 0], sizes = [44, 8], strides = [1, 1]} : vector<49x8xf32> to vector<44x8xf32>
    %300 = arith.maximumf %298, %299 : vector<44x8xf32>
    %301 = vector.extract_strided_slice %193 {offsets = [2, 0], sizes = [44, 8], strides = [1, 1]} : vector<49x8xf32> to vector<44x8xf32>
    %302 = arith.maximumf %300, %301 : vector<44x8xf32>
    %303 = vector.extract_strided_slice %193 {offsets = [3, 0], sizes = [44, 8], strides = [1, 1]} : vector<49x8xf32> to vector<44x8xf32>
    %304 = arith.maximumf %302, %303 : vector<44x8xf32>
    %305 = vector.extract_strided_slice %193 {offsets = [4, 0], sizes = [44, 8], strides = [1, 1]} : vector<49x8xf32> to vector<44x8xf32>
    %306 = arith.maximumf %304, %305 : vector<44x8xf32>
    %307 = vector.extract_strided_slice %193 {offsets = [5, 0], sizes = [44, 8], strides = [1, 1]} : vector<49x8xf32> to vector<44x8xf32>
    %308 = arith.maximumf %306, %307 : vector<44x8xf32>
    %309 = vector.extract_strided_slice %308 {offsets = [0, 0], sizes = [9, 8], strides = [1, 1]} : vector<44x8xf32> to vector<9x8xf32>
    %310 = vector.extract_strided_slice %308 {offsets = [7, 0], sizes = [9, 8], strides = [1, 1]} : vector<44x8xf32> to vector<9x8xf32>
    %311 = arith.maximumf %309, %310 : vector<9x8xf32>
    %312 = vector.extract_strided_slice %308 {offsets = [14, 0], sizes = [9, 8], strides = [1, 1]} : vector<44x8xf32> to vector<9x8xf32>
    %313 = arith.maximumf %311, %312 : vector<9x8xf32>
    %314 = vector.extract_strided_slice %308 {offsets = [21, 0], sizes = [9, 8], strides = [1, 1]} : vector<44x8xf32> to vector<9x8xf32>
    %315 = arith.maximumf %313, %314 : vector<9x8xf32>
    %316 = vector.extract_strided_slice %308 {offsets = [28, 0], sizes = [9, 8], strides = [1, 1]} : vector<44x8xf32> to vector<9x8xf32>
    %317 = arith.maximumf %315, %316 : vector<9x8xf32>
    %318 = vector.extract_strided_slice %308 {offsets = [35, 0], sizes = [9, 8], strides = [1, 1]} : vector<44x8xf32> to vector<9x8xf32>
    %319 = arith.maximumf %317, %318 : vector<9x8xf32>
    %c0_76 = arith.constant 0 : index
    %c4_77 = arith.constant 4 : index
    %320 = vector.load %arg7[%c0_76, %c4_77] : memref<49x5xf32, #tpu.memory_space<vmem>>, vector<9x1xf32>
    %321 = vector.broadcast %320 : vector<9x1xf32> to vector<9x8xf32>
    %322 = arith.mulf %319, %321 : vector<9x8xf32>
    %cst_78 = arith.constant dense<0.000000e+00> : vector<8xf32>
    %323 = vector.multi_reduction <add>, %322, %cst_78 [0] : vector<9x8xf32> to vector<8xf32>
    %324 = vector.shape_cast %323 : vector<8xf32> to vector<1x8xf32>
    %cst_79 = arith.constant 0.000000e+00 : f32
    %325 = vector.broadcast %cst_79 : f32 to vector<1x8xf32>
    %326 = arith.maximumf %324, %325 : vector<1x8xf32>
    %cst_80 = arith.constant 1.000000e+00 : f32
    %327 = vector.broadcast %cst_80 : f32 to vector<1x8xf32>
    %328 = arith.addf %326, %327 : vector<1x8xf32>
    %329 = math.log %328 : vector<1x8xf32>
    %cst_81 = arith.constant 2.000000e+00 : f32
    %330 = math.log %cst_81 : f32
    %331 = vector.broadcast %330 : f32 to vector<1x8xf32>
    %332 = arith.divf %329, %331 : vector<1x8xf32>
    %cst_82 = arith.constant 0.000000e+00 : f32
    %333 = vector.broadcast %cst_82 : f32 to vector<1x8xf32>
    %334 = arith.addf %333, %216 : vector<1x8xf32>
    %335 = arith.addf %334, %239 : vector<1x8xf32>
    %336 = arith.addf %335, %266 : vector<1x8xf32>
    %337 = arith.addf %336, %297 : vector<1x8xf32>
    %338 = arith.addf %337, %332 : vector<1x8xf32>
    %cst_83 = arith.constant 2.000000e-01 : f32
    %339 = vector.broadcast %cst_83 : f32 to vector<1x8xf32>
    %340 = arith.mulf %338, %339 : vector<1x8xf32>
    %341 = arith.subf %216, %340 : vector<1x8xf32>
    %cst_84 = arith.constant 0.898370623 : f32
    %342 = vector.broadcast %cst_84 : f32 to vector<1x8xf32>
    %343 = arith.mulf %341, %342 : vector<1x8xf32>
    %cst_85 = arith.constant 0.000000e+00 : f32
    %344 = vector.broadcast %cst_85 : f32 to vector<1x8xf32>
    %345 = arith.addf %344, %343 : vector<1x8xf32>
    %346 = arith.subf %239, %340 : vector<1x8xf32>
    %cst_86 = arith.constant 0.313408107 : f32
    %347 = vector.broadcast %cst_86 : f32 to vector<1x8xf32>
    %348 = arith.mulf %346, %347 : vector<1x8xf32>
    %349 = arith.addf %345, %348 : vector<1x8xf32>
    %350 = arith.subf %266, %340 : vector<1x8xf32>
    %cst_87 = arith.constant -0.101629384 : f32
    %351 = vector.broadcast %cst_87 : f32 to vector<1x8xf32>
    %352 = arith.mulf %350, %351 : vector<1x8xf32>
    %353 = arith.addf %349, %352 : vector<1x8xf32>
    %354 = arith.subf %297, %340 : vector<1x8xf32>
    %cst_88 = arith.constant -0.42355749 : f32
    %355 = vector.broadcast %cst_88 : f32 to vector<1x8xf32>
    %356 = arith.mulf %354, %355 : vector<1x8xf32>
    %357 = arith.addf %353, %356 : vector<1x8xf32>
    %358 = arith.subf %332, %340 : vector<1x8xf32>
    %cst_89 = arith.constant -0.686591864 : f32
    %359 = vector.broadcast %cst_89 : f32 to vector<1x8xf32>
    %360 = arith.mulf %358, %359 : vector<1x8xf32>
    %361 = arith.addf %357, %360 : vector<1x8xf32>
    %cst_90 = arith.constant 1.56643224 : f32
    %362 = vector.broadcast %cst_90 : f32 to vector<1x8xf32>
    %363 = arith.divf %361, %362 : vector<1x8xf32>
    %364 = arith.mulf %197, %363 : vector<1x8xf32>
    %365 = tpu.concatenate %192, %364 in 0 : vector<1x8xf32>, vector<1x8xf32> -> vector<2x8xf32>
    %c0_91 = arith.constant 0 : index
    %c0_92 = arith.constant 0 : index
    %366 = vector.load %arg5[%c0_91, %c0_92] : memref<8x5xf32, #tpu.memory_space<vmem>>, vector<8x5xf32>
    %cst_93 = arith.constant dense<0.000000e+00> : vector<2x5xf32>
    %367 = tpu.matmul %365, %366, %cst_93 {dimension_numbers = #tpu.dot_dimension_numbers<[1], [0], [0], [1], [0, 0, 1, 1], [], []>, precision = #tpu.contract_precision<fp32>} : vector<2x8xf32>, vector<8x5xf32>, vector<2x5xf32> -> vector<2x5xf32>
    %c0_94 = arith.constant 0 : index
    %c0_95 = arith.constant 0 : index
    %368 = vector.load %arg6[%c0_94, %c0_95] : memref<1x5xf32, #tpu.memory_space<vmem>>, vector<1x5xf32>
    %369 = vector.broadcast %368 : vector<1x5xf32> to vector<2x5xf32>
    %370 = arith.addf %367, %369 : vector<2x5xf32>
    %c0_96 = arith.constant 0 : index
    %c0_97 = arith.constant 0 : index
    %371 = vector.load %arg8[%c0_96, %c0_97] : memref<2x5xf32, #tpu.memory_space<vmem>>, vector<2x5xf32>
    tpu.vector_store %arg8[%c0_96, %c0_97], %370 {strides = array<i32>} : memref<2x5xf32, #tpu.memory_space<vmem>>, vector<2x5xf32>,
    return
  }
}

</mosaic_0001>

<llo_original>
// kernel: my_model_forward.1
$region0: #{my_model_forward.1}
  #allocation0 [shape = 'u32[]', space=smem, size = 0x4, offset = 0x4, fixed_abs, tag = 'smem constant byte address 0x4 - core index']
  #allocation1 [shape = 'u32[144,128]{1,0:T(1,128)}', space=vmem, size = 0x12000, scoped, tag = 'internal scratch']
  %s0 = inlined_call_operand.vmem [shape: f32[98,27], index: 0, kind: input, shape index: {}]
  %s1 = inlined_call_operand.vmem [shape: f32[27,8], index: 1, kind: input, shape index: {}]
  %s2 = inlined_call_operand.vmem [shape: f32[1,8], index: 2, kind: input, shape index: {}]
  %s3 = inlined_call_operand.vmem [shape: f32[8,8], index: 3, kind: input, shape index: {}]
  %s4 = inlined_call_operand.vmem [shape: f32[1,8], index: 4, kind: input, shape index: {}]
  %s5 = inlined_call_operand.vmem [shape: f32[8,5], index: 5, kind: input, shape index: {}]
  %s6 = inlined_call_operand.vmem [shape: f32[1,5], index: 6, kind: input, shape index: {}]
  %s7 = inlined_call_operand.vmem [shape: f32[49,5], index: 7, kind: input, shape index: {}]
  %s8 = inlined_call_operand.hbm [shape: f32[2,5], index: 8, kind: output, shape index: {}]
  %s9 = sld [smem:[#allocation0]]
  $region42: #{my_model_forward.1} parent=0
    _
  %s11 = ssub.s32 1, %s9
  %s12 = scalar_select 0, %s11, %s9
  $region1: #{my_model_forward.1} parent=0
    #allocation2 [shape = 'u8[1024]{0}', space=vmem, size = 0x400, scoped, tag = 'output window, operand 0, single buffered']
    #allocation3 [shape = 's32[1]{0}', space=sflag, size = 0x4, scoped, tag = 'scoped memory for my_model_forward.1']
    %13 = vsyncpa [#allocation3], 0
    // Predicated region
    $region2: #{my_model_forward.1} parent=1 // pred_check
      _
    $region3: #{my_model_forward.1} parent=1 // pred_check_branch
      %15 = sbr.rel (0) target = $region5
    $region4: #{my_model_forward.1} parent=1 // pred_region
      _
    $region5: #{my_model_forward.1} parent=1 // pred_fallthru
      _
    // Predicated region
    $region6: #{my_model_forward.1} parent=1 // pred_check
      _
    $region7: #{my_model_forward.1} parent=1 // pred_check_branch
      %17 = sbr.rel (0) target = $region9
    $region8: #{my_model_forward.1} parent=1 // pred_region
      _
    $region9: #{my_model_forward.1} parent=1 // pred_fallthru
      _
    // Predicated region
    $region10: #{my_model_forward.1} parent=1 // pred_check
      _
    $region11: #{my_model_forward.1} parent=1 // pred_check_branch
      %19 = sbr.rel (0) target = $region13
    $region12: #{my_model_forward.1} parent=1 // pred_region
      _
    $region13: #{my_model_forward.1} parent=1 // pred_fallthru
      _
    // Predicated region
    $region14: #{my_model_forward.1} parent=1 // pred_check
      _
    $region15: #{my_model_forward.1} parent=1 // pred_check_branch
      %21 = sbr.rel (0) target = $region17
    $region16: #{my_model_forward.1} parent=1 // pred_region
      _
    $region17: #{my_model_forward.1} parent=1 // pred_fallthru
      _
    // Predicated region
    $region18: #{my_model_forward.1} parent=1 // pred_check
      _
    $region19: #{my_model_forward.1} parent=1 // pred_check_branch
      %23 = sbr.rel (0) target = $region21
    $region20: #{my_model_forward.1} parent=1 // pred_region
      _
    $region21: #{my_model_forward.1} parent=1 // pred_fallthru
      _
    // Predicated region
    $region22: #{my_model_forward.1} parent=1 // pred_check
      _
    $region23: #{my_model_forward.1} parent=1 // pred_check_branch
      %25 = sbr.rel (0) target = $region25
    $region24: #{my_model_forward.1} parent=1 // pred_region
      _
    $region25: #{my_model_forward.1} parent=1 // pred_fallthru
      _
    // Predicated region
    $region26: #{my_model_forward.1} parent=1 // pred_check
      _
    $region27: #{my_model_forward.1} parent=1 // pred_check_branch
      %27 = sbr.rel (0) target = $region29
    $region28: #{my_model_forward.1} parent=1 // pred_region
      _
    $region29: #{my_model_forward.1} parent=1 // pred_fallthru
      _
    // Predicated region
    $region30: #{my_model_forward.1} parent=1 // pred_check
      _
    $region31: #{my_model_forward.1} parent=1 // pred_check_branch
      %29 = sbr.rel (0) target = $region33
    $region32: #{my_model_forward.1} parent=1 // pred_region
      _
    $region33: #{my_model_forward.1} parent=1 // pred_fallthru
      _
    %v30 = vld [vmem:[%s0] sm:$0xff]
    %v31 = vld [vmem:[%s0 + $0x8] sm:$0xff]
    %v32 = vld [vmem:[%s0 + $0x10] sm:$0xff]
    %v33 = vld [vmem:[%s0 + $0x18] sm:$0xff]
    %v34 = vld [vmem:[%s0 + $0x20] sm:$0xff]
    %v35 = vld [vmem:[%s0 + $0x28] sm:$0xff]
    %v36 = vld [vmem:[%s0 + $0x30] sm:$0xff]
    %v37 = vld [vmem:[%s0 + $0x38] sm:$0xff]
    %v38 = vld [vmem:[%s0 + $0x40] sm:$0xff]
    %v39 = vld [vmem:[%s0 + $0x48] sm:$0xff]
    %v40 = vld [vmem:[%s0 + $0x50] sm:$0xff]
    %v41 = vld [vmem:[%s0 + $0x58] sm:$0xff]
    %v42 = vld [vmem:[%s0 + $0x60] sm:$0x3]
    %v43 = vld [vmem:[%s1] sm:$0xff]
    %v44 = vld [vmem:[%s1 + $0x8] sm:$0xff]
    %v45 = vld [vmem:[%s1 + $0x10] sm:$0xff]
    %v46 = vld [vmem:[%s1 + $0x18] sm:$0x7]
    %v47 = vld [vmem:[%s2] sm:$0x1]
    %v49 = vlaneseq
    %v50 = vshrl.u32 %v49, 7
    %v51 = vsub.s32 0, %v50
    %v52 = vrot.slane %v47, %v51
    %vm54 = vcmask 220160
    %v56 = vsel %vm54, %v30, 0
    %v59 = vsel %vm54, %v31, 0
    %v62 = vsel %vm54, %v32, 0
    %v65 = vsel %vm54, %v33, 0
    %v68 = vsel %vm54, %v34, 0
    %v71 = vsel %vm54, %v35, 0
    %v74 = vsel %vm54, %v36, 0
    %v77 = vsel %vm54, %v37, 0
    %v80 = vsel %vm54, %v38, 0
    %v83 = vsel %vm54, %v39, 0
    %v86 = vsel %vm54, %v40, 0
    %v89 = vsel %vm54, %v41, 0
    %v92 = vsel %vm54, %v42, 0
    %vm94 = vcmask 1042432
    %v96 = vsel %vm94, %v46, 0
    %98 = vmatprep.subr.mxu0 0.0
    %99 = vmatpush1.msra.mxu0 0.0
    %100 = vmatprep.subr.mxu0 0.0
    %101 = vmatpush1.msra.mxu0 0.0
    %102 = vmatprep.subr.mxu0 0.0
    %103 = vmatpush1.msra.mxu0 0.0
    %104 = vmatprep.subr.mxu0 0.0
    %105 = vmatpush1.msra.mxu0 0.0
    %106 = vmatprep.subr.mxu0 0.0
    %107 = vmatpush1.msra.mxu0 0.0
    %108 = vmatprep.subr.mxu0 0.0
    %109 = vmatpush1.msra.mxu0 0.0
    %110 = vmatprep.subr.mxu0 0.0
    %111 = vmatpush1.msra.mxu0 0.0
    %112 = vmatprep.subr.mxu0 0.0
    %113 = vmatpush1.msra.mxu0 0.0
    %114 = vmatprep.subr.mxu0 0.0
    %115 = vmatpush1.msra.mxu0 0.0
    %116 = vmatprep.subr.mxu0 0.0
    %117 = vmatpush1.msra.mxu0 0.0
    %118 = vmatprep.subr.mxu0 0.0
    %119 = vmatpush1.msra.mxu0 0.0
    %120 = vmatprep.subr.mxu0 0.0
    %121 = vmatpush1.msra.mxu0 0.0
    %122 = vmatprep.subr.mxu0 0.0
    %v123 = vand.u32 %v96, 4294901760
    %124 = vmatpush1.msra.mxu0 %v123
    %125 = vmatprep.subr.mxu0 0.0
    %v126 = vand.u32 %v45, 4294901760
    %127 = vmatpush1.msra.mxu0 %v126
    %128 = vmatprep.subr.mxu0 0.0
    %v129 = vand.u32 %v44, 4294901760
    %130 = vmatpush1.msra.mxu0 %v129
    %131 = vmatprep.subr.mxu0 0.0
    %v132 = vand.u32 %v43, 4294901760
    %133 = vmatpush1.msra.mxu0 %v132
    %134 = vmatprep.subr.mxu0 0.0
    %135 = vmatpush2.msra.mxu0 0.0
    %136 = vmatprep.subr.mxu0 0.0
    %137 = vmatpush2.msra.mxu0 0.0
    %138 = vmatprep.subr.mxu0 0.0
    %139 = vmatpush2.msra.mxu0 0.0
    %140 = vmatprep.subr.mxu0 0.0
    %141 = vmatpush2.msra.mxu0 0.0
    %142 = vmatprep.subr.mxu0 0.0
    %143 = vmatpush2.msra.mxu0 0.0
    %144 = vmatprep.subr.mxu0 0.0
    %145 = vmatpush2.msra.mxu0 0.0
    %146 = vmatprep.subr.mxu0 0.0
    %147 = vmatpush2.msra.mxu0 0.0
    %148 = vmatprep.subr.mxu0 0.0
    %149 = vmatpush2.msra.mxu0 0.0
    %150 = vmatprep.subr.mxu0 0.0
    %151 = vmatpush2.msra.mxu0 0.0
    %152 = vmatprep.subr.mxu0 0.0
    %153 = vmatpush2.msra.mxu0 0.0
    %154 = vmatprep.subr.mxu0 0.0
    %155 = vmatpush2.msra.mxu0 0.0
    %156 = vmatprep.subr.mxu0 0.0
    %157 = vmatpush2.msra.mxu0 0.0
    %158 = vmatprep.subr.mxu0 0.0
    %159 = vmatpush2.msra.mxu0 0.0
    %160 = vmatprep.subr.mxu0 0.0
    %161 = vmatpush2.msra.mxu0 0.0
    %162 = vmatprep.subr.mxu0 0.0
    %163 = vmatpush2.msra.mxu0 0.0
    %164 = vmatprep.subr.mxu0 0.0
    %165 = vmatpush2.msra.mxu0 0.0
    %166 = vmatprep.mubr.f32.mxu0 0.0
    %v167 = vand.u32 %v56, 4294901760
    %v168 = vsub.f32 %v56, %v167
    %v169 = vand.u32 %v168, 4294901760
    %v170 = vsub.f32 %v168, %v169
    %v171 = vand.u32 %v170, 4294901760
    %172 = vmatmul.mubr.f32.gmra.mxu0 %v171
    %v173 = vpop.f32.mrf.mxu0
    %v174 = vadd.f32 %v52, %v173
    %v175 = vpop.f32.mrf.mxu0
    %176 = vmatprep.mubr.f32.mxu0 0.0
    %v177 = vand.u32 %v59, 4294901760
    %v178 = vsub.f32 %v59, %v177
    %v179 = vand.u32 %v178, 4294901760
    %v180 = vsub.f32 %v178, %v179
    %v181 = vand.u32 %v180, 4294901760
    %182 = vmatmul.mubr.f32.gmra.mxu0 %v181
    %v183 = vpop.f32.mrf.mxu0
    %v184 = vadd.f32 %v52, %v183
    %v185 = vpop.f32.mrf.mxu0
    %186 = vmatprep.mubr.f32.mxu0 0.0
    %v187 = vand.u32 %v62, 4294901760
    %v188 = vsub.f32 %v62, %v187
    %v189 = vand.u32 %v188, 4294901760
    %v190 = vsub.f32 %v188, %v189
    %v191 = vand.u32 %v190, 4294901760
    %192 = vmatmul.mubr.f32.gmra.mxu0 %v191
    %v193 = vpop.f32.mrf.mxu0
    %v194 = vadd.f32 %v52, %v193
    %v195 = vpop.f32.mrf.mxu0
    %196 = vmatprep.mubr.f32.mxu0 0.0
    %v197 = vand.u32 %v65, 4294901760
    %v198 = vsub.f32 %v65, %v197
    %v199 = vand.u32 %v198, 4294901760
    %v200 = vsub.f32 %v198, %v199
    %v201 = vand.u32 %v200, 4294901760
    %202 = vmatmul.mubr.f32.gmra.mxu0 %v201
    %v203 = vpop.f32.mrf.mxu0
    %v204 = vadd.f32 %v52, %v203
    %v205 = vpop.f32.mrf.mxu0
    %206 = vmatprep.mubr.f32.mxu0 0.0
    %v207 = vand.u32 %v68, 4294901760
    %v208 = vsub.f32 %v68, %v207
    %v209 = vand.u32 %v208, 4294901760
    %v210 = vsub.f32 %v208, %v209
    %v211 = vand.u32 %v210, 4294901760
    %212 = vmatmul.mubr.f32.gmra.mxu0 %v211
    %v213 = vpop.f32.mrf.mxu0
    %v214 = vadd.f32 %v52, %v213
    %v215 = vpop.f32.mrf.mxu0
    %216 = vmatprep.mubr.f32.mxu0 0.0
    %v217 = vand.u32 %v71, 4294901760
    %v218 = vsub.f32 %v71, %v217
    %v219 = vand.u32 %v218, 4294901760
    %v220 = vsub.f32 %v218, %v219
    %v221 = vand.u32 %v220, 4294901760
    %222 = vmatmul.mubr.f32.gmra.mxu0 %v221
    %v223 = vpop.f32.mrf.mxu0
    %v224 = vadd.f32 %v52, %v223
    %v225 = vpop.f32.mrf.mxu0
    %226 = vmatprep.mubr.f32.mxu0 0.0
    %v227 = vand.u32 %v74, 4294901760
    %v228 = vsub.f32 %v74, %v227
    %v229 = vand.u32 %v228, 4294901760
    %v230 = vsub.f32 %v228, %v229
    %v231 = vand.u32 %v230, 4294901760
    %232 = vmatmul.mubr.f32.gmra.mxu0 %v231
    %v233 = vpop.f32.mrf.mxu0
    %v234 = vadd.f32 %v52, %v233
    %v235 = vpop.f32.mrf.mxu0
    %236 = vmatprep.mubr.f32.mxu0 0.0
    %v237 = vand.u32 %v77, 4294901760
    %v238 = vsub.f32 %v77, %v237
    %v239 = vand.u32 %v238, 4294901760
    %v240 = vsub.f32 %v238, %v239
    %v241 = vand.u32 %v240, 4294901760
    %242 = vmatmul.mubr.f32.gmra.mxu0 %v241
    %v243 = vpop.f32.mrf.mxu0
    %v244 = vadd.f32 %v52, %v243
    %v245 = vpop.f32.mrf.mxu0
    %246 = vmatprep.mubr.f32.mxu0 0.0
    %v247 = vand.u32 %v80, 4294901760
    %v248 = vsub.f32 %v80, %v247
    %v249 = vand.u32 %v248, 4294901760
    %v250 = vsub.f32 %v248, %v249
    %v251 = vand.u32 %v250, 4294901760
    %252 = vmatmul.mubr.f32.gmra.mxu0 %v251
    %v253 = vpop.f32.mrf.mxu0
    %v254 = vadd.f32 %v52, %v253
    %v255 = vpop.f32.mrf.mxu0
    %256 = vmatprep.mubr.f32.mxu0 0.0
    %v257 = vand.u32 %v83, 4294901760
    %v258 = vsub.f32 %v83, %v257
    %v259 = vand.u32 %v258, 4294901760
    %v260 = vsub.f32 %v258, %v259
    %v261 = vand.u32 %v260, 4294901760
    %262 = vmatmul.mubr.f32.gmra.mxu0 %v261
    %v263 = vpop.f32.mrf.mxu0
    %v264 = vadd.f32 %v52, %v263
    %v265 = vpop.f32.mrf.mxu0
    %266 = vmatprep.mubr.f32.mxu0 0.0
    %v267 = vand.u32 %v86, 4294901760
    %v268 = vsub.f32 %v86, %v267
    %v269 = vand.u32 %v268, 4294901760
    %v270 = vsub.f32 %v268, %v269
    %v271 = vand.u32 %v270, 4294901760
    %272 = vmatmul.mubr.f32.gmra.mxu0 %v271
    %v273 = vpop.f32.mrf.mxu0
    %v274 = vadd.f32 %v52, %v273
    %v275 = vpop.f32.mrf.mxu0
    %276 = vmatprep.mubr.f32.mxu0 0.0
    %v277 = vand.u32 %v89, 4294901760
    %v278 = vsub.f32 %v89, %v277
    %v279 = vand.u32 %v278, 4294901760
    %v280 = vsub.f32 %v278, %v279
    %v281 = vand.u32 %v280, 4294901760
    %282 = vmatmul.mubr.f32.gmra.mxu0 %v281
    %v283 = vpop.f32.mrf.mxu0
    %v284 = vadd.f32 %v52, %v283
    %v285 = vpop.f32.mrf.mxu0
    %286 = vmatprep.mubr.f32.mxu0 0.0
    %v287 = vand.u32 %v92, 4294901760
    %v288 = vsub.f32 %v92, %v287
    %v289 = vand.u32 %v288, 4294901760
    %v290 = vsub.f32 %v288, %v289
    %v291 = vand.u32 %v290, 4294901760
    %292 = vmatmul.mubr.f32.gmra.mxu0 %v291
    %v293 = vpop.f32.mrf.mxu0
    %v294 = vadd.f32 %v52, %v293
    %v295 = vpop.f32.mrf.mxu0
    %296 = vdwg.mxu0
    %297 = vmatprep.subr.mxu0 0.0
    %298 = vmatpush1.msra.mxu0 0.0
    %299 = vmatprep.subr.mxu0 0.0
    %300 = vmatpush1.msra.mxu0 0.0
    %301 = vmatprep.subr.mxu0 0.0
    %302 = vmatpush1.msra.mxu0 0.0
    %303 = vmatprep.subr.mxu0 0.0
    %304 = vmatpush1.msra.mxu0 0.0
    %305 = vmatprep.subr.mxu0 0.0
    %306 = vmatpush1.msra.mxu0 0.0
    %307 = vmatprep.subr.mxu0 0.0
    %308 = vmatpush1.msra.mxu0 0.0
    %309 = vmatprep.subr.mxu0 0.0
    %310 = vmatpush1.msra.mxu0 0.0
    %311 = vmatprep.subr.mxu0 0.0
    %312 = vmatpush1.msra.mxu0 0.0
    %313 = vmatprep.subr.mxu0 0.0
    %314 = vmatpush1.msra.mxu0 0.0
    %315 = vmatprep.subr.mxu0 0.0
    %316 = vmatpush1.msra.mxu0 0.0
    %317 = vmatprep.subr.mxu0 0.0
    %318 = vmatpush1.msra.mxu0 0.0
    %319 = vmatprep.subr.mxu0 0.0
    %320 = vmatpush1.msra.mxu0 0.0
    %321 = vmatprep.subr.mxu0 0.0
    %v322 = vand.u32 %v96, 4294901760
    %v323 = vsub.f32 %v96, %v322
    %v324 = vand.u32 %v323, 4294901760
    %v325 = vsub.f32 %v323, %v324
    %v326 = vand.u32 %v325, 4294901760
    %327 = vmatpush1.msra.mxu0 %v326
    %328 = vmatprep.subr.mxu0 0.0
    %v329 = vand.u32 %v45, 4294901760
    %v330 = vsub.f32 %v45, %v329
    %v331 = vand.u32 %v330, 4294901760
    %v332 = vsub.f32 %v330, %v331
    %v333 = vand.u32 %v332, 4294901760
    %334 = vmatpush1.msra.mxu0 %v333
    %335 = vmatprep.subr.mxu0 0.0
    %v336 = vand.u32 %v44, 4294901760
    %v337 = vsub.f32 %v44, %v336
    %v338 = vand.u32 %v337, 4294901760
    %v339 = vsub.f32 %v337, %v338
    %v340 = vand.u32 %v339, 4294901760
    %341 = vmatpush1.msra.mxu0 %v340
    %342 = vmatprep.subr.mxu0 0.0
    %v343 = vand.u32 %v43, 4294901760
    %v344 = vsub.f32 %v43, %v343
    %v345 = vand.u32 %v344, 4294901760
    %v346 = vsub.f32 %v344, %v345
    %v347 = vand.u32 %v346, 4294901760
    %348 = vmatpush1.msra.mxu0 %v347
    %349 = vmatprep.subr.mxu0 0.0
    %350 = vmatpush2.msra.mxu0 0.0
    %351 = vmatprep.subr.mxu0 0.0
    %352 = vmatpush2.msra.mxu0 0.0
    %353 = vmatprep.subr.mxu0 0.0
    %354 = vmatpush2.msra.mxu0 0.0
    %355 = vmatprep.subr.mxu0 0.0
    %356 = vmatpush2.msra.mxu0 0.0
    %357 = vmatprep.subr.mxu0 0.0
    %358 = vmatpush2.msra.mxu0 0.0
    %359 = vmatprep.subr.mxu0 0.0
    %360 = vmatpush2.msra.mxu0 0.0
    %361 = vmatprep.subr.mxu0 0.0
    %362 = vmatpush2.msra.mxu0 0.0
    %363 = vmatprep.subr.mxu0 0.0
    %364 = vmatpush2.msra.mxu0 0.0
    %365 = vmatprep.subr.mxu0 0.0
    %366 = vmatpush2.msra.mxu0 0.0
    %367 = vmatprep.subr.mxu0 0.0
    %368 = vmatpush2.msra.mxu0 0.0
    %369 = vmatprep.subr.mxu0 0.0
    %370 = vmatpush2.msra.mxu0 0.0
    %371 = vmatprep.subr.mxu0 0.0
    %372 = vmatpush2.msra.mxu0 0.0
    %373 = vmatprep.subr.mxu0 0.0
    %374 = vmatpush2.msra.mxu0 0.0
    %375 = vmatprep.subr.mxu0 0.0
    %376 = vmatpush2.msra.mxu0 0.0
    %377 = vmatprep.subr.mxu0 0.0
    %378 = vmatpush2.msra.mxu0 0.0
    %379 = vmatprep.subr.mxu0 0.0
    %380 = vmatpush2.msra.mxu0 0.0
    %381 = vmatprep.mubr.f32.mxu0 0.0
    %v382 = vand.u32 %v56, 4294901760
    %383 = vmatmul.mubr.f32.gmra.mxu0 %v382
    %v384 = vpop.f32.mrf.mxu0
    %v385 = vadd.f32 %v174, %v384
    %v386 = vpop.f32.mrf.mxu0
    %387 = vmatprep.mubr.f32.mxu0 0.0
    %v388 = vand.u32 %v59, 4294901760
    %389 = vmatmul.mubr.f32.gmra.mxu0 %v388
    %v390 = vpop.f32.mrf.mxu0
    %v391 = vadd.f32 %v184, %v390
    %v392 = vpop.f32.mrf.mxu0
    %393 = vmatprep.mubr.f32.mxu0 0.0
    %v394 = vand.u32 %v62, 4294901760
    %395 = vmatmul.mubr.f32.gmra.mxu0 %v394
    %v396 = vpop.f32.mrf.mxu0
    %v397 = vadd.f32 %v194, %v396
    %v398 = vpop.f32.mrf.mxu0
    %399 = vmatprep.mubr.f32.mxu0 0.0
    %v400 = vand.u32 %v65, 4294901760
    %401 = vmatmul.mubr.f32.gmra.mxu0 %v400
    %v402 = vpop.f32.mrf.mxu0
    %v403 = vadd.f32 %v204, %v402
    %v404 = vpop.f32.mrf.mxu0
    %405 = vmatprep.mubr.f32.mxu0 0.0
    %v406 = vand.u32 %v68, 4294901760
    %407 = vmatmul.mubr.f32.gmra.mxu0 %v406
    %v408 = vpop.f32.mrf.mxu0
    %v409 = vadd.f32 %v214, %v408
    %v410 = vpop.f32.mrf.mxu0
    %411 = vmatprep.mubr.f32.mxu0 0.0
    %v412 = vand.u32 %v71, 4294901760
    %413 = vmatmul.mubr.f32.gmra.mxu0 %v412
    %v414 = vpop.f32.mrf.mxu0
    %v415 = vadd.f32 %v224, %v414
    %v416 = vpop.f32.mrf.mxu0
    %417 = vmatprep.mubr.f32.mxu0 0.0
    %v418 = vand.u32 %v74, 4294901760
    %419 = vmatmul.mubr.f32.gmra.mxu0 %v418
    %v420 = vpop.f32.mrf.mxu0
    %v421 = vadd.f32 %v234, %v420
    %v422 = vpop.f32.mrf.mxu0
    %423 = vmatprep.mubr.f32.mxu0 0.0
    %v424 = vand.u32 %v77, 4294901760
    %425 = vmatmul.mubr.f32.gmra.mxu0 %v424
    %v426 = vpop.f32.mrf.mxu0
    %v427 = vadd.f32 %v244, %v426
    %v428 = vpop.f32.mrf.mxu0
    %429 = vmatprep.mubr.f32.mxu0 0.0
    %v430 = vand.u32 %v80, 4294901760
    %431 = vmatmul.mubr.f32.gmra.mxu0 %v430
    %v432 = vpop.f32.mrf.mxu0
    %v433 = vadd.f32 %v254, %v432
    %v434 = vpop.f32.mrf.mxu0
    %435 = vmatprep.mubr.f32.mxu0 0.0
    %v436 = vand.u32 %v83, 4294901760
    %437 = vmatmul.mubr.f32.gmra.mxu0 %v436
    %v438 = vpop.f32.mrf.mxu0
    %v439 = vadd.f32 %v264, %v438
    %v440 = vpop.f32.mrf.mxu0
    %441 = vmatprep.mubr.f32.mxu0 0.0
    %v442 = vand.u32 %v86, 4294901760
    %443 = vmatmul.mubr.f32.gmra.mxu0 %v442
    %v444 = vpop.f32.mrf.mxu0
    %v445 = vadd.f32 %v274, %v444
    %v446 = vpop.f32.mrf.mxu0
    %447 = vmatprep.mubr.f32.mxu0 0.0
    %v448 = vand.u32 %v89, 4294901760
    %449 = vmatmul.mubr.f32.gmra.mxu0 %v448
    %v450 = vpop.f32.mrf.mxu0
    %v451 = vadd.f32 %v284, %v450
    %v452 = vpop.f32.mrf.mxu0
    %453 = vmatprep.mubr.f32.mxu0 0.0
    %v454 = vand.u32 %v92, 4294901760
    %455 = vmatmul.mubr.f32.gmra.mxu0 %v454
    %v456 = vpop.f32.mrf.mxu0
    %v457 = vadd.f32 %v294, %v456
    %v458 = vpop.f32.mrf.mxu0
    %459 = vdwg.mxu0
    %460 = vmatprep.subr.mxu0 0.0
    %461 = vmatpush1.msra.mxu0 0.0
    %462 = vmatprep.subr.mxu0 0.0
    %463 = vmatpush1.msra.mxu0 0.0
    %464 = vmatprep.subr.mxu0 0.0
    %465 = vmatpush1.msra.mxu0 0.0
    %466 = vmatprep.subr.mxu0 0.0
    %467 = vmatpush1.msra.mxu0 0.0
    %468 = vmatprep.subr.mxu0 0.0
    %469 = vmatpush1.msra.mxu0 0.0
    %470 = vmatprep.subr.mxu0 0.0
    %471 = vmatpush1.msra.mxu0 0.0
    %472 = vmatprep.subr.mxu0 0.0
    %473 = vmatpush1.msra.mxu0 0.0
    %474 = vmatprep.subr.mxu0 0.0
    %475 = vmatpush1.msra.mxu0 0.0
    %476 = vmatprep.subr.mxu0 0.0
    %477 = vmatpush1.msra.mxu0 0.0
    %478 = vmatprep.subr.mxu0 0.0
    %479 = vmatpush1.msra.mxu0 0.0
    %480 = vmatprep.subr.mxu0 0.0
    %481 = vmatpush1.msra.mxu0 0.0
    %482 = vmatprep.subr.mxu0 0.0
    %483 = vmatpush1.msra.mxu0 0.0
    %484 = vmatprep.subr.mxu0 0.0
    %v485 = vand.u32 %v96, 4294901760
    %v486 = vsub.f32 %v96, %v485
    %487 = vmatpush1.msra.mxu0 %v486
    %488 = vmatprep.subr.mxu0 0.0
    %v489 = vand.u32 %v45, 4294901760
    %v490 = vsub.f32 %v45, %v489
    %491 = vmatpush1.msra.mxu0 %v490
    %492 = vmatprep.subr.mxu0 0.0
    %v493 = vand.u32 %v44, 4294901760
    %v494 = vsub.f32 %v44, %v493
    %495 = vmatpush1.msra.mxu0 %v494
    %496 = vmatprep.subr.mxu0 0.0
    %v497 = vand.u32 %v43, 4294901760
    %v498 = vsub.f32 %v43, %v497
    %499 = vmatpush1.msra.mxu0 %v498
    %500 = vmatprep.subr.mxu0 0.0
    %501 = vmatpush2.msra.mxu0 0.0
    %502 = vmatprep.subr.mxu0 0.0
    %503 = vmatpush2.msra.mxu0 0.0
    %504 = vmatprep.subr.mxu0 0.0
    %505 = vmatpush2.msra.mxu0 0.0
    %506 = vmatprep.subr.mxu0 0.0
    %507 = vmatpush2.msra.mxu0 0.0
    %508 = vmatprep.subr.mxu0 0.0
    %509 = vmatpush2.msra.mxu0 0.0
    %510 = vmatprep.subr.mxu0 0.0
    %511 = vmatpush2.msra.mxu0 0.0
    %512 = vmatprep.subr.mxu0 0.0
    %513 = vmatpush2.msra.mxu0 0.0
    %514 = vmatprep.subr.mxu0 0.0
    %515 = vmatpush2.msra.mxu0 0.0
    %516 = vmatprep.subr.mxu0 0.0
    %517 = vmatpush2.msra.mxu0 0.0
    %518 = vmatprep.subr.mxu0 0.0
    %519 = vmatpush2.msra.mxu0 0.0
    %520 = vmatprep.subr.mxu0 0.0
    %521 = vmatpush2.msra.mxu0 0.0
    %522 = vmatprep.subr.mxu0 0.0
    %523 = vmatpush2.msra.mxu0 0.0
    %524 = vmatprep.subr.mxu0 0.0
    %525 = vmatpush2.msra.mxu0 0.0
    %526 = vmatprep.subr.mxu0 0.0
    %527 = vmatpush2.msra.mxu0 0.0
    %528 = vmatprep.subr.mxu0 0.0
    %529 = vmatpush2.msra.mxu0 0.0
    %530 = vmatprep.subr.mxu0 0.0
    %531 = vmatpush2.msra.mxu0 0.0
    %532 = vmatprep.mubr.f32.mxu0 0.0
    %v533 = vand.u32 %v56, 4294901760
    %v534 = vsub.f32 %v56, %v533
    %535 = vmatmul.mubr.f32.gmra.mxu0 %v534
    %v536 = vpop.f32.mrf.mxu0
    %v537 = vadd.f32 %v385, %v536
    %v538 = vpop.f32.mrf.mxu0
    %539 = vmatprep.mubr.f32.mxu0 0.0
    %v540 = vand.u32 %v59, 4294901760
    %v541 = vsub.f32 %v59, %v540
    %542 = vmatmul.mubr.f32.gmra.mxu0 %v541
    %v543 = vpop.f32.mrf.mxu0
    %v544 = vadd.f32 %v391, %v543
    %v545 = vpop.f32.mrf.mxu0
    %546 = vmatprep.mubr.f32.mxu0 0.0
    %v547 = vand.u32 %v62, 4294901760
    %v548 = vsub.f32 %v62, %v547
    %549 = vmatmul.mubr.f32.gmra.mxu0 %v548
    %v550 = vpop.f32.mrf.mxu0
    %v551 = vadd.f32 %v397, %v550
    %v552 = vpop.f32.mrf.mxu0
    %553 = vmatprep.mubr.f32.mxu0 0.0
    %v554 = vand.u32 %v65, 4294901760
    %v555 = vsub.f32 %v65, %v554
    %556 = vmatmul.mubr.f32.gmra.mxu0 %v555
    %v557 = vpop.f32.mrf.mxu0
    %v558 = vadd.f32 %v403, %v557
    %v559 = vpop.f32.mrf.mxu0
    %560 = vmatprep.mubr.f32.mxu0 0.0
    %v561 = vand.u32 %v68, 4294901760
    %v562 = vsub.f32 %v68, %v561
    %563 = vmatmul.mubr.f32.gmra.mxu0 %v562
    %v564 = vpop.f32.mrf.mxu0
    %v565 = vadd.f32 %v409, %v564
    %v566 = vpop.f32.mrf.mxu0
    %567 = vmatprep.mubr.f32.mxu0 0.0
    %v568 = vand.u32 %v71, 4294901760
    %v569 = vsub.f32 %v71, %v568
    %570 = vmatmul.mubr.f32.gmra.mxu0 %v569
    %v571 = vpop.f32.mrf.mxu0
    %v572 = vadd.f32 %v415, %v571
    %v573 = vpop.f32.mrf.mxu0
    %574 = vmatprep.mubr.f32.mxu0 0.0
    %v575 = vand.u32 %v74, 4294901760
    %v576 = vsub.f32 %v74, %v575
    %577 = vmatmul.mubr.f32.gmra.mxu0 %v576
    %v578 = vpop.f32.mrf.mxu0
    %v579 = vadd.f32 %v421, %v578
    %v580 = vpop.f32.mrf.mxu0
    %581 = vmatprep.mubr.f32.mxu0 0.0
    %v582 = vand.u32 %v77, 4294901760
    %v583 = vsub.f32 %v77, %v582
    %584 = vmatmul.mubr.f32.gmra.mxu0 %v583
    %v585 = vpop.f32.mrf.mxu0
    %v586 = vadd.f32 %v427, %v585
    %v587 = vpop.f32.mrf.mxu0
    %588 = vmatprep.mubr.f32.mxu0 0.0
    %v589 = vand.u32 %v80, 4294901760
    %v590 = vsub.f32 %v80, %v589
    %591 = vmatmul.mubr.f32.gmra.mxu0 %v590
    %v592 = vpop.f32.mrf.mxu0
    %v593 = vadd.f32 %v433, %v592
    %v594 = vpop.f32.mrf.mxu0
    %595 = vmatprep.mubr.f32.mxu0 0.0
    %v596 = vand.u32 %v83, 4294901760
    %v597 = vsub.f32 %v83, %v596
    %598 = vmatmul.mubr.f32.gmra.mxu0 %v597
    %v599 = vpop.f32.mrf.mxu0
    %v600 = vadd.f32 %v439, %v599
    %v601 = vpop.f32.mrf.mxu0
    %602 = vmatprep.mubr.f32.mxu0 0.0
    %v603 = vand.u32 %v86, 4294901760
    %v604 = vsub.f32 %v86, %v603
    %605 = vmatmul.mubr.f32.gmra.mxu0 %v604
    %v606 = vpop.f32.mrf.mxu0
    %v607 = vadd.f32 %v445, %v606
    %v608 = vpop.f32.mrf.mxu0
    %609 = vmatprep.mubr.f32.mxu0 0.0
    %v610 = vand.u32 %v89, 4294901760
    %v611 = vsub.f32 %v89, %v610
    %612 = vmatmul.mubr.f32.gmra.mxu0 %v611
    %v613 = vpop.f32.mrf.mxu0
    %v614 = vadd.f32 %v451, %v613
    %v615 = vpop.f32.mrf.mxu0
    %616 = vmatprep.mubr.f32.mxu0 0.0
    %v617 = vand.u32 %v92, 4294901760
    %v618 = vsub.f32 %v92, %v617
    %619 = vmatmul.mubr.f32.gmra.mxu0 %v618
    %v620 = vpop.f32.mrf.mxu0
    %v621 = vadd.f32 %v457, %v620
    %v622 = vpop.f32.mrf.mxu0
    %623 = vdwg.mxu0
    %624 = vmatprep.subr.mxu0 0.0
    %625 = vmatpush1.msra.mxu0 0.0
    %626 = vmatprep.subr.mxu0 0.0
    %627 = vmatpush1.msra.mxu0 0.0
    %628 = vmatprep.subr.mxu0 0.0
    %629 = vmatpush1.msra.mxu0 0.0
    %630 = vmatprep.subr.mxu0 0.0
    %631 = vmatpush1.msra.mxu0 0.0
    %632 = vmatprep.subr.mxu0 0.0
    %633 = vmatpush1.msra.mxu0 0.0
    %634 = vmatprep.subr.mxu0 0.0
    %635 = vmatpush1.msra.mxu0 0.0
    %636 = vmatprep.subr.mxu0 0.0
    %637 = vmatpush1.msra.mxu0 0.0
    %638 = vmatprep.subr.mxu0 0.0
    %639 = vmatpush1.msra.mxu0 0.0
    %640 = vmatprep.subr.mxu0 0.0
    %641 = vmatpush1.msra.mxu0 0.0
    %642 = vmatprep.subr.mxu0 0.0
    %643 = vmatpush1.msra.mxu0 0.0
    %644 = vmatprep.subr.mxu0 0.0
    %645 = vmatpush1.msra.mxu0 0.0
    %646 = vmatprep.subr.mxu0 0.0
    %647 = vmatpush1.msra.mxu0 0.0
    %648 = vmatprep.subr.mxu0 0.0
    %v649 = vand.u32 %v96, 4294901760
    %650 = vmatpush1.msra.mxu0 %v649
    %651 = vmatprep.subr.mxu0 0.0
    %v652 = vand.u32 %v45, 4294901760
    %653 = vmatpush1.msra.mxu0 %v652
    %654 = vmatprep.subr.mxu0 0.0
    %v655 = vand.u32 %v44, 4294901760
    %656 = vmatpush1.msra.mxu0 %v655
    %657 = vmatprep.subr.mxu0 0.0
    %v658 = vand.u32 %v43, 4294901760
    %659 = vmatpush1.msra.mxu0 %v658
    %660 = vmatprep.subr.mxu0 0.0
    %661 = vmatpush2.msra.mxu0 0.0
    %662 = vmatprep.subr.mxu0 0.0
    %663 = vmatpush2.msra.mxu0 0.0
    %664 = vmatprep.subr.mxu0 0.0
    %665 = vmatpush2.msra.mxu0 0.0
    %666 = vmatprep.subr.mxu0 0.0
    %667 = vmatpush2.msra.mxu0 0.0
    %668 = vmatprep.subr.mxu0 0.0
    %669 = vmatpush2.msra.mxu0 0.0
    %670 = vmatprep.subr.mxu0 0.0
    %671 = vmatpush2.msra.mxu0 0.0
    %672 = vmatprep.subr.mxu0 0.0
    %673 = vmatpush2.msra.mxu0 0.0
    %674 = vmatprep.subr.mxu0 0.0
    %675 = vmatpush2.msra.mxu0 0.0
    %676 = vmatprep.subr.mxu0 0.0
    %677 = vmatpush2.msra.mxu0 0.0
    %678 = vmatprep.subr.mxu0 0.0
    %679 = vmatpush2.msra.mxu0 0.0
    %680 = vmatprep.subr.mxu0 0.0
    %681 = vmatpush2.msra.mxu0 0.0
    %682 = vmatprep.subr.mxu0 0.0
    %683 = vmatpush2.msra.mxu0 0.0
    %684 = vmatprep.subr.mxu0 0.0
    %685 = vmatpush2.msra.mxu0 0.0
    %686 = vmatprep.subr.mxu0 0.0
    %687 = vmatpush2.msra.mxu0 0.0
    %688 = vmatprep.subr.mxu0 0.0
    %689 = vmatpush2.msra.mxu0 0.0
    %690 = vmatprep.subr.mxu0 0.0
    %691 = vmatpush2.msra.mxu0 0.0
    %692 = vmatprep.mubr.f32.mxu0 0.0
    %v693 = vand.u32 %v56, 4294901760
    %v694 = vsub.f32 %v56, %v693
    %v695 = vand.u32 %v694, 4294901760
    %696 = vmatmul.mubr.f32.gmra.mxu0 %v695
    %v697 = vpop.f32.mrf.mxu0
    %v698 = vadd.f32 %v537, %v697
    %v699 = vpop.f32.mrf.mxu0
    %700 = vmatprep.mubr.f32.mxu0 0.0
    %v701 = vand.u32 %v59, 4294901760
    %v702 = vsub.f32 %v59, %v701
    %v703 = vand.u32 %v702, 4294901760
    %704 = vmatmul.mubr.f32.gmra.mxu0 %v703
    %v705 = vpop.f32.mrf.mxu0
    %v706 = vadd.f32 %v544, %v705
    %v707 = vpop.f32.mrf.mxu0
    %708 = vmatprep.mubr.f32.mxu0 0.0
    %v709 = vand.u32 %v62, 4294901760
    %v710 = vsub.f32 %v62, %v709
    %v711 = vand.u32 %v710, 4294901760
    %712 = vmatmul.mubr.f32.gmra.mxu0 %v711
    %v713 = vpop.f32.mrf.mxu0
    %v714 = vadd.f32 %v551, %v713
    %v715 = vpop.f32.mrf.mxu0
    %716 = vmatprep.mubr.f32.mxu0 0.0
    %v717 = vand.u32 %v65, 4294901760
    %v718 = vsub.f32 %v65, %v717
    %v719 = vand.u32 %v718, 4294901760
    %720 = vmatmul.mubr.f32.gmra.mxu0 %v719
    %v721 = vpop.f32.mrf.mxu0
    %v722 = vadd.f32 %v558, %v721
    %v723 = vpop.f32.mrf.mxu0
    %724 = vmatprep.mubr.f32.mxu0 0.0
    %v725 = vand.u32 %v68, 4294901760
    %v726 = vsub.f32 %v68, %v725
    %v727 = vand.u32 %v726, 4294901760
    %728 = vmatmul.mubr.f32.gmra.mxu0 %v727
    %v729 = vpop.f32.mrf.mxu0
    %v730 = vadd.f32 %v565, %v729
    %v731 = vpop.f32.mrf.mxu0
    %732 = vmatprep.mubr.f32.mxu0 0.0
    %v733 = vand.u32 %v71, 4294901760
    %v734 = vsub.f32 %v71, %v733
    %v735 = vand.u32 %v734, 4294901760
    %736 = vmatmul.mubr.f32.gmra.mxu0 %v735
    %v737 = vpop.f32.mrf.mxu0
    %v738 = vadd.f32 %v572, %v737
    %v739 = vpop.f32.mrf.mxu0
    %740 = vmatprep.mubr.f32.mxu0 0.0
    %v741 = vand.u32 %v74, 4294901760
    %v742 = vsub.f32 %v74, %v741
    %v743 = vand.u32 %v742, 4294901760
    %744 = vmatmul.mubr.f32.gmra.mxu0 %v743
    %v745 = vpop.f32.mrf.mxu0
    %v746 = vadd.f32 %v579, %v745
    %v747 = vpop.f32.mrf.mxu0
    %748 = vmatprep.mubr.f32.mxu0 0.0
    %v749 = vand.u32 %v77, 4294901760
    %v750 = vsub.f32 %v77, %v749
    %v751 = vand.u32 %v750, 4294901760
    %752 = vmatmul.mubr.f32.gmra.mxu0 %v751
    %v753 = vpop.f32.mrf.mxu0
    %v754 = vadd.f32 %v586, %v753
    %v755 = vpop.f32.mrf.mxu0
    %756 = vmatprep.mubr.f32.mxu0 0.0
    %v757 = vand.u32 %v80, 4294901760
    %v758 = vsub.f32 %v80, %v757
    %v759 = vand.u32 %v758, 4294901760
    %760 = vmatmul.mubr.f32.gmra.mxu0 %v759
    %v761 = vpop.f32.mrf.mxu0
    %v762 = vadd.f32 %v593, %v761
    %v763 = vpop.f32.mrf.mxu0
    %764 = vmatprep.mubr.f32.mxu0 0.0
    %v765 = vand.u32 %v83, 4294901760
    %v766 = vsub.f32 %v83, %v765
    %v767 = vand.u32 %v766, 4294901760
    %768 = vmatmul.mubr.f32.gmra.mxu0 %v767
    %v769 = vpop.f32.mrf.mxu0
    %v770 = vadd.f32 %v600, %v769
    %v771 = vpop.f32.mrf.mxu0
    %772 = vmatprep.mubr.f32.mxu0 0.0
    %v773 = vand.u32 %v86, 4294901760
    %v774 = vsub.f32 %v86, %v773
    %v775 = vand.u32 %v774, 4294901760
    %776 = vmatmul.mubr.f32.gmra.mxu0 %v775
    %v777 = vpop.f32.mrf.mxu0
    %v778 = vadd.f32 %v607, %v777
    %v779 = vpop.f32.mrf.mxu0
    %780 = vmatprep.mubr.f32.mxu0 0.0
    %v781 = vand.u32 %v89, 4294901760
    %v782 = vsub.f32 %v89, %v781
    %v783 = vand.u32 %v782, 4294901760
    %784 = vmatmul.mubr.f32.gmra.mxu0 %v783
    %v785 = vpop.f32.mrf.mxu0
    %v786 = vadd.f32 %v614, %v785
    %v787 = vpop.f32.mrf.mxu0
    %788 = vmatprep.mubr.f32.mxu0 0.0
    %v789 = vand.u32 %v92, 4294901760
    %v790 = vsub.f32 %v92, %v789
    %v791 = vand.u32 %v790, 4294901760
    %792 = vmatmul.mubr.f32.gmra.mxu0 %v791
    %v793 = vpop.f32.mrf.mxu0
    %v794 = vadd.f32 %v621, %v793
    %v795 = vpop.f32.mrf.mxu0
    %796 = vdwg.mxu0
    %797 = vmatprep.subr.mxu0 0.0
    %798 = vmatpush1.msra.mxu0 0.0
    %799 = vmatprep.subr.mxu0 0.0
    %800 = vmatpush1.msra.mxu0 0.0
    %801 = vmatprep.subr.mxu0 0.0
    %802 = vmatpush1.msra.mxu0 0.0
    %803 = vmatprep.subr.mxu0 0.0
    %804 = vmatpush1.msra.mxu0 0.0
    %805 = vmatprep.subr.mxu0 0.0
    %806 = vmatpush1.msra.mxu0 0.0
    %807 = vmatprep.subr.mxu0 0.0
    %808 = vmatpush1.msra.mxu0 0.0
    %809 = vmatprep.subr.mxu0 0.0
    %810 = vmatpush1.msra.mxu0 0.0
    %811 = vmatprep.subr.mxu0 0.0
    %812 = vmatpush1.msra.mxu0 0.0
    %813 = vmatprep.subr.mxu0 0.0
    %814 = vmatpush1.msra.mxu0 0.0
    %815 = vmatprep.subr.mxu0 0.0
    %816 = vmatpush1.msra.mxu0 0.0
    %817 = vmatprep.subr.mxu0 0.0
    %818 = vmatpush1.msra.mxu0 0.0
    %819 = vmatprep.subr.mxu0 0.0
    %820 = vmatpush1.msra.mxu0 0.0
    %821 = vmatprep.subr.mxu0 0.0
    %v822 = vand.u32 %v96, 4294901760
    %v823 = vsub.f32 %v96, %v822
    %v824 = vand.u32 %v823, 4294901760
    %825 = vmatpush1.msra.mxu0 %v824
    %826 = vmatprep.subr.mxu0 0.0
    %v827 = vand.u32 %v45, 4294901760
    %v828 = vsub.f32 %v45, %v827
    %v829 = vand.u32 %v828, 4294901760
    %830 = vmatpush1.msra.mxu0 %v829
    %831 = vmatprep.subr.mxu0 0.0
    %v832 = vand.u32 %v44, 4294901760
    %v833 = vsub.f32 %v44, %v832
    %v834 = vand.u32 %v833, 4294901760
    %835 = vmatpush1.msra.mxu0 %v834
    %836 = vmatprep.subr.mxu0 0.0
    %v837 = vand.u32 %v43, 4294901760
    %v838 = vsub.f32 %v43, %v837
    %v839 = vand.u32 %v838, 4294901760
    %840 = vmatpush1.msra.mxu0 %v839
    %841 = vmatprep.subr.mxu0 0.0
    %842 = vmatpush2.msra.mxu0 0.0
    %843 = vmatprep.subr.mxu0 0.0
    %844 = vmatpush2.msra.mxu0 0.0
    %845 = vmatprep.subr.mxu0 0.0
    %846 = vmatpush2.msra.mxu0 0.0
    %847 = vmatprep.subr.mxu0 0.0
    %848 = vmatpush2.msra.mxu0 0.0
    %849 = vmatprep.subr.mxu0 0.0
    %850 = vmatpush2.msra.mxu0 0.0
    %851 = vmatprep.subr.mxu0 0.0
    %852 = vmatpush2.msra.mxu0 0.0
    %853 = vmatprep.subr.mxu0 0.0
    %854 = vmatpush2.msra.mxu0 0.0
    %855 = vmatprep.subr.mxu0 0.0
    %856 = vmatpush2.msra.mxu0 0.0
    %857 = vmatprep.subr.mxu0 0.0
    %858 = vmatpush2.msra.mxu0 0.0
    %859 = vmatprep.subr.mxu0 0.0
    %860 = vmatpush2.msra.mxu0 0.0
    %861 = vmatprep.subr.mxu0 0.0
    %862 = vmatpush2.msra.mxu0 0.0
    %863 = vmatprep.subr.mxu0 0.0
    %864 = vmatpush2.msra.mxu0 0.0
    %865 = vmatprep.subr.mxu0 0.0
    %866 = vmatpush2.msra.mxu0 0.0
    %867 = vmatprep.subr.mxu0 0.0
    %868 = vmatpush2.msra.mxu0 0.0
    %869 = vmatprep.subr.mxu0 0.0
    %870 = vmatpush2.msra.mxu0 0.0
    %871 = vmatprep.subr.mxu0 0.0
    %872 = vmatpush2.msra.mxu0 0.0
    %873 = vmatprep.mubr.f32.mxu0 0.0
    %v874 = vand.u32 %v56, 4294901760
    %875 = vmatmul.mubr.f32.gmra.mxu0 %v874
    %v876 = vpop.f32.mrf.mxu0
    %v877 = vadd.f32 %v698, %v876
    %v878 = vpop.f32.mrf.mxu0
    %879 = vmatprep.mubr.f32.mxu0 0.0
    %v880 = vand.u32 %v59, 4294901760
    %881 = vmatmul.mubr.f32.gmra.mxu0 %v880
    %v882 = vpop.f32.mrf.mxu0
    %v883 = vadd.f32 %v706, %v882
    %v884 = vpop.f32.mrf.mxu0
    %885 = vmatprep.mubr.f32.mxu0 0.0
    %v886 = vand.u32 %v62, 4294901760
    %887 = vmatmul.mubr.f32.gmra.mxu0 %v886
    %v888 = vpop.f32.mrf.mxu0
    %v889 = vadd.f32 %v714, %v888
    %v890 = vpop.f32.mrf.mxu0
    %891 = vmatprep.mubr.f32.mxu0 0.0
    %v892 = vand.u32 %v65, 4294901760
    %893 = vmatmul.mubr.f32.gmra.mxu0 %v892
    %v894 = vpop.f32.mrf.mxu0
    %v895 = vadd.f32 %v722, %v894
    %v896 = vpop.f32.mrf.mxu0
    %897 = vmatprep.mubr.f32.mxu0 0.0
    %v898 = vand.u32 %v68, 4294901760
    %899 = vmatmul.mubr.f32.gmra.mxu0 %v898
    %v900 = vpop.f32.mrf.mxu0
    %v901 = vadd.f32 %v730, %v900
    %v902 = vpop.f32.mrf.mxu0
    %903 = vmatprep.mubr.f32.mxu0 0.0
    %v904 = vand.u32 %v71, 4294901760
    %905 = vmatmul.mubr.f32.gmra.mxu0 %v904
    %v906 = vpop.f32.mrf.mxu0
    %v907 = vadd.f32 %v738, %v906
    %v908 = vpop.f32.mrf.mxu0
    %909 = vmatprep.mubr.f32.mxu0 0.0
    %v910 = vand.u32 %v74, 4294901760
    %911 = vmatmul.mubr.f32.gmra.mxu0 %v910
    %v912 = vpop.f32.mrf.mxu0
    %v913 = vadd.f32 %v746, %v912
    %v914 = vpop.f32.mrf.mxu0
    %915 = vmatprep.mubr.f32.mxu0 0.0
    %v916 = vand.u32 %v77, 4294901760
    %917 = vmatmul.mubr.f32.gmra.mxu0 %v916
    %v918 = vpop.f32.mrf.mxu0
    %v919 = vadd.f32 %v754, %v918
    %v920 = vpop.f32.mrf.mxu0
    %921 = vmatprep.mubr.f32.mxu0 0.0
    %v922 = vand.u32 %v80, 4294901760
    %923 = vmatmul.mubr.f32.gmra.mxu0 %v922
    %v924 = vpop.f32.mrf.mxu0
    %v925 = vadd.f32 %v762, %v924
    %v926 = vpop.f32.mrf.mxu0
    %927 = vmatprep.mubr.f32.mxu0 0.0
    %v928 = vand.u32 %v83, 4294901760
    %929 = vmatmul.mubr.f32.gmra.mxu0 %v928
    %v930 = vpop.f32.mrf.mxu0
    %v931 = vadd.f32 %v770, %v930
    %v932 = vpop.f32.mrf.mxu0
    %933 = vmatprep.mubr.f32.mxu0 0.0
    %v934 = vand.u32 %v86, 4294901760
    %935 = vmatmul.mubr.f32.gmra.mxu0 %v934
    %v936 = vpop.f32.mrf.mxu0
    %v937 = vadd.f32 %v778, %v936
    %v938 = vpop.f32.mrf.mxu0
    %939 = vmatprep.mubr.f32.mxu0 0.0
    %v940 = vand.u32 %v89, 4294901760
    %941 = vmatmul.mubr.f32.gmra.mxu0 %v940
    %v942 = vpop.f32.mrf.mxu0
    %v943 = vadd.f32 %v786, %v942
    %v944 = vpop.f32.mrf.mxu0
    %945 = vmatprep.mubr.f32.mxu0 0.0
    %v946 = vand.u32 %v92, 4294901760
    %947 = vmatmul.mubr.f32.gmra.mxu0 %v946
    %v948 = vpop.f32.mrf.mxu0
    %v949 = vadd.f32 %v794, %v948
    %v950 = vpop.f32.mrf.mxu0
    %951 = vdwg.mxu0
    %952 = vmatprep.subr.mxu0 0.0
    %953 = vmatpush1.msra.mxu0 0.0
    %954 = vmatprep.subr.mxu0 0.0
    %955 = vmatpush1.msra.mxu0 0.0
    %956 = vmatprep.subr.mxu0 0.0
    %957 = vmatpush1.msra.mxu0 0.0
    %958 = vmatprep.subr.mxu0 0.0
    %959 = vmatpush1.msra.mxu0 0.0
    %960 = vmatprep.subr.mxu0 0.0
    %961 = vmatpush1.msra.mxu0 0.0
    %962 = vmatprep.subr.mxu0 0.0
    %963 = vmatpush1.msra.mxu0 0.0
    %964 = vmatprep.subr.mxu0 0.0
    %965 = vmatpush1.msra.mxu0 0.0
    %966 = vmatprep.subr.mxu0 0.0
    %967 = vmatpush1.msra.mxu0 0.0
    %968 = vmatprep.subr.mxu0 0.0
    %969 = vmatpush1.msra.mxu0 0.0
    %970 = vmatprep.subr.mxu0 0.0
    %971 = vmatpush1.msra.mxu0 0.0
    %972 = vmatprep.subr.mxu0 0.0
    %973 = vmatpush1.msra.mxu0 0.0
    %974 = vmatprep.subr.mxu0 0.0
    %975 = vmatpush1.msra.mxu0 0.0
    %976 = vmatprep.subr.mxu0 0.0
    %v977 = vand.u32 %v96, 4294901760
    %978 = vmatpush1.msra.mxu0 %v977
    %979 = vmatprep.subr.mxu0 0.0
    %v980 = vand.u32 %v45, 4294901760
    %981 = vmatpush1.msra.mxu0 %v980
    %982 = vmatprep.subr.mxu0 0.0
    %v983 = vand.u32 %v44, 4294901760
    %984 = vmatpush1.msra.mxu0 %v983
    %985 = vmatprep.subr.mxu0 0.0
    %v986 = vand.u32 %v43, 4294901760
    %987 = vmatpush1.msra.mxu0 %v986
    %988 = vmatprep.subr.mxu0 0.0
    %989 = vmatpush2.msra.mxu0 0.0
    %990 = vmatprep.subr.mxu0 0.0
    %991 = vmatpush2.msra.mxu0 0.0
    %992 = vmatprep.subr.mxu0 0.0
    %993 = vmatpush2.msra.mxu0 0.0
    %994 = vmatprep.subr.mxu0 0.0
    %995 = vmatpush2.msra.mxu0 0.0
    %996 = vmatprep.subr.mxu0 0.0
    %997 = vmatpush2.msra.mxu0 0.0
    %998 = vmatprep.subr.mxu0 0.0
    %999 = vmatpush2.msra.mxu0 0.0
    %1000 = vmatprep.subr.mxu0 0.0
    %1001 = vmatpush2.msra.mxu0 0.0
    %1002 = vmatprep.subr.mxu0 0.0
    %1003 = vmatpush2.msra.mxu0 0.0
    %1004 = vmatprep.subr.mxu0 0.0
    %1005 = vmatpush2.msra.mxu0 0.0
    %1006 = vmatprep.subr.mxu0 0.0
    %1007 = vmatpush2.msra.mxu0 0.0
    %1008 = vmatprep.subr.mxu0 0.0
    %1009 = vmatpush2.msra.mxu0 0.0
    %1010 = vmatprep.subr.mxu0 0.0
    %1011 = vmatpush2.msra.mxu0 0.0
    %1012 = vmatprep.subr.mxu0 0.0
    %1013 = vmatpush2.msra.mxu0 0.0
    %1014 = vmatprep.subr.mxu0 0.0
    %1015 = vmatpush2.msra.mxu0 0.0
    %1016 = vmatprep.subr.mxu0 0.0
    %1017 = vmatpush2.msra.mxu0 0.0
    %1018 = vmatprep.subr.mxu0 0.0
    %1019 = vmatpush2.msra.mxu0 0.0
    %1020 = vmatprep.mubr.f32.mxu0 0.0
    %v1021 = vand.u32 %v56, 4294901760
    %1022 = vmatmul.mubr.f32.gmra.mxu0 %v1021
    %v1023 = vpop.f32.mrf.mxu0
    %v1024 = vadd.f32 %v877, %v1023
    %v1025 = vpop.f32.mrf.mxu0
    %1026 = vmatprep.mubr.f32.mxu0 0.0
    %v1027 = vand.u32 %v59, 4294901760
    %1028 = vmatmul.mubr.f32.gmra.mxu0 %v1027
    %v1029 = vpop.f32.mrf.mxu0
    %v1030 = vadd.f32 %v883, %v1029
    %v1031 = vpop.f32.mrf.mxu0
    %1032 = vmatprep.mubr.f32.mxu0 0.0
    %v1033 = vand.u32 %v62, 4294901760
    %1034 = vmatmul.mubr.f32.gmra.mxu0 %v1033
    %v1035 = vpop.f32.mrf.mxu0
    %v1036 = vadd.f32 %v889, %v1035
    %v1037 = vpop.f32.mrf.mxu0
    %1038 = vmatprep.mubr.f32.mxu0 0.0
    %v1039 = vand.u32 %v65, 4294901760
    %1040 = vmatmul.mubr.f32.gmra.mxu0 %v1039
    %v1041 = vpop.f32.mrf.mxu0
    %v1042 = vadd.f32 %v895, %v1041
    %v1043 = vpop.f32.mrf.mxu0
    %1044 = vmatprep.mubr.f32.mxu0 0.0
    %v1045 = vand.u32 %v68, 4294901760
    %1046 = vmatmul.mubr.f32.gmra.mxu0 %v1045
    %v1047 = vpop.f32.mrf.mxu0
    %v1048 = vadd.f32 %v901, %v1047
    %v1049 = vpop.f32.mrf.mxu0
    %1050 = vmatprep.mubr.f32.mxu0 0.0
    %v1051 = vand.u32 %v71, 4294901760
    %1052 = vmatmul.mubr.f32.gmra.mxu0 %v1051
    %v1053 = vpop.f32.mrf.mxu0
    %v1054 = vadd.f32 %v907, %v1053
    %v1055 = vpop.f32.mrf.mxu0
    %1056 = vmatprep.mubr.f32.mxu0 0.0
    %v1057 = vand.u32 %v74, 4294901760
    %1058 = vmatmul.mubr.f32.gmra.mxu0 %v1057
    %v1059 = vpop.f32.mrf.mxu0
    %v1060 = vadd.f32 %v913, %v1059
    %v1061 = vpop.f32.mrf.mxu0
    %1062 = vmatprep.mubr.f32.mxu0 0.0
    %v1063 = vand.u32 %v77, 4294901760
    %1064 = vmatmul.mubr.f32.gmra.mxu0 %v1063
    %v1065 = vpop.f32.mrf.mxu0
    %v1066 = vadd.f32 %v919, %v1065
    %v1067 = vpop.f32.mrf.mxu0
    %1068 = vmatprep.mubr.f32.mxu0 0.0
    %v1069 = vand.u32 %v80, 4294901760
    %1070 = vmatmul.mubr.f32.gmra.mxu0 %v1069
    %v1071 = vpop.f32.mrf.mxu0
    %v1072 = vadd.f32 %v925, %v1071
    %v1073 = vpop.f32.mrf.mxu0
    %1074 = vmatprep.mubr.f32.mxu0 0.0
    %v1075 = vand.u32 %v83, 4294901760
    %1076 = vmatmul.mubr.f32.gmra.mxu0 %v1075
    %v1077 = vpop.f32.mrf.mxu0
    %v1078 = vadd.f32 %v931, %v1077
    %v1079 = vpop.f32.mrf.mxu0
    %1080 = vmatprep.mubr.f32.mxu0 0.0
    %v1081 = vand.u32 %v86, 4294901760
    %1082 = vmatmul.mubr.f32.gmra.mxu0 %v1081
    %v1083 = vpop.f32.mrf.mxu0
    %v1084 = vadd.f32 %v937, %v1083
    %v1085 = vpop.f32.mrf.mxu0
    %1086 = vmatprep.mubr.f32.mxu0 0.0
    %v1087 = vand.u32 %v89, 4294901760
    %1088 = vmatmul.mubr.f32.gmra.mxu0 %v1087
    %v1089 = vpop.f32.mrf.mxu0
    %v1090 = vadd.f32 %v943, %v1089
    %v1091 = vpop.f32.mrf.mxu0
    %1092 = vmatprep.mubr.f32.mxu0 0.0
    %v1093 = vand.u32 %v92, 4294901760
    %1094 = vmatmul.mubr.f32.gmra.mxu0 %v1093
    %v1095 = vpop.f32.mrf.mxu0
    %v1096 = vadd.f32 %v949, %v1095
    %v1097 = vpop.f32.mrf.mxu0
    %1098 = vdwg.mxu0
    %v1099 = vmax.f32 %v1024, 0.0
    %v1100 = vmax.f32 %v1030, 0.0
    %v1101 = vmax.f32 %v1036, 0.0
    %v1102 = vmax.f32 %v1042, 0.0
    %v1103 = vmax.f32 %v1048, 0.0
    %v1104 = vmax.f32 %v1054, 0.0
    %v1105 = vmax.f32 %v1060, 0.0
    %v1106 = vmax.f32 %v1066, 0.0
    %v1107 = vmax.f32 %v1072, 0.0
    %v1108 = vmax.f32 %v1078, 0.0
    %v1109 = vmax.f32 %v1084, 0.0
    %v1110 = vmax.f32 %v1090, 0.0
    %v1111 = vmax.f32 %v1096, 0.0
    %v1112 = vld [vmem:[%s3] sm:$0xff]
    %v1113 = vld [vmem:[%s4] sm:$0x1]
    %v1115 = vlaneseq
    %v1116 = vshrl.u32 %v1115, 7
    %v1117 = vsub.s32 0, %v1116
    %v1118 = vrot.slane %v1113, %v1117
    %vm1120 = vcmask 64512
    %v1122 = vsel %vm1120, %v1099, 0
    %v1125 = vsel %vm1120, %v1100, 0
    %v1128 = vsel %vm1120, %v1101, 0
    %v1131 = vsel %vm1120, %v1102, 0
    %v1134 = vsel %vm1120, %v1103, 0
    %v1137 = vsel %vm1120, %v1104, 0
    %v1140 = vsel %vm1120, %v1105, 0
    %v1143 = vsel %vm1120, %v1106, 0
    %v1146 = vsel %vm1120, %v1107, 0
    %v1149 = vsel %vm1120, %v1108, 0
    %v1152 = vsel %vm1120, %v1109, 0
    %v1155 = vsel %vm1120, %v1110, 0
    %v1158 = vsel %vm1120, %v1111, 0
    %1160 = vmatprep.subr.mxu0 0.0
    %1161 = vmatpush1.msra.mxu0 0.0
    %1162 = vmatprep.subr.mxu0 0.0
    %1163 = vmatpush1.msra.mxu0 0.0
    %1164 = vmatprep.subr.mxu0 0.0
    %1165 = vmatpush1.msra.mxu0 0.0
    %1166 = vmatprep.subr.mxu0 0.0
    %1167 = vmatpush1.msra.mxu0 0.0
    %1168 = vmatprep.subr.mxu0 0.0
    %1169 = vmatpush1.msra.mxu0 0.0
    %1170 = vmatprep.subr.mxu0 0.0
    %1171 = vmatpush1.msra.mxu0 0.0
    %1172 = vmatprep.subr.mxu0 0.0
    %1173 = vmatpush1.msra.mxu0 0.0
    %1174 = vmatprep.subr.mxu0 0.0
    %1175 = vmatpush1.msra.mxu0 0.0
    %1176 = vmatprep.subr.mxu0 0.0
    %1177 = vmatpush1.msra.mxu0 0.0
    %1178 = vmatprep.subr.mxu0 0.0
    %1179 = vmatpush1.msra.mxu0 0.0
    %1180 = vmatprep.subr.mxu0 0.0
    %1181 = vmatpush1.msra.mxu0 0.0
    %1182 = vmatprep.subr.mxu0 0.0
    %1183 = vmatpush1.msra.mxu0 0.0
    %1184 = vmatprep.subr.mxu0 0.0
    %1185 = vmatpush1.msra.mxu0 0.0
    %1186 = vmatprep.subr.mxu0 0.0
    %1187 = vmatpush1.msra.mxu0 0.0
    %1188 = vmatprep.subr.mxu0 0.0
    %1189 = vmatpush1.msra.mxu0 0.0
    %1190 = vmatprep.subr.mxu0 0.0
    %v1191 = vand.u32 %v1112, 4294901760
    %1192 = vmatpush1.msra.mxu0 %v1191
    %1193 = vmatprep.subr.mxu0 0.0
    %1194 = vmatpush2.msra.mxu0 0.0
    %1195 = vmatprep.subr.mxu0 0.0
    %1196 = vmatpush2.msra.mxu0 0.0
    %1197 = vmatprep.subr.mxu0 0.0
    %1198 = vmatpush2.msra.mxu0 0.0
    %1199 = vmatprep.subr.mxu0 0.0
    %1200 = vmatpush2.msra.mxu0 0.0
    %1201 = vmatprep.subr.mxu0 0.0
    %1202 = vmatpush2.msra.mxu0 0.0
    %1203 = vmatprep.subr.mxu0 0.0
    %1204 = vmatpush2.msra.mxu0 0.0
    %1205 = vmatprep.subr.mxu0 0.0
    %1206 = vmatpush2.msra.mxu0 0.0
    %1207 = vmatprep.subr.mxu0 0.0
    %1208 = vmatpush2.msra.mxu0 0.0
    %1209 = vmatprep.subr.mxu0 0.0
    %1210 = vmatpush2.msra.mxu0 0.0
    %1211 = vmatprep.subr.mxu0 0.0
    %1212 = vmatpush2.msra.mxu0 0.0
    %1213 = vmatprep.subr.mxu0 0.0
    %1214 = vmatpush2.msra.mxu0 0.0
    %1215 = vmatprep.subr.mxu0 0.0
    %1216 = vmatpush2.msra.mxu0 0.0
    %1217 = vmatprep.subr.mxu0 0.0
    %1218 = vmatpush2.msra.mxu0 0.0
    %1219 = vmatprep.subr.mxu0 0.0
    %1220 = vmatpush2.msra.mxu0 0.0
    %1221 = vmatprep.subr.mxu0 0.0
    %1222 = vmatpush2.msra.mxu0 0.0
    %1223 = vmatprep.subr.mxu0 0.0
    %1224 = vmatpush2.msra.mxu0 0.0
    %1225 = vmatprep.mubr.f32.mxu0 0.0
    %v1226 = vand.u32 %v1122, 4294901760
    %v1227 = vsub.f32 %v1122, %v1226
    %v1228 = vand.u32 %v1227, 4294901760
    %v1229 = vsub.f32 %v1227, %v1228
    %v1230 = vand.u32 %v1229, 4294901760
    %1231 = vmatmul.mubr.f32.gmra.mxu0 %v1230
    %v1232 = vpop.f32.mrf.mxu0
    %v1233 = vadd.f32 %v1118, %v1232
    %v1234 = vpop.f32.mrf.mxu0
    %1235 = vmatprep.mubr.f32.mxu0 0.0
    %v1236 = vand.u32 %v1125, 4294901760
    %v1237 = vsub.f32 %v1125, %v1236
    %v1238 = vand.u32 %v1237, 4294901760
    %v1239 = vsub.f32 %v1237, %v1238
    %v1240 = vand.u32 %v1239, 4294901760
    %1241 = vmatmul.mubr.f32.gmra.mxu0 %v1240
    %v1242 = vpop.f32.mrf.mxu0
    %v1243 = vadd.f32 %v1118, %v1242
    %v1244 = vpop.f32.mrf.mxu0
    %1245 = vmatprep.mubr.f32.mxu0 0.0
    %v1246 = vand.u32 %v1128, 4294901760
    %v1247 = vsub.f32 %v1128, %v1246
    %v1248 = vand.u32 %v1247, 4294901760
    %v1249 = vsub.f32 %v1247, %v1248
    %v1250 = vand.u32 %v1249, 4294901760
    %1251 = vmatmul.mubr.f32.gmra.mxu0 %v1250
    %v1252 = vpop.f32.mrf.mxu0
    %v1253 = vadd.f32 %v1118, %v1252
    %v1254 = vpop.f32.mrf.mxu0
    %1255 = vmatprep.mubr.f32.mxu0 0.0
    %v1256 = vand.u32 %v1131, 4294901760
    %v1257 = vsub.f32 %v1131, %v1256
    %v1258 = vand.u32 %v1257, 4294901760
    %v1259 = vsub.f32 %v1257, %v1258
    %v1260 = vand.u32 %v1259, 4294901760
    %1261 = vmatmul.mubr.f32.gmra.mxu0 %v1260
    %v1262 = vpop.f32.mrf.mxu0
    %v1263 = vadd.f32 %v1118, %v1262
    %v1264 = vpop.f32.mrf.mxu0
    %1265 = vmatprep.mubr.f32.mxu0 0.0
    %v1266 = vand.u32 %v1134, 4294901760
    %v1267 = vsub.f32 %v1134, %v1266
    %v1268 = vand.u32 %v1267, 4294901760
    %v1269 = vsub.f32 %v1267, %v1268
    %v1270 = vand.u32 %v1269, 4294901760
    %1271 = vmatmul.mubr.f32.gmra.mxu0 %v1270
    %v1272 = vpop.f32.mrf.mxu0
    %v1273 = vadd.f32 %v1118, %v1272
    %v1274 = vpop.f32.mrf.mxu0
    %1275 = vmatprep.mubr.f32.mxu0 0.0
    %v1276 = vand.u32 %v1137, 4294901760
    %v1277 = vsub.f32 %v1137, %v1276
    %v1278 = vand.u32 %v1277, 4294901760
    %v1279 = vsub.f32 %v1277, %v1278
    %v1280 = vand.u32 %v1279, 4294901760
    %1281 = vmatmul.mubr.f32.gmra.mxu0 %v1280
    %v1282 = vpop.f32.mrf.mxu0
    %v1283 = vadd.f32 %v1118, %v1282
    %v1284 = vpop.f32.mrf.mxu0
    %1285 = vmatprep.mubr.f32.mxu0 0.0
    %v1286 = vand.u32 %v1140, 4294901760
    %v1287 = vsub.f32 %v1140, %v1286
    %v1288 = vand.u32 %v1287, 4294901760
    %v1289 = vsub.f32 %v1287, %v1288
    %v1290 = vand.u32 %v1289, 4294901760
    %1291 = vmatmul.mubr.f32.gmra.mxu0 %v1290
    %v1292 = vpop.f32.mrf.mxu0
    %v1293 = vadd.f32 %v1118, %v1292
    %v1294 = vpop.f32.mrf.mxu0
    %1295 = vmatprep.mubr.f32.mxu0 0.0
    %v1296 = vand.u32 %v1143, 4294901760
    %v1297 = vsub.f32 %v1143, %v1296
    %v1298 = vand.u32 %v1297, 4294901760
    %v1299 = vsub.f32 %v1297, %v1298
    %v1300 = vand.u32 %v1299, 4294901760
    %1301 = vmatmul.mubr.f32.gmra.mxu0 %v1300
    %v1302 = vpop.f32.mrf.mxu0
    %v1303 = vadd.f32 %v1118, %v1302
    %v1304 = vpop.f32.mrf.mxu0
    %1305 = vmatprep.mubr.f32.mxu0 0.0
    %v1306 = vand.u32 %v1146, 4294901760
    %v1307 = vsub.f32 %v1146, %v1306
    %v1308 = vand.u32 %v1307, 4294901760
    %v1309 = vsub.f32 %v1307, %v1308
    %v1310 = vand.u32 %v1309, 4294901760
    %1311 = vmatmul.mubr.f32.gmra.mxu0 %v1310
    %v1312 = vpop.f32.mrf.mxu0
    %v1313 = vadd.f32 %v1118, %v1312
    %v1314 = vpop.f32.mrf.mxu0
    %1315 = vmatprep.mubr.f32.mxu0 0.0
    %v1316 = vand.u32 %v1149, 4294901760
    %v1317 = vsub.f32 %v1149, %v1316
    %v1318 = vand.u32 %v1317, 4294901760
    %v1319 = vsub.f32 %v1317, %v1318
    %v1320 = vand.u32 %v1319, 4294901760
    %1321 = vmatmul.mubr.f32.gmra.mxu0 %v1320
    %v1322 = vpop.f32.mrf.mxu0
    %v1323 = vadd.f32 %v1118, %v1322
    %v1324 = vpop.f32.mrf.mxu0
    %1325 = vmatprep.mubr.f32.mxu0 0.0
    %v1326 = vand.u32 %v1152, 4294901760
    %v1327 = vsub.f32 %v1152, %v1326
    %v1328 = vand.u32 %v1327, 4294901760
    %v1329 = vsub.f32 %v1327, %v1328
    %v1330 = vand.u32 %v1329, 4294901760
    %1331 = vmatmul.mubr.f32.gmra.mxu0 %v1330
    %v1332 = vpop.f32.mrf.mxu0
    %v1333 = vadd.f32 %v1118, %v1332
    %v1334 = vpop.f32.mrf.mxu0
    %1335 = vmatprep.mubr.f32.mxu0 0.0
    %v1336 = vand.u32 %v1155, 4294901760
    %v1337 = vsub.f32 %v1155, %v1336
    %v1338 = vand.u32 %v1337, 4294901760
    %v1339 = vsub.f32 %v1337, %v1338
    %v1340 = vand.u32 %v1339, 4294901760
    %1341 = vmatmul.mubr.f32.gmra.mxu0 %v1340
    %v1342 = vpop.f32.mrf.mxu0
    %v1343 = vadd.f32 %v1118, %v1342
    %v1344 = vpop.f32.mrf.mxu0
    %1345 = vmatprep.mubr.f32.mxu0 0.0
    %v1346 = vand.u32 %v1158, 4294901760
    %v1347 = vsub.f32 %v1158, %v1346
    %v1348 = vand.u32 %v1347, 4294901760
    %v1349 = vsub.f32 %v1347, %v1348
    %v1350 = vand.u32 %v1349, 4294901760
    %1351 = vmatmul.mubr.f32.gmra.mxu0 %v1350
    %v1352 = vpop.f32.mrf.mxu0
    %v1353 = vadd.f32 %v1118, %v1352
    %v1354 = vpop.f32.mrf.mxu0
    %1355 = vdwg.mxu0
    %1356 = vmatprep.subr.mxu0 0.0
    %1357 = vmatpush1.msra.mxu0 0.0
    %1358 = vmatprep.subr.mxu0 0.0
    %1359 = vmatpush1.msra.mxu0 0.0
    %1360 = vmatprep.subr.mxu0 0.0
    %1361 = vmatpush1.msra.mxu0 0.0
    %1362 = vmatprep.subr.mxu0 0.0
    %1363 = vmatpush1.msra.mxu0 0.0
    %1364 = vmatprep.subr.mxu0 0.0
    %1365 = vmatpush1.msra.mxu0 0.0
    %1366 = vmatprep.subr.mxu0 0.0
    %1367 = vmatpush1.msra.mxu0 0.0
    %1368 = vmatprep.subr.mxu0 0.0
    %1369 = vmatpush1.msra.mxu0 0.0
    %1370 = vmatprep.subr.mxu0 0.0
    %1371 = vmatpush1.msra.mxu0 0.0
    %1372 = vmatprep.subr.mxu0 0.0
    %1373 = vmatpush1.msra.mxu0 0.0
    %1374 = vmatprep.subr.mxu0 0.0
    %1375 = vmatpush1.msra.mxu0 0.0
    %1376 = vmatprep.subr.mxu0 0.0
    %1377 = vmatpush1.msra.mxu0 0.0
    %1378 = vmatprep.subr.mxu0 0.0
    %1379 = vmatpush1.msra.mxu0 0.0
    %1380 = vmatprep.subr.mxu0 0.0
    %1381 = vmatpush1.msra.mxu0 0.0
    %1382 = vmatprep.subr.mxu0 0.0
    %1383 = vmatpush1.msra.mxu0 0.0
    %1384 = vmatprep.subr.mxu0 0.0
    %1385 = vmatpush1.msra.mxu0 0.0
    %1386 = vmatprep.subr.mxu0 0.0
    %v1387 = vand.u32 %v1112, 4294901760
    %v1388 = vsub.f32 %v1112, %v1387
    %v1389 = vand.u32 %v1388, 4294901760
    %v1390 = vsub.f32 %v1388, %v1389
    %v1391 = vand.u32 %v1390, 4294901760
    %1392 = vmatpush1.msra.mxu0 %v1391
    %1393 = vmatprep.subr.mxu0 0.0
    %1394 = vmatpush2.msra.mxu0 0.0
    %1395 = vmatprep.subr.mxu0 0.0
    %1396 = vmatpush2.msra.mxu0 0.0
    %1397 = vmatprep.subr.mxu0 0.0
    %1398 = vmatpush2.msra.mxu0 0.0
    %1399 = vmatprep.subr.mxu0 0.0
    %1400 = vmatpush2.msra.mxu0 0.0
    %1401 = vmatprep.subr.mxu0 0.0
    %1402 = vmatpush2.msra.mxu0 0.0
    %1403 = vmatprep.subr.mxu0 0.0
    %1404 = vmatpush2.msra.mxu0 0.0
    %1405 = vmatprep.subr.mxu0 0.0
    %1406 = vmatpush2.msra.mxu0 0.0
    %1407 = vmatprep.subr.mxu0 0.0
    %1408 = vmatpush2.msra.mxu0 0.0
    %1409 = vmatprep.subr.mxu0 0.0
    %1410 = vmatpush2.msra.mxu0 0.0
    %1411 = vmatprep.subr.mxu0 0.0
    %1412 = vmatpush2.msra.mxu0 0.0
    %1413 = vmatprep.subr.mxu0 0.0
    %1414 = vmatpush2.msra.mxu0 0.0
    %1415 = vmatprep.subr.mxu0 0.0
    %1416 = vmatpush2.msra.mxu0 0.0
    %1417 = vmatprep.subr.mxu0 0.0
    %1418 = vmatpush2.msra.mxu0 0.0
    %1419 = vmatprep.subr.mxu0 0.0
    %1420 = vmatpush2.msra.mxu0 0.0
    %1421 = vmatprep.subr.mxu0 0.0
    %1422 = vmatpush2.msra.mxu0 0.0
    %1423 = vmatprep.subr.mxu0 0.0
    %1424 = vmatpush2.msra.mxu0 0.0
    %1425 = vmatprep.mubr.f32.mxu0 0.0
    %v1426 = vand.u32 %v1122, 4294901760
    %1427 = vmatmul.mubr.f32.gmra.mxu0 %v1426
    %v1428 = vpop.f32.mrf.mxu0
    %v1429 = vadd.f32 %v1233, %v1428
    %v1430 = vpop.f32.mrf.mxu0
    %1431 = vmatprep.mubr.f32.mxu0 0.0
    %v1432 = vand.u32 %v1125, 4294901760
    %1433 = vmatmul.mubr.f32.gmra.mxu0 %v1432
    %v1434 = vpop.f32.mrf.mxu0
    %v1435 = vadd.f32 %v1243, %v1434
    %v1436 = vpop.f32.mrf.mxu0
    %1437 = vmatprep.mubr.f32.mxu0 0.0
    %v1438 = vand.u32 %v1128, 4294901760
    %1439 = vmatmul.mubr.f32.gmra.mxu0 %v1438
    %v1440 = vpop.f32.mrf.mxu0
    %v1441 = vadd.f32 %v1253, %v1440
    %v1442 = vpop.f32.mrf.mxu0
    %1443 = vmatprep.mubr.f32.mxu0 0.0
    %v1444 = vand.u32 %v1131, 4294901760
    %1445 = vmatmul.mubr.f32.gmra.mxu0 %v1444
    %v1446 = vpop.f32.mrf.mxu0
    %v1447 = vadd.f32 %v1263, %v1446
    %v1448 = vpop.f32.mrf.mxu0
    %1449 = vmatprep.mubr.f32.mxu0 0.0
    %v1450 = vand.u32 %v1134, 4294901760
    %1451 = vmatmul.mubr.f32.gmra.mxu0 %v1450
    %v1452 = vpop.f32.mrf.mxu0
    %v1453 = vadd.f32 %v1273, %v1452
    %v1454 = vpop.f32.mrf.mxu0
    %1455 = vmatprep.mubr.f32.mxu0 0.0
    %v1456 = vand.u32 %v1137, 4294901760
    %1457 = vmatmul.mubr.f32.gmra.mxu0 %v1456
    %v1458 = vpop.f32.mrf.mxu0
    %v1459 = vadd.f32 %v1283, %v1458
    %v1460 = vpop.f32.mrf.mxu0
    %1461 = vmatprep.mubr.f32.mxu0 0.0
    %v1462 = vand.u32 %v1140, 4294901760
    %1463 = vmatmul.mubr.f32.gmra.mxu0 %v1462
    %v1464 = vpop.f32.mrf.mxu0
    %v1465 = vadd.f32 %v1293, %v1464
    %v1466 = vpop.f32.mrf.mxu0
    %1467 = vmatprep.mubr.f32.mxu0 0.0
    %v1468 = vand.u32 %v1143, 4294901760
    %1469 = vmatmul.mubr.f32.gmra.mxu0 %v1468
    %v1470 = vpop.f32.mrf.mxu0
    %v1471 = vadd.f32 %v1303, %v1470
    %v1472 = vpop.f32.mrf.mxu0
    %1473 = vmatprep.mubr.f32.mxu0 0.0
    %v1474 = vand.u32 %v1146, 4294901760
    %1475 = vmatmul.mubr.f32.gmra.mxu0 %v1474
    %v1476 = vpop.f32.mrf.mxu0
    %v1477 = vadd.f32 %v1313, %v1476
    %v1478 = vpop.f32.mrf.mxu0
    %1479 = vmatprep.mubr.f32.mxu0 0.0
    %v1480 = vand.u32 %v1149, 4294901760
    %1481 = vmatmul.mubr.f32.gmra.mxu0 %v1480
    %v1482 = vpop.f32.mrf.mxu0
    %v1483 = vadd.f32 %v1323, %v1482
    %v1484 = vpop.f32.mrf.mxu0
    %1485 = vmatprep.mubr.f32.mxu0 0.0
    %v1486 = vand.u32 %v1152, 4294901760
    %1487 = vmatmul.mubr.f32.gmra.mxu0 %v1486
    %v1488 = vpop.f32.mrf.mxu0
    %v1489 = vadd.f32 %v1333, %v1488
    %v1490 = vpop.f32.mrf.mxu0
    %1491 = vmatprep.mubr.f32.mxu0 0.0
    %v1492 = vand.u32 %v1155, 4294901760
    %1493 = vmatmul.mubr.f32.gmra.mxu0 %v1492
    %v1494 = vpop.f32.mrf.mxu0
    %v1495 = vadd.f32 %v1343, %v1494
    %v1496 = vpop.f32.mrf.mxu0
    %1497 = vmatprep.mubr.f32.mxu0 0.0
    %v1498 = vand.u32 %v1158, 4294901760
    %1499 = vmatmul.mubr.f32.gmra.mxu0 %v1498
    %v1500 = vpop.f32.mrf.mxu0
    %v1501 = vadd.f32 %v1353, %v1500
    %v1502 = vpop.f32.mrf.mxu0
    %1503 = vdwg.mxu0
    %1504 = vmatprep.subr.mxu0 0.0
    %1505 = vmatpush1.msra.mxu0 0.0
    %1506 = vmatprep.subr.mxu0 0.0
    %1507 = vmatpush1.msra.mxu0 0.0
    %1508 = vmatprep.subr.mxu0 0.0
    %1509 = vmatpush1.msra.mxu0 0.0
    %1510 = vmatprep.subr.mxu0 0.0
    %1511 = vmatpush1.msra.mxu0 0.0
    %1512 = vmatprep.subr.mxu0 0.0
    %1513 = vmatpush1.msra.mxu0 0.0
    %1514 = vmatprep.subr.mxu0 0.0
    %1515 = vmatpush1.msra.mxu0 0.0
    %1516 = vmatprep.subr.mxu0 0.0
    %1517 = vmatpush1.msra.mxu0 0.0
    %1518 = vmatprep.subr.mxu0 0.0
    %1519 = vmatpush1.msra.mxu0 0.0
    %1520 = vmatprep.subr.mxu0 0.0
    %1521 = vmatpush1.msra.mxu0 0.0
    %1522 = vmatprep.subr.mxu0 0.0
    %1523 = vmatpush1.msra.mxu0 0.0
    %1524 = vmatprep.subr.mxu0 0.0
    %1525 = vmatpush1.msra.mxu0 0.0
    %1526 = vmatprep.subr.mxu0 0.0
    %1527 = vmatpush1.msra.mxu0 0.0
    %1528 = vmatprep.subr.mxu0 0.0
    %1529 = vmatpush1.msra.mxu0 0.0
    %1530 = vmatprep.subr.mxu0 0.0
    %1531 = vmatpush1.msra.mxu0 0.0
    %1532 = vmatprep.subr.mxu0 0.0
    %1533 = vmatpush1.msra.mxu0 0.0
    %1534 = vmatprep.subr.mxu0 0.0
    %v1535 = vand.u32 %v1112, 4294901760
    %v1536 = vsub.f32 %v1112, %v1535
    %1537 = vmatpush1.msra.mxu0 %v1536
    %1538 = vmatprep.subr.mxu0 0.0
    %1539 = vmatpush2.msra.mxu0 0.0
    %1540 = vmatprep.subr.mxu0 0.0
    %1541 = vmatpush2.msra.mxu0 0.0
    %1542 = vmatprep.subr.mxu0 0.0
    %1543 = vmatpush2.msra.mxu0 0.0
    %1544 = vmatprep.subr.mxu0 0.0
    %1545 = vmatpush2.msra.mxu0 0.0
    %1546 = vmatprep.subr.mxu0 0.0
    %1547 = vmatpush2.msra.mxu0 0.0
    %1548 = vmatprep.subr.mxu0 0.0
    %1549 = vmatpush2.msra.mxu0 0.0
    %1550 = vmatprep.subr.mxu0 0.0
    %1551 = vmatpush2.msra.mxu0 0.0
    %1552 = vmatprep.subr.mxu0 0.0
    %1553 = vmatpush2.msra.mxu0 0.0
    %1554 = vmatprep.subr.mxu0 0.0
    %1555 = vmatpush2.msra.mxu0 0.0
    %1556 = vmatprep.subr.mxu0 0.0
    %1557 = vmatpush2.msra.mxu0 0.0
    %1558 = vmatprep.subr.mxu0 0.0
    %1559 = vmatpush2.msra.mxu0 0.0
    %1560 = vmatprep.subr.mxu0 0.0
    %1561 = vmatpush2.msra.mxu0 0.0
    %1562 = vmatprep.subr.mxu0 0.0
    %1563 = vmatpush2.msra.mxu0 0.0
    %1564 = vmatprep.subr.mxu0 0.0
    %1565 = vmatpush2.msra.mxu0 0.0
    %1566 = vmatprep.subr.mxu0 0.0
    %1567 = vmatpush2.msra.mxu0 0.0
    %1568 = vmatprep.subr.mxu0 0.0
    %1569 = vmatpush2.msra.mxu0 0.0
    %1570 = vmatprep.mubr.f32.mxu0 0.0
    %v1571 = vand.u32 %v1122, 4294901760
    %v1572 = vsub.f32 %v1122, %v1571
    %1573 = vmatmul.mubr.f32.gmra.mxu0 %v1572
    %v1574 = vpop.f32.mrf.mxu0
    %v1575 = vadd.f32 %v1429, %v1574
    %v1576 = vpop.f32.mrf.mxu0
    %1577 = vmatprep.mubr.f32.mxu0 0.0
    %v1578 = vand.u32 %v1125, 4294901760
    %v1579 = vsub.f32 %v1125, %v1578
    %1580 = vmatmul.mubr.f32.gmra.mxu0 %v1579
    %v1581 = vpop.f32.mrf.mxu0
    %v1582 = vadd.f32 %v1435, %v1581
    %v1583 = vpop.f32.mrf.mxu0
    %1584 = vmatprep.mubr.f32.mxu0 0.0
    %v1585 = vand.u32 %v1128, 4294901760
    %v1586 = vsub.f32 %v1128, %v1585
    %1587 = vmatmul.mubr.f32.gmra.mxu0 %v1586
    %v1588 = vpop.f32.mrf.mxu0
    %v1589 = vadd.f32 %v1441, %v1588
    %v1590 = vpop.f32.mrf.mxu0
    %1591 = vmatprep.mubr.f32.mxu0 0.0
    %v1592 = vand.u32 %v1131, 4294901760
    %v1593 = vsub.f32 %v1131, %v1592
    %1594 = vmatmul.mubr.f32.gmra.mxu0 %v1593
    %v1595 = vpop.f32.mrf.mxu0
    %v1596 = vadd.f32 %v1447, %v1595
    %v1597 = vpop.f32.mrf.mxu0
    %1598 = vmatprep.mubr.f32.mxu0 0.0
    %v1599 = vand.u32 %v1134, 4294901760
    %v1600 = vsub.f32 %v1134, %v1599
    %1601 = vmatmul.mubr.f32.gmra.mxu0 %v1600
    %v1602 = vpop.f32.mrf.mxu0
    %v1603 = vadd.f32 %v1453, %v1602
    %v1604 = vpop.f32.mrf.mxu0
    %1605 = vmatprep.mubr.f32.mxu0 0.0
    %v1606 = vand.u32 %v1137, 4294901760
    %v1607 = vsub.f32 %v1137, %v1606
    %1608 = vmatmul.mubr.f32.gmra.mxu0 %v1607
    %v1609 = vpop.f32.mrf.mxu0
    %v1610 = vadd.f32 %v1459, %v1609
    %v1611 = vpop.f32.mrf.mxu0
    %1612 = vmatprep.mubr.f32.mxu0 0.0
    %v1613 = vand.u32 %v1140, 4294901760
    %v1614 = vsub.f32 %v1140, %v1613
    %1615 = vmatmul.mubr.f32.gmra.mxu0 %v1614
    %v1616 = vpop.f32.mrf.mxu0
    %v1617 = vadd.f32 %v1465, %v1616
    %v1618 = vpop.f32.mrf.mxu0
    %1619 = vmatprep.mubr.f32.mxu0 0.0
    %v1620 = vand.u32 %v1143, 4294901760
    %v1621 = vsub.f32 %v1143, %v1620
    %1622 = vmatmul.mubr.f32.gmra.mxu0 %v1621
    %v1623 = vpop.f32.mrf.mxu0
    %v1624 = vadd.f32 %v1471, %v1623
    %v1625 = vpop.f32.mrf.mxu0
    %1626 = vmatprep.mubr.f32.mxu0 0.0
    %v1627 = vand.u32 %v1146, 4294901760
    %v1628 = vsub.f32 %v1146, %v1627
    %1629 = vmatmul.mubr.f32.gmra.mxu0 %v1628
    %v1630 = vpop.f32.mrf.mxu0
    %v1631 = vadd.f32 %v1477, %v1630
    %v1632 = vpop.f32.mrf.mxu0
    %1633 = vmatprep.mubr.f32.mxu0 0.0
    %v1634 = vand.u32 %v1149, 4294901760
    %v1635 = vsub.f32 %v1149, %v1634
    %1636 = vmatmul.mubr.f32.gmra.mxu0 %v1635
    %v1637 = vpop.f32.mrf.mxu0
    %v1638 = vadd.f32 %v1483, %v1637
    %v1639 = vpop.f32.mrf.mxu0
    %1640 = vmatprep.mubr.f32.mxu0 0.0
    %v1641 = vand.u32 %v1152, 4294901760
    %v1642 = vsub.f32 %v1152, %v1641
    %1643 = vmatmul.mubr.f32.gmra.mxu0 %v1642
    %v1644 = vpop.f32.mrf.mxu0
    %v1645 = vadd.f32 %v1489, %v1644
    %v1646 = vpop.f32.mrf.mxu0
    %1647 = vmatprep.mubr.f32.mxu0 0.0
    %v1648 = vand.u32 %v1155, 4294901760
    %v1649 = vsub.f32 %v1155, %v1648
    %1650 = vmatmul.mubr.f32.gmra.mxu0 %v1649
    %v1651 = vpop.f32.mrf.mxu0
    %v1652 = vadd.f32 %v1495, %v1651
    %v1653 = vpop.f32.mrf.mxu0
    %1654 = vmatprep.mubr.f32.mxu0 0.0
    %v1655 = vand.u32 %v1158, 4294901760
    %v1656 = vsub.f32 %v1158, %v1655
    %1657 = vmatmul.mubr.f32.gmra.mxu0 %v1656
    %v1658 = vpop.f32.mrf.mxu0
    %v1659 = vadd.f32 %v1501, %v1658
    %v1660 = vpop.f32.mrf.mxu0
    %1661 = vdwg.mxu0
    %1662 = vmatprep.subr.mxu0 0.0
    %1663 = vmatpush1.msra.mxu0 0.0
    %1664 = vmatprep.subr.mxu0 0.0
    %1665 = vmatpush1.msra.mxu0 0.0
    %1666 = vmatprep.subr.mxu0 0.0
    %1667 = vmatpush1.msra.mxu0 0.0
    %1668 = vmatprep.subr.mxu0 0.0
    %1669 = vmatpush1.msra.mxu0 0.0
    %1670 = vmatprep.subr.mxu0 0.0
    %1671 = vmatpush1.msra.mxu0 0.0
    %1672 = vmatprep.subr.mxu0 0.0
    %1673 = vmatpush1.msra.mxu0 0.0
    %1674 = vmatprep.subr.mxu0 0.0
    %1675 = vmatpush1.msra.mxu0 0.0
    %1676 = vmatprep.subr.mxu0 0.0
    %1677 = vmatpush1.msra.mxu0 0.0
    %1678 = vmatprep.subr.mxu0 0.0
    %1679 = vmatpush1.msra.mxu0 0.0
    %1680 = vmatprep.subr.mxu0 0.0
    %1681 = vmatpush1.msra.mxu0 0.0
    %1682 = vmatprep.subr.mxu0 0.0
    %1683 = vmatpush1.msra.mxu0 0.0
    %1684 = vmatprep.subr.mxu0 0.0
    %1685 = vmatpush1.msra.mxu0 0.0
    %1686 = vmatprep.subr.mxu0 0.0
    %1687 = vmatpush1.msra.mxu0 0.0
    %1688 = vmatprep.subr.mxu0 0.0
    %1689 = vmatpush1.msra.mxu0 0.0
    %1690 = vmatprep.subr.mxu0 0.0
    %1691 = vmatpush1.msra.mxu0 0.0
    %1692 = vmatprep.subr.mxu0 0.0
    %v1693 = vand.u32 %v1112, 4294901760
    %1694 = vmatpush1.msra.mxu0 %v1693
    %1695 = vmatprep.subr.mxu0 0.0
    %1696 = vmatpush2.msra.mxu0 0.0
    %1697 = vmatprep.subr.mxu0 0.0
    %1698 = vmatpush2.msra.mxu0 0.0
    %1699 = vmatprep.subr.mxu0 0.0
    %1700 = vmatpush2.msra.mxu0 0.0
    %1701 = vmatprep.subr.mxu0 0.0
    %1702 = vmatpush2.msra.mxu0 0.0
    %1703 = vmatprep.subr.mxu0 0.0
    %1704 = vmatpush2.msra.mxu0 0.0
    %1705 = vmatprep.subr.mxu0 0.0
    %1706 = vmatpush2.msra.mxu0 0.0
    %1707 = vmatprep.subr.mxu0 0.0
    %1708 = vmatpush2.msra.mxu0 0.0
    %1709 = vmatprep.subr.mxu0 0.0
    %1710 = vmatpush2.msra.mxu0 0.0
    %1711 = vmatprep.subr.mxu0 0.0
    %1712 = vmatpush2.msra.mxu0 0.0
    %1713 = vmatprep.subr.mxu0 0.0
    %1714 = vmatpush2.msra.mxu0 0.0
    %1715 = vmatprep.subr.mxu0 0.0
    %1716 = vmatpush2.msra.mxu0 0.0
    %1717 = vmatprep.subr.mxu0 0.0
    %1718 = vmatpush2.msra.mxu0 0.0
    %1719 = vmatprep.subr.mxu0 0.0
    %1720 = vmatpush2.msra.mxu0 0.0
    %1721 = vmatprep.subr.mxu0 0.0
    %1722 = vmatpush2.msra.mxu0 0.0
    %1723 = vmatprep.subr.mxu0 0.0
    %1724 = vmatpush2.msra.mxu0 0.0
    %1725 = vmatprep.subr.mxu0 0.0
    %1726 = vmatpush2.msra.mxu0 0.0
    %1727 = vmatprep.mubr.f32.mxu0 0.0
    %v1728 = vand.u32 %v1122, 4294901760
    %v1729 = vsub.f32 %v1122, %v1728
    %v1730 = vand.u32 %v1729, 4294901760
    %1731 = vmatmul.mubr.f32.gmra.mxu0 %v1730
    %v1732 = vpop.f32.mrf.mxu0
    %v1733 = vadd.f32 %v1575, %v1732
    %v1734 = vpop.f32.mrf.mxu0
    %1735 = vmatprep.mubr.f32.mxu0 0.0
    %v1736 = vand.u32 %v1125, 4294901760
    %v1737 = vsub.f32 %v1125, %v1736
    %v1738 = vand.u32 %v1737, 4294901760
    %1739 = vmatmul.mubr.f32.gmra.mxu0 %v1738
    %v1740 = vpop.f32.mrf.mxu0
    %v1741 = vadd.f32 %v1582, %v1740
    %v1742 = vpop.f32.mrf.mxu0
    %1743 = vmatprep.mubr.f32.mxu0 0.0
    %v1744 = vand.u32 %v1128, 4294901760
    %v1745 = vsub.f32 %v1128, %v1744
    %v1746 = vand.u32 %v1745, 4294901760
    %1747 = vmatmul.mubr.f32.gmra.mxu0 %v1746
    %v1748 = vpop.f32.mrf.mxu0
    %v1749 = vadd.f32 %v1589, %v1748
    %v1750 = vpop.f32.mrf.mxu0
    %1751 = vmatprep.mubr.f32.mxu0 0.0
    %v1752 = vand.u32 %v1131, 4294901760
    %v1753 = vsub.f32 %v1131, %v1752
    %v1754 = vand.u32 %v1753, 4294901760
    %1755 = vmatmul.mubr.f32.gmra.mxu0 %v1754
    %v1756 = vpop.f32.mrf.mxu0
    %v1757 = vadd.f32 %v1596, %v1756
    %v1758 = vpop.f32.mrf.mxu0
    %1759 = vmatprep.mubr.f32.mxu0 0.0
    %v1760 = vand.u32 %v1134, 4294901760
    %v1761 = vsub.f32 %v1134, %v1760
    %v1762 = vand.u32 %v1761, 4294901760
    %1763 = vmatmul.mubr.f32.gmra.mxu0 %v1762
    %v1764 = vpop.f32.mrf.mxu0
    %v1765 = vadd.f32 %v1603, %v1764
    %v1766 = vpop.f32.mrf.mxu0
    %1767 = vmatprep.mubr.f32.mxu0 0.0
    %v1768 = vand.u32 %v1137, 4294901760
    %v1769 = vsub.f32 %v1137, %v1768
    %v1770 = vand.u32 %v1769, 4294901760
    %1771 = vmatmul.mubr.f32.gmra.mxu0 %v1770
    %v1772 = vpop.f32.mrf.mxu0
    %v1773 = vadd.f32 %v1610, %v1772
    %v1774 = vpop.f32.mrf.mxu0
    %1775 = vmatprep.mubr.f32.mxu0 0.0
    %v1776 = vand.u32 %v1140, 4294901760
    %v1777 = vsub.f32 %v1140, %v1776
    %v1778 = vand.u32 %v1777, 4294901760
    %1779 = vmatmul.mubr.f32.gmra.mxu0 %v1778
    %v1780 = vpop.f32.mrf.mxu0
    %v1781 = vadd.f32 %v1617, %v1780
    %v1782 = vpop.f32.mrf.mxu0
    %1783 = vmatprep.mubr.f32.mxu0 0.0
    %v1784 = vand.u32 %v1143, 4294901760
    %v1785 = vsub.f32 %v1143, %v1784
    %v1786 = vand.u32 %v1785, 4294901760
    %1787 = vmatmul.mubr.f32.gmra.mxu0 %v1786
    %v1788 = vpop.f32.mrf.mxu0
    %v1789 = vadd.f32 %v1624, %v1788
    %v1790 = vpop.f32.mrf.mxu0
    %1791 = vmatprep.mubr.f32.mxu0 0.0
    %v1792 = vand.u32 %v1146, 4294901760
    %v1793 = vsub.f32 %v1146, %v1792
    %v1794 = vand.u32 %v1793, 4294901760
    %1795 = vmatmul.mubr.f32.gmra.mxu0 %v1794
    %v1796 = vpop.f32.mrf.mxu0
    %v1797 = vadd.f32 %v1631, %v1796
    %v1798 = vpop.f32.mrf.mxu0
    %1799 = vmatprep.mubr.f32.mxu0 0.0
    %v1800 = vand.u32 %v1149, 4294901760
    %v1801 = vsub.f32 %v1149, %v1800
    %v1802 = vand.u32 %v1801, 4294901760
    %1803 = vmatmul.mubr.f32.gmra.mxu0 %v1802
    %v1804 = vpop.f32.mrf.mxu0
    %v1805 = vadd.f32 %v1638, %v1804
    %v1806 = vpop.f32.mrf.mxu0
    %1807 = vmatprep.mubr.f32.mxu0 0.0
    %v1808 = vand.u32 %v1152, 4294901760
    %v1809 = vsub.f32 %v1152, %v1808
    %v1810 = vand.u32 %v1809, 4294901760
    %1811 = vmatmul.mubr.f32.gmra.mxu0 %v1810
    %v1812 = vpop.f32.mrf.mxu0
    %v1813 = vadd.f32 %v1645, %v1812
    %v1814 = vpop.f32.mrf.mxu0
    %1815 = vmatprep.mubr.f32.mxu0 0.0
    %v1816 = vand.u32 %v1155, 4294901760
    %v1817 = vsub.f32 %v1155, %v1816
    %v1818 = vand.u32 %v1817, 4294901760
    %1819 = vmatmul.mubr.f32.gmra.mxu0 %v1818
    %v1820 = vpop.f32.mrf.mxu0
    %v1821 = vadd.f32 %v1652, %v1820
    %v1822 = vpop.f32.mrf.mxu0
    %1823 = vmatprep.mubr.f32.mxu0 0.0
    %v1824 = vand.u32 %v1158, 4294901760
    %v1825 = vsub.f32 %v1158, %v1824
    %v1826 = vand.u32 %v1825, 4294901760
    %1827 = vmatmul.mubr.f32.gmra.mxu0 %v1826
    %v1828 = vpop.f32.mrf.mxu0
    %v1829 = vadd.f32 %v1659, %v1828
    %v1830 = vpop.f32.mrf.mxu0
    %1831 = vdwg.mxu0
    %1832 = vmatprep.subr.mxu0 0.0
    %1833 = vmatpush1.msra.mxu0 0.0
    %1834 = vmatprep.subr.mxu0 0.0
    %1835 = vmatpush1.msra.mxu0 0.0
    %1836 = vmatprep.subr.mxu0 0.0
    %1837 = vmatpush1.msra.mxu0 0.0
    %1838 = vmatprep.subr.mxu0 0.0
    %1839 = vmatpush1.msra.mxu0 0.0
    %1840 = vmatprep.subr.mxu0 0.0
    %1841 = vmatpush1.msra.mxu0 0.0
    %1842 = vmatprep.subr.mxu0 0.0
    %1843 = vmatpush1.msra.mxu0 0.0
    %1844 = vmatprep.subr.mxu0 0.0
    %1845 = vmatpush1.msra.mxu0 0.0
    %1846 = vmatprep.subr.mxu0 0.0
    %1847 = vmatpush1.msra.mxu0 0.0
    %1848 = vmatprep.subr.mxu0 0.0
    %1849 = vmatpush1.msra.mxu0 0.0
    %1850 = vmatprep.subr.mxu0 0.0
    %1851 = vmatpush1.msra.mxu0 0.0
    %1852 = vmatprep.subr.mxu0 0.0
    %1853 = vmatpush1.msra.mxu0 0.0
    %1854 = vmatprep.subr.mxu0 0.0
    %1855 = vmatpush1.msra.mxu0 0.0
    %1856 = vmatprep.subr.mxu0 0.0
    %1857 = vmatpush1.msra.mxu0 0.0
    %1858 = vmatprep.subr.mxu0 0.0
    %1859 = vmatpush1.msra.mxu0 0.0
    %1860 = vmatprep.subr.mxu0 0.0
    %1861 = vmatpush1.msra.mxu0 0.0
    %1862 = vmatprep.subr.mxu0 0.0
    %v1863 = vand.u32 %v1112, 4294901760
    %v1864 = vsub.f32 %v1112, %v1863
    %v1865 = vand.u32 %v1864, 4294901760
    %1866 = vmatpush1.msra.mxu0 %v1865
    %1867 = vmatprep.subr.mxu0 0.0
    %1868 = vmatpush2.msra.mxu0 0.0
    %1869 = vmatprep.subr.mxu0 0.0
    %1870 = vmatpush2.msra.mxu0 0.0
    %1871 = vmatprep.subr.mxu0 0.0
    %1872 = vmatpush2.msra.mxu0 0.0
    %1873 = vmatprep.subr.mxu0 0.0
    %1874 = vmatpush2.msra.mxu0 0.0
    %1875 = vmatprep.subr.mxu0 0.0
    %1876 = vmatpush2.msra.mxu0 0.0
    %1877 = vmatprep.subr.mxu0 0.0
    %1878 = vmatpush2.msra.mxu0 0.0
    %1879 = vmatprep.subr.mxu0 0.0
    %1880 = vmatpush2.msra.mxu0 0.0
    %1881 = vmatprep.subr.mxu0 0.0
    %1882 = vmatpush2.msra.mxu0 0.0
    %1883 = vmatprep.subr.mxu0 0.0
    %1884 = vmatpush2.msra.mxu0 0.0
    %1885 = vmatprep.subr.mxu0 0.0
    %1886 = vmatpush2.msra.mxu0 0.0
    %1887 = vmatprep.subr.mxu0 0.0
    %1888 = vmatpush2.msra.mxu0 0.0
    %1889 = vmatprep.subr.mxu0 0.0
    %1890 = vmatpush2.msra.mxu0 0.0
    %1891 = vmatprep.subr.mxu0 0.0
    %1892 = vmatpush2.msra.mxu0 0.0
    %1893 = vmatprep.subr.mxu0 0.0
    %1894 = vmatpush2.msra.mxu0 0.0
    %1895 = vmatprep.subr.mxu0 0.0
    %1896 = vmatpush2.msra.mxu0 0.0
    %1897 = vmatprep.subr.mxu0 0.0
    %1898 = vmatpush2.msra.mxu0 0.0
    %1899 = vmatprep.mubr.f32.mxu0 0.0
    %v1900 = vand.u32 %v1122, 4294901760
    %1901 = vmatmul.mubr.f32.gmra.mxu0 %v1900
    %v1902 = vpop.f32.mrf.mxu0
    %v1903 = vadd.f32 %v1733, %v1902
    %v1904 = vpop.f32.mrf.mxu0
    %1905 = vmatprep.mubr.f32.mxu0 0.0
    %v1906 = vand.u32 %v1125, 4294901760
    %1907 = vmatmul.mubr.f32.gmra.mxu0 %v1906
    %v1908 = vpop.f32.mrf.mxu0
    %v1909 = vadd.f32 %v1741, %v1908
    %v1910 = vpop.f32.mrf.mxu0
    %1911 = vmatprep.mubr.f32.mxu0 0.0
    %v1912 = vand.u32 %v1128, 4294901760
    %1913 = vmatmul.mubr.f32.gmra.mxu0 %v1912
    %v1914 = vpop.f32.mrf.mxu0
    %v1915 = vadd.f32 %v1749, %v1914
    %v1916 = vpop.f32.mrf.mxu0
    %1917 = vmatprep.mubr.f32.mxu0 0.0
    %v1918 = vand.u32 %v1131, 4294901760
    %1919 = vmatmul.mubr.f32.gmra.mxu0 %v1918
    %v1920 = vpop.f32.mrf.mxu0
    %v1921 = vadd.f32 %v1757, %v1920
    %v1922 = vpop.f32.mrf.mxu0
    %1923 = vmatprep.mubr.f32.mxu0 0.0
    %v1924 = vand.u32 %v1134, 4294901760
    %1925 = vmatmul.mubr.f32.gmra.mxu0 %v1924
    %v1926 = vpop.f32.mrf.mxu0
    %v1927 = vadd.f32 %v1765, %v1926
    %v1928 = vpop.f32.mrf.mxu0
    %1929 = vmatprep.mubr.f32.mxu0 0.0
    %v1930 = vand.u32 %v1137, 4294901760
    %1931 = vmatmul.mubr.f32.gmra.mxu0 %v1930
    %v1932 = vpop.f32.mrf.mxu0
    %v1933 = vadd.f32 %v1773, %v1932
    %v1934 = vpop.f32.mrf.mxu0
    %1935 = vmatprep.mubr.f32.mxu0 0.0
    %v1936 = vand.u32 %v1140, 4294901760
    %1937 = vmatmul.mubr.f32.gmra.mxu0 %v1936
    %v1938 = vpop.f32.mrf.mxu0
    %v1939 = vadd.f32 %v1781, %v1938
    %v1940 = vpop.f32.mrf.mxu0
    %1941 = vmatprep.mubr.f32.mxu0 0.0
    %v1942 = vand.u32 %v1143, 4294901760
    %1943 = vmatmul.mubr.f32.gmra.mxu0 %v1942
    %v1944 = vpop.f32.mrf.mxu0
    %v1945 = vadd.f32 %v1789, %v1944
    %v1946 = vpop.f32.mrf.mxu0
    %1947 = vmatprep.mubr.f32.mxu0 0.0
    %v1948 = vand.u32 %v1146, 4294901760
    %1949 = vmatmul.mubr.f32.gmra.mxu0 %v1948
    %v1950 = vpop.f32.mrf.mxu0
    %v1951 = vadd.f32 %v1797, %v1950
    %v1952 = vpop.f32.mrf.mxu0
    %1953 = vmatprep.mubr.f32.mxu0 0.0
    %v1954 = vand.u32 %v1149, 4294901760
    %1955 = vmatmul.mubr.f32.gmra.mxu0 %v1954
    %v1956 = vpop.f32.mrf.mxu0
    %v1957 = vadd.f32 %v1805, %v1956
    %v1958 = vpop.f32.mrf.mxu0
    %1959 = vmatprep.mubr.f32.mxu0 0.0
    %v1960 = vand.u32 %v1152, 4294901760
    %1961 = vmatmul.mubr.f32.gmra.mxu0 %v1960
    %v1962 = vpop.f32.mrf.mxu0
    %v1963 = vadd.f32 %v1813, %v1962
    %v1964 = vpop.f32.mrf.mxu0
    %1965 = vmatprep.mubr.f32.mxu0 0.0
    %v1966 = vand.u32 %v1155, 4294901760
    %1967 = vmatmul.mubr.f32.gmra.mxu0 %v1966
    %v1968 = vpop.f32.mrf.mxu0
    %v1969 = vadd.f32 %v1821, %v1968
    %v1970 = vpop.f32.mrf.mxu0
    %1971 = vmatprep.mubr.f32.mxu0 0.0
    %v1972 = vand.u32 %v1158, 4294901760
    %1973 = vmatmul.mubr.f32.gmra.mxu0 %v1972
    %v1974 = vpop.f32.mrf.mxu0
    %v1975 = vadd.f32 %v1829, %v1974
    %v1976 = vpop.f32.mrf.mxu0
    %1977 = vdwg.mxu0
    %1978 = vmatprep.subr.mxu0 0.0
    %1979 = vmatpush1.msra.mxu0 0.0
    %1980 = vmatprep.subr.mxu0 0.0
    %1981 = vmatpush1.msra.mxu0 0.0
    %1982 = vmatprep.subr.mxu0 0.0
    %1983 = vmatpush1.msra.mxu0 0.0
    %1984 = vmatprep.subr.mxu0 0.0
    %1985 = vmatpush1.msra.mxu0 0.0
    %1986 = vmatprep.subr.mxu0 0.0
    %1987 = vmatpush1.msra.mxu0 0.0
    %1988 = vmatprep.subr.mxu0 0.0
    %1989 = vmatpush1.msra.mxu0 0.0
    %1990 = vmatprep.subr.mxu0 0.0
    %1991 = vmatpush1.msra.mxu0 0.0
    %1992 = vmatprep.subr.mxu0 0.0
    %1993 = vmatpush1.msra.mxu0 0.0
    %1994 = vmatprep.subr.mxu0 0.0
    %1995 = vmatpush1.msra.mxu0 0.0
    %1996 = vmatprep.subr.mxu0 0.0
    %1997 = vmatpush1.msra.mxu0 0.0
    %1998 = vmatprep.subr.mxu0 0.0
    %1999 = vmatpush1.msra.mxu0 0.0
    %2000 = vmatprep.subr.mxu0 0.0
    %2001 = vmatpush1.msra.mxu0 0.0
    %2002 = vmatprep.subr.mxu0 0.0
    %2003 = vmatpush1.msra.mxu0 0.0
    %2004 = vmatprep.subr.mxu0 0.0
    %2005 = vmatpush1.msra.mxu0 0.0
    %2006 = vmatprep.subr.mxu0 0.0
    %2007 = vmatpush1.msra.mxu0 0.0
    %2008 = vmatprep.subr.mxu0 0.0
    %v2009 = vand.u32 %v1112, 4294901760
    %2010 = vmatpush1.msra.mxu0 %v2009
    %2011 = vmatprep.subr.mxu0 0.0
    %2012 = vmatpush2.msra.mxu0 0.0
    %2013 = vmatprep.subr.mxu0 0.0
    %2014 = vmatpush2.msra.mxu0 0.0
    %2015 = vmatprep.subr.mxu0 0.0
    %2016 = vmatpush2.msra.mxu0 0.0
    %2017 = vmatprep.subr.mxu0 0.0
    %2018 = vmatpush2.msra.mxu0 0.0
    %2019 = vmatprep.subr.mxu0 0.0
    %2020 = vmatpush2.msra.mxu0 0.0
    %2021 = vmatprep.subr.mxu0 0.0
    %2022 = vmatpush2.msra.mxu0 0.0
    %2023 = vmatprep.subr.mxu0 0.0
    %2024 = vmatpush2.msra.mxu0 0.0
    %2025 = vmatprep.subr.mxu0 0.0
    %2026 = vmatpush2.msra.mxu0 0.0
    %2027 = vmatprep.subr.mxu0 0.0
    %2028 = vmatpush2.msra.mxu0 0.0
    %2029 = vmatprep.subr.mxu0 0.0
    %2030 = vmatpush2.msra.mxu0 0.0
    %2031 = vmatprep.subr.mxu0 0.0
    %2032 = vmatpush2.msra.mxu0 0.0
    %2033 = vmatprep.subr.mxu0 0.0
    %2034 = vmatpush2.msra.mxu0 0.0
    %2035 = vmatprep.subr.mxu0 0.0
    %2036 = vmatpush2.msra.mxu0 0.0
    %2037 = vmatprep.subr.mxu0 0.0
    %2038 = vmatpush2.msra.mxu0 0.0
    %2039 = vmatprep.subr.mxu0 0.0
    %2040 = vmatpush2.msra.mxu0 0.0
    %2041 = vmatprep.subr.mxu0 0.0
    %2042 = vmatpush2.msra.mxu0 0.0
    %2043 = vmatprep.mubr.f32.mxu0 0.0
    %v2044 = vand.u32 %v1122, 4294901760
    %2045 = vmatmul.mubr.f32.gmra.mxu0 %v2044
    %v2046 = vpop.f32.mrf.mxu0
    %v2047 = vadd.f32 %v1903, %v2046
    %v2048 = vpop.f32.mrf.mxu0
    %2049 = vmatprep.mubr.f32.mxu0 0.0
    %v2050 = vand.u32 %v1125, 4294901760
    %2051 = vmatmul.mubr.f32.gmra.mxu0 %v2050
    %v2052 = vpop.f32.mrf.mxu0
    %v2053 = vadd.f32 %v1909, %v2052
    %v2054 = vpop.f32.mrf.mxu0
    %2055 = vmatprep.mubr.f32.mxu0 0.0
    %v2056 = vand.u32 %v1128, 4294901760
    %2057 = vmatmul.mubr.f32.gmra.mxu0 %v2056
    %v2058 = vpop.f32.mrf.mxu0
    %v2059 = vadd.f32 %v1915, %v2058
    %v2060 = vpop.f32.mrf.mxu0
    %2061 = vmatprep.mubr.f32.mxu0 0.0
    %v2062 = vand.u32 %v1131, 4294901760
    %2063 = vmatmul.mubr.f32.gmra.mxu0 %v2062
    %v2064 = vpop.f32.mrf.mxu0
    %v2065 = vadd.f32 %v1921, %v2064
    %v2066 = vpop.f32.mrf.mxu0
    %2067 = vmatprep.mubr.f32.mxu0 0.0
    %v2068 = vand.u32 %v1134, 4294901760
    %2069 = vmatmul.mubr.f32.gmra.mxu0 %v2068
    %v2070 = vpop.f32.mrf.mxu0
    %v2071 = vadd.f32 %v1927, %v2070
    %v2072 = vpop.f32.mrf.mxu0
    %2073 = vmatprep.mubr.f32.mxu0 0.0
    %v2074 = vand.u32 %v1137, 4294901760
    %2075 = vmatmul.mubr.f32.gmra.mxu0 %v2074
    %v2076 = vpop.f32.mrf.mxu0
    %v2077 = vadd.f32 %v1933, %v2076
    %v2078 = vpop.f32.mrf.mxu0
    %2079 = vmatprep.mubr.f32.mxu0 0.0
    %v2080 = vand.u32 %v1140, 4294901760
    %2081 = vmatmul.mubr.f32.gmra.mxu0 %v2080
    %v2082 = vpop.f32.mrf.mxu0
    %v2083 = vadd.f32 %v1939, %v2082
    %v2084 = vpop.f32.mrf.mxu0
    %2085 = vmatprep.mubr.f32.mxu0 0.0
    %v2086 = vand.u32 %v1143, 4294901760
    %2087 = vmatmul.mubr.f32.gmra.mxu0 %v2086
    %v2088 = vpop.f32.mrf.mxu0
    %v2089 = vadd.f32 %v1945, %v2088
    %v2090 = vpop.f32.mrf.mxu0
    %2091 = vmatprep.mubr.f32.mxu0 0.0
    %v2092 = vand.u32 %v1146, 4294901760
    %2093 = vmatmul.mubr.f32.gmra.mxu0 %v2092
    %v2094 = vpop.f32.mrf.mxu0
    %v2095 = vadd.f32 %v1951, %v2094
    %v2096 = vpop.f32.mrf.mxu0
    %2097 = vmatprep.mubr.f32.mxu0 0.0
    %v2098 = vand.u32 %v1149, 4294901760
    %2099 = vmatmul.mubr.f32.gmra.mxu0 %v2098
    %v2100 = vpop.f32.mrf.mxu0
    %v2101 = vadd.f32 %v1957, %v2100
    %v2102 = vpop.f32.mrf.mxu0
    %2103 = vmatprep.mubr.f32.mxu0 0.0
    %v2104 = vand.u32 %v1152, 4294901760
    %2105 = vmatmul.mubr.f32.gmra.mxu0 %v2104
    %v2106 = vpop.f32.mrf.mxu0
    %v2107 = vadd.f32 %v1963, %v2106
    %v2108 = vpop.f32.mrf.mxu0
    %2109 = vmatprep.mubr.f32.mxu0 0.0
    %v2110 = vand.u32 %v1155, 4294901760
    %2111 = vmatmul.mubr.f32.gmra.mxu0 %v2110
    %v2112 = vpop.f32.mrf.mxu0
    %v2113 = vadd.f32 %v1969, %v2112
    %v2114 = vpop.f32.mrf.mxu0
    %2115 = vmatprep.mubr.f32.mxu0 0.0
    %v2116 = vand.u32 %v1158, 4294901760
    %2117 = vmatmul.mubr.f32.gmra.mxu0 %v2116
    %v2118 = vpop.f32.mrf.mxu0
    %v2119 = vadd.f32 %v1975, %v2118
    %v2120 = vpop.f32.mrf.mxu0
    %2121 = vdwg.mxu0
    %v2122 = vmax.f32 %v2047, 0.0
    %v2123 = vmax.f32 %v2053, 0.0
    %v2124 = vmax.f32 %v2059, 0.0
    %v2125 = vmax.f32 %v2065, 0.0
    %v2126 = vmax.f32 %v2071, 0.0
    %v2127 = vmax.f32 %v2077, 0.0
    %v2128 = vmax.f32 %v2083, 0.0
    %v2129 = vmax.f32 %v2089, 0.0
    %v2130 = vmax.f32 %v2095, 0.0
    %v2131 = vmax.f32 %v2101, 0.0
    %v2132 = vmax.f32 %v2107, 0.0
    %v2133 = vmax.f32 %v2113, 0.0
    %v2134 = vmax.f32 %v2119, 0.0
    %v2135 = vxor.u32 %v1099, 2147483648
    %v2136 = vxor.u32 %v1100, 2147483648
    %v2137 = vxor.u32 %v1101, 2147483648
    %v2138 = vxor.u32 %v1102, 2147483648
    %v2139 = vxor.u32 %v1103, 2147483648
    %v2140 = vxor.u32 %v1104, 2147483648
    %v2141 = vxor.u32 %v1105, 2147483648
    %v2142 = vxor.u32 %v1106, 2147483648
    %v2143 = vxor.u32 %v1107, 2147483648
    %v2144 = vxor.u32 %v1108, 2147483648
    %v2145 = vxor.u32 %v1109, 2147483648
    %v2146 = vxor.u32 %v1110, 2147483648
    %v2147 = vxor.u32 %v1111, 2147483648
    %v2148 = vmul.f32 %v2135, 1.442695
    %v2149 = vpow.pop %v2148
    %v2150 = vmul.f32 %v2136, 1.442695
    %v2151 = vpow.pop %v2150
    %v2152 = vmul.f32 %v2137, 1.442695
    %v2153 = vpow.pop %v2152
    %v2154 = vmul.f32 %v2138, 1.442695
    %v2155 = vpow.pop %v2154
    %v2156 = vmul.f32 %v2139, 1.442695
    %v2157 = vpow.pop %v2156
    %v2158 = vmul.f32 %v2140, 1.442695
    %v2159 = vpow.pop %v2158
    %v2160 = vmul.f32 %v2141, 1.442695
    %v2161 = vpow.pop %v2160
    %v2162 = vmul.f32 %v2142, 1.442695
    %v2163 = vpow.pop %v2162
    %v2164 = vmul.f32 %v2143, 1.442695
    %v2165 = vpow.pop %v2164
    %v2166 = vmul.f32 %v2144, 1.442695
    %v2167 = vpow.pop %v2166
    %v2168 = vmul.f32 %v2145, 1.442695
    %v2169 = vpow.pop %v2168
    %v2170 = vmul.f32 %v2146, 1.442695
    %v2171 = vpow.pop %v2170
    %v2172 = vmul.f32 %v2147, 1.442695
    %v2173 = vpow.pop %v2172
    %v2174 = vadd.f32 %v2149, 1.0
    %v2175 = vadd.f32 %v2151, 1.0
    %v2176 = vadd.f32 %v2153, 1.0
    %v2177 = vadd.f32 %v2155, 1.0
    %v2178 = vadd.f32 %v2157, 1.0
    %v2179 = vadd.f32 %v2159, 1.0
    %v2180 = vadd.f32 %v2161, 1.0
    %v2181 = vadd.f32 %v2163, 1.0
    %v2182 = vadd.f32 %v2165, 1.0
    %v2183 = vadd.f32 %v2167, 1.0
    %v2184 = vadd.f32 %v2169, 1.0
    %v2185 = vadd.f32 %v2171, 1.0
    %v2186 = vadd.f32 %v2173, 1.0
    %v2187 = vrcp.pop %v2174
    %v2188 = vmul.f32 1.0, %v2187
    %v2189 = vrcp.pop %v2175
    %v2190 = vmul.f32 1.0, %v2189
    %v2191 = vrcp.pop %v2176
    %v2192 = vmul.f32 1.0, %v2191
    %v2193 = vrcp.pop %v2177
    %v2194 = vmul.f32 1.0, %v2193
    %v2195 = vrcp.pop %v2178
    %v2196 = vmul.f32 1.0, %v2195
    %v2197 = vrcp.pop %v2179
    %v2198 = vmul.f32 1.0, %v2197
    %v2199 = vrcp.pop %v2180
    %v2200 = vmul.f32 1.0, %v2199
    %v2201 = vrcp.pop %v2181
    %v2202 = vmul.f32 1.0, %v2201
    %v2203 = vrcp.pop %v2182
    %v2204 = vmul.f32 1.0, %v2203
    %v2205 = vrcp.pop %v2183
    %v2206 = vmul.f32 1.0, %v2205
    %v2207 = vrcp.pop %v2184
    %v2208 = vmul.f32 1.0, %v2207
    %v2209 = vrcp.pop %v2185
    %v2210 = vmul.f32 1.0, %v2209
    %v2211 = vrcp.pop %v2186
    %v2212 = vmul.f32 1.0, %v2211
    %v2213 = vsub.f32 %v2122, %v2188
    %v2214 = vsub.f32 %v2123, %v2190
    %v2215 = vsub.f32 %v2124, %v2192
    %v2216 = vsub.f32 %v2125, %v2194
    %v2217 = vsub.f32 %v2126, %v2196
    %v2218 = vsub.f32 %v2127, %v2198
    %v2219 = vsub.f32 %v2128, %v2200
    %v2220 = vsub.f32 %v2129, %v2202
    %v2221 = vsub.f32 %v2130, %v2204
    %v2222 = vsub.f32 %v2131, %v2206
    %v2223 = vsub.f32 %v2132, %v2208
    %v2224 = vsub.f32 %v2133, %v2210
    %v2225 = vsub.f32 %v2134, %v2212
    %v2226 = vsel %vm1120, %v2213, 0.0
    %v2227 = vsel %vm1120, %v2214, 0.0
    %v2228 = vadd.f32 %v2226, %v2227
    %v2229 = vsel %vm1120, %v2215, 0.0
    %v2230 = vadd.f32 %v2228, %v2229
    %v2231 = vsel %vm1120, %v2216, 0.0
    %v2232 = vadd.f32 %v2230, %v2231
    %v2233 = vsel %vm1120, %v2217, 0.0
    %v2234 = vadd.f32 %v2232, %v2233
    %v2235 = vsel %vm1120, %v2218, 0.0
    %v2236 = vadd.f32 %v2234, %v2235
    %vm2237 = vcmask 57344
    %v2238 = vsel %vm2237, %v2219, 0.0
    %v2239 = vadd.f32 %v2236, %v2238
    %v2240 = vrot.slane %v2239, 4
    %v2241 = vadd.f32 %v2239, %v2240
    %v2242 = vrot.slane %v2241, 2
    %v2243 = vadd.f32 %v2241, %v2242
    %v2244 = vrot.slane %v2243, 1
    %v2245 = vadd.f32 %v2243, %v2244
    %v2246 = vrcp.pop 49.0
    %v2247 = vmul.f32 %v2245, %v2246
    %vm2255 = vcmask 1046528
    %v2256 = vrot.slane %v2213, 1
    %v2257 = vrot.slane %v2214, 1
    %v2258 = vsel %vm2255, %v2256, %v2257
    %v2259 = vrot.slane %v2215, 1
    %v2260 = vsel %vm2255, %v2257, %v2259
    %v2261 = vrot.slane %v2216, 1
    %v2262 = vsel %vm2255, %v2259, %v2261
    %v2263 = vrot.slane %v2217, 1
    %v2264 = vsel %vm2255, %v2261, %v2263
    %v2265 = vrot.slane %v2218, 1
    %v2266 = vsel %vm2255, %v2263, %v2265
    %v2267 = vrot.slane %v2219, 1
    %v2268 = vsel %vm2255, %v2265, %v2267
    %v2275 = vmax.f32 %v2213, %v2258
    %v2276 = vmax.f32 %v2214, %v2260
    %v2277 = vmax.f32 %v2215, %v2262
    %v2278 = vmax.f32 %v2216, %v2264
    %v2279 = vmax.f32 %v2217, %v2266
    %v2280 = vmax.f32 %v2218, %v2268
    %vm2287 = vcmask 1040384
    %v2288 = vrot.slane %v2275, 7
    %v2289 = vrot.slane %v2276, 7
    %v2290 = vsel %vm2287, %v2288, %v2289
    %v2291 = vrot.slane %v2277, 7
    %v2292 = vsel %vm2287, %v2289, %v2291
    %v2293 = vrot.slane %v2278, 7
    %v2294 = vsel %vm2287, %v2291, %v2293
    %v2295 = vrot.slane %v2279, 7
    %v2296 = vsel %vm2287, %v2293, %v2295
    %v2297 = vrot.slane %v2280, 7
    %v2298 = vsel %vm2287, %v2295, %v2297
    %v2305 = vmax.f32 %v2275, %v2290
    %v2306 = vmax.f32 %v2276, %v2292
    %v2307 = vmax.f32 %v2277, %v2294
    %v2308 = vmax.f32 %v2278, %v2296
    %v2309 = vmax.f32 %v2279, %v2298
    %v2310 = vmax.f32 %v2280, %v2297
    %v2311 = vld [vmem:[%s7] sm:$0xff]
    %v2312 = vld [vmem:[%s7 + $0x8] sm:$0xff]
    %v2313 = vld [vmem:[%s7 + $0x10] sm:$0xff]
    %v2314 = vld [vmem:[%s7 + $0x18] sm:$0xff]
    %v2315 = vld [vmem:[%s7 + $0x20] sm:$0xff]
    %v2316 = vld [vmem:[%s7 + $0x28] sm:$0x1]
    %2318 = vset.pattern.permute.xlu0 0
    %2319 = vperm.xlu0 %2318, %v2311
    %v2320 = vpop.permute.xlu0 %2319
    %2323 = vset.pattern.permute.xlu0 0
    %2324 = vperm.xlu0 %2323, %v2312
    %v2325 = vpop.permute.xlu0 %2324
    %2328 = vset.pattern.permute.xlu0 0
    %2329 = vperm.xlu0 %2328, %v2313
    %v2330 = vpop.permute.xlu0 %2329
    %2333 = vset.pattern.permute.xlu0 0
    %2334 = vperm.xlu0 %2333, %v2314
    %v2335 = vpop.permute.xlu0 %2334
    %2338 = vset.pattern.permute.xlu0 0
    %2339 = vperm.xlu0 %2338, %v2315
    %v2340 = vpop.permute.xlu0 %2339
    %2343 = vset.pattern.permute.xlu0 0
    %2344 = vperm.xlu0 %2343, %v2316
    %v2345 = vpop.permute.xlu0 %2344
    %v2347 = vmul.f32 %v2305, %v2320
    %v2348 = vmul.f32 %v2306, %v2325
    %v2349 = vmul.f32 %v2307, %v2330
    %v2350 = vmul.f32 %v2308, %v2335
    %v2351 = vmul.f32 %v2309, %v2340
    %v2352 = vmul.f32 %v2310, %v2345
    %v2353 = vsel %vm1120, %v2347, 0.0
    %v2354 = vsel %vm1120, %v2348, 0.0
    %v2355 = vadd.f32 %v2353, %v2354
    %v2356 = vsel %vm1120, %v2349, 0.0
    %v2357 = vadd.f32 %v2355, %v2356
    %v2358 = vsel %vm1120, %v2350, 0.0
    %v2359 = vadd.f32 %v2357, %v2358
    %v2360 = vsel %vm1120, %v2351, 0.0
    %v2361 = vadd.f32 %v2359, %v2360
    %v2362 = vsel %vm2237, %v2352, 0.0
    %v2363 = vadd.f32 %v2361, %v2362
    %v2364 = vrot.slane %v2363, 4
    %v2365 = vadd.f32 %v2363, %v2364
    %v2366 = vrot.slane %v2365, 2
    %v2367 = vadd.f32 %v2365, %v2366
    %v2368 = vrot.slane %v2367, 1
    %v2369 = vadd.f32 %v2367, %v2368
    %v2370 = vmax.f32 %v2369, 0.0
    %v2371 = vadd.f32 %v2370, 1.0
    %v2372 = vlog2.pop %v2371
    %v2373 = vmul.f32 %v2372, 0.6931472
    %v2374 = vrcp.pop 0.6931472
    %v2375 = vmul.f32 %v2373, %v2374
    %v2377 = vmax.f32 %v2218, %v2265
    %vm2378 = vcmask 1045504
    %v2379 = vrot.slane %v2213, 2
    %v2380 = vrot.slane %v2214, 2
    %v2381 = vsel %vm2378, %v2379, %v2380
    %v2382 = vrot.slane %v2215, 2
    %v2383 = vsel %vm2378, %v2380, %v2382
    %v2384 = vrot.slane %v2216, 2
    %v2385 = vsel %vm2378, %v2382, %v2384
    %v2386 = vrot.slane %v2217, 2
    %v2387 = vsel %vm2378, %v2384, %v2386
    %v2388 = vrot.slane %v2218, 2
    %v2389 = vsel %vm2378, %v2386, %v2388
    %v2390 = vrot.slane %v2219, 2
    %v2391 = vsel %vm2378, %v2388, %v2390
    %v2398 = vmax.f32 %v2275, %v2381
    %v2399 = vmax.f32 %v2276, %v2383
    %v2400 = vmax.f32 %v2277, %v2385
    %v2401 = vmax.f32 %v2278, %v2387
    %v2402 = vmax.f32 %v2279, %v2389
    %v2403 = vmax.f32 %v2377, %v2391
    %v2409 = vrot.slane %v2398, 7
    %v2410 = vrot.slane %v2399, 7
    %v2411 = vsel %vm2287, %v2409, %v2410
    %v2412 = vrot.slane %v2400, 7
    %v2413 = vsel %vm2287, %v2410, %v2412
    %v2414 = vrot.slane %v2401, 7
    %v2415 = vsel %vm2287, %v2412, %v2414
    %v2416 = vrot.slane %v2402, 7
    %v2417 = vsel %vm2287, %v2414, %v2416
    %v2423 = vmax.f32 %v2398, %v2411
    %v2424 = vmax.f32 %v2399, %v2413
    %v2425 = vmax.f32 %v2400, %v2415
    %v2426 = vmax.f32 %v2401, %v2417
    %v2427 = vmax.f32 %v2402, %v2416
    %vm2429 = vcmask 1041408
    %v2430 = vrot.slane %v2399, 6
    %v2431 = vrot.slane %v2400, 6
    %v2432 = vsel %vm2429, %v2430, %v2431
    %v2433 = vrot.slane %v2401, 6
    %v2434 = vsel %vm2429, %v2431, %v2433
    %v2435 = vrot.slane %v2402, 6
    %v2436 = vsel %vm2429, %v2433, %v2435
    %v2437 = vrot.slane %v2403, 6
    %v2438 = vsel %vm2429, %v2435, %v2437
    %v2444 = vmax.f32 %v2423, %v2432
    %v2445 = vmax.f32 %v2424, %v2434
    %v2446 = vmax.f32 %v2425, %v2436
    %v2447 = vmax.f32 %v2426, %v2438
    %v2448 = vmax.f32 %v2427, %v2437
    %v2449 = vld [vmem:[%s7] sm:$0xff]
    %v2450 = vld [vmem:[%s7 + $0x8] sm:$0xff]
    %v2451 = vld [vmem:[%s7 + $0x10] sm:$0xff]
    %v2452 = vld [vmem:[%s7 + $0x18] sm:$0xff]
    %v2453 = vld [vmem:[%s7 + $0x20] sm:$0x1]
    %2455 = vset.pattern.permute.xlu0 1
    %2456 = vperm.xlu0 %2455, %v2449
    %v2457 = vpop.permute.xlu0 %2456
    %2460 = vset.pattern.permute.xlu0 1
    %2461 = vperm.xlu0 %2460, %v2450
    %v2462 = vpop.permute.xlu0 %2461
    %2465 = vset.pattern.permute.xlu0 1
    %2466 = vperm.xlu0 %2465, %v2451
    %v2467 = vpop.permute.xlu0 %2466
    %2470 = vset.pattern.permute.xlu0 1
    %2471 = vperm.xlu0 %2470, %v2452
    %v2472 = vpop.permute.xlu0 %2471
    %2475 = vset.pattern.permute.xlu0 1
    %2476 = vperm.xlu0 %2475, %v2453
    %v2477 = vpop.permute.xlu0 %2476
    %v2479 = vmul.f32 %v2444, %v2457
    %v2480 = vmul.f32 %v2445, %v2462
    %v2481 = vmul.f32 %v2446, %v2467
    %v2482 = vmul.f32 %v2447, %v2472
    %v2483 = vmul.f32 %v2448, %v2477
    %v2484 = vsel %vm1120, %v2479, 0.0
    %v2485 = vsel %vm1120, %v2480, 0.0
    %v2486 = vadd.f32 %v2484, %v2485
    %v2487 = vsel %vm1120, %v2481, 0.0
    %v2488 = vadd.f32 %v2486, %v2487
    %v2489 = vsel %vm1120, %v2482, 0.0
    %v2490 = vadd.f32 %v2488, %v2489
    %v2491 = vsel %vm2237, %v2483, 0.0
    %v2492 = vadd.f32 %v2490, %v2491
    %v2493 = vrot.slane %v2492, 4
    %v2494 = vadd.f32 %v2492, %v2493
    %v2495 = vrot.slane %v2494, 2
    %v2496 = vadd.f32 %v2494, %v2495
    %v2497 = vrot.slane %v2496, 1
    %v2498 = vadd.f32 %v2496, %v2497
    %v2499 = vmax.f32 %v2498, 0.0
    %v2500 = vadd.f32 %v2499, 1.0
    %v2501 = vlog2.pop %v2500
    %v2502 = vmul.f32 %v2501, 0.6931472
    %v2503 = vmul.f32 %v2502, %v2374
    %v2505 = vmax.f32 %v2377, %v2388
    %vm2506 = vcmask 1044480
    %v2507 = vrot.slane %v2213, 3
    %v2508 = vrot.slane %v2214, 3
    %v2509 = vsel %vm2506, %v2507, %v2508
    %v2510 = vrot.slane %v2215, 3
    %v2511 = vsel %vm2506, %v2508, %v2510
    %v2512 = vrot.slane %v2216, 3
    %v2513 = vsel %vm2506, %v2510, %v2512
    %v2514 = vrot.slane %v2217, 3
    %v2515 = vsel %vm2506, %v2512, %v2514
    %v2516 = vrot.slane %v2218, 3
    %v2517 = vsel %vm2506, %v2514, %v2516
    %v2518 = vrot.slane %v2219, 3
    %v2519 = vsel %vm2506, %v2516, %v2518
    %v2526 = vmax.f32 %v2398, %v2509
    %v2527 = vmax.f32 %v2399, %v2511
    %v2528 = vmax.f32 %v2400, %v2513
    %v2529 = vmax.f32 %v2401, %v2515
    %v2530 = vmax.f32 %v2402, %v2517
    %v2531 = vmax.f32 %v2505, %v2519
    %v2536 = vrot.slane %v2526, 7
    %v2537 = vrot.slane %v2527, 7
    %v2538 = vsel %vm2287, %v2536, %v2537
    %v2539 = vrot.slane %v2528, 7
    %v2540 = vsel %vm2287, %v2537, %v2539
    %v2541 = vrot.slane %v2529, 7
    %v2542 = vsel %vm2287, %v2539, %v2541
    %v2547 = vmax.f32 %v2526, %v2538
    %v2548 = vmax.f32 %v2527, %v2540
    %v2549 = vmax.f32 %v2528, %v2542
    %v2550 = vmax.f32 %v2529, %v2541
    %v2552 = vrot.slane %v2527, 6
    %v2553 = vrot.slane %v2528, 6
    %v2554 = vsel %vm2429, %v2552, %v2553
    %v2555 = vrot.slane %v2529, 6
    %v2556 = vsel %vm2429, %v2553, %v2555
    %v2557 = vrot.slane %v2530, 6
    %v2558 = vsel %vm2429, %v2555, %v2557
    %v2563 = vmax.f32 %v2547, %v2554
    %v2564 = vmax.f32 %v2548, %v2556
    %v2565 = vmax.f32 %v2549, %v2558
    %v2566 = vmax.f32 %v2550, %v2557
    %v2568 = vrot.slane %v2528, 5
    %v2569 = vrot.slane %v2529, 5
    %v2570 = vsel %vm94, %v2568, %v2569
    %v2571 = vrot.slane %v2530, 5
    %v2572 = vsel %vm94, %v2569, %v2571
    %v2573 = vrot.slane %v2531, 5
    %v2574 = vsel %vm94, %v2571, %v2573
    %v2579 = vmax.f32 %v2563, %v2570
    %v2580 = vmax.f32 %v2564, %v2572
    %v2581 = vmax.f32 %v2565, %v2574
    %v2582 = vmax.f32 %v2566, %v2573
    %v2583 = vld [vmem:[%s7] sm:$0xff]
    %v2584 = vld [vmem:[%s7 + $0x8] sm:$0xff]
    %v2585 = vld [vmem:[%s7 + $0x10] sm:$0xff]
    %v2586 = vld [vmem:[%s7 + $0x18] sm:$0x1]
    %2588 = vset.pattern.permute.xlu0 2
    %2589 = vperm.xlu0 %2588, %v2583
    %v2590 = vpop.permute.xlu0 %2589
    %2593 = vset.pattern.permute.xlu0 2
    %2594 = vperm.xlu0 %2593, %v2584
    %v2595 = vpop.permute.xlu0 %2594
    %2598 = vset.pattern.permute.xlu0 2
    %2599 = vperm.xlu0 %2598, %v2585
    %v2600 = vpop.permute.xlu0 %2599
    %2603 = vset.pattern.permute.xlu0 2
    %2604 = vperm.xlu0 %2603, %v2586
    %v2605 = vpop.permute.xlu0 %2604
    %v2607 = vmul.f32 %v2579, %v2590
    %v2608 = vmul.f32 %v2580, %v2595
    %v2609 = vmul.f32 %v2581, %v2600
    %v2610 = vmul.f32 %v2582, %v2605
    %v2611 = vsel %vm1120, %v2607, 0.0
    %v2612 = vsel %vm1120, %v2608, 0.0
    %v2613 = vadd.f32 %v2611, %v2612
    %v2614 = vsel %vm1120, %v2609, 0.0
    %v2615 = vadd.f32 %v2613, %v2614
    %v2616 = vsel %vm2237, %v2610, 0.0
    %v2617 = vadd.f32 %v2615, %v2616
    %v2618 = vrot.slane %v2617, 4
    %v2619 = vadd.f32 %v2617, %v2618
    %v2620 = vrot.slane %v2619, 2
    %v2621 = vadd.f32 %v2619, %v2620
    %v2622 = vrot.slane %v2621, 1
    %v2623 = vadd.f32 %v2621, %v2622
    %v2624 = vmax.f32 %v2623, 0.0
    %v2625 = vadd.f32 %v2624, 1.0
    %v2626 = vlog2.pop %v2625
    %v2627 = vmul.f32 %v2626, 0.6931472
    %v2628 = vmul.f32 %v2627, %v2374
    %v2630 = vmax.f32 %v2505, %v2516
    %vm2631 = vcmask 1043456
    %v2632 = vrot.slane %v2213, 4
    %v2633 = vrot.slane %v2214, 4
    %v2634 = vsel %vm2631, %v2632, %v2633
    %v2635 = vrot.slane %v2215, 4
    %v2636 = vsel %vm2631, %v2633, %v2635
    %v2637 = vrot.slane %v2216, 4
    %v2638 = vsel %vm2631, %v2635, %v2637
    %v2639 = vrot.slane %v2217, 4
    %v2640 = vsel %vm2631, %v2637, %v2639
    %v2641 = vrot.slane %v2218, 4
    %v2642 = vsel %vm2631, %v2639, %v2641
    %v2643 = vrot.slane %v2219, 4
    %v2644 = vsel %vm2631, %v2641, %v2643
    %v2651 = vmax.f32 %v2526, %v2634
    %v2652 = vmax.f32 %v2527, %v2636
    %v2653 = vmax.f32 %v2528, %v2638
    %v2654 = vmax.f32 %v2529, %v2640
    %v2655 = vmax.f32 %v2530, %v2642
    %v2656 = vmax.f32 %v2630, %v2644
    %v2660 = vrot.slane %v2651, 7
    %v2661 = vrot.slane %v2652, 7
    %v2662 = vsel %vm2287, %v2660, %v2661
    %v2663 = vrot.slane %v2653, 7
    %v2664 = vsel %vm2287, %v2661, %v2663
    %v2668 = vmax.f32 %v2651, %v2662
    %v2669 = vmax.f32 %v2652, %v2664
    %v2670 = vmax.f32 %v2653, %v2663
    %v2672 = vrot.slane %v2652, 6
    %v2673 = vrot.slane %v2653, 6
    %v2674 = vsel %vm2429, %v2672, %v2673
    %v2675 = vrot.slane %v2654, 6
    %v2676 = vsel %vm2429, %v2673, %v2675
    %v2680 = vmax.f32 %v2668, %v2674
    %v2681 = vmax.f32 %v2669, %v2676
    %v2682 = vmax.f32 %v2670, %v2675
    %v2684 = vrot.slane %v2653, 5
    %v2685 = vrot.slane %v2654, 5
    %v2686 = vsel %vm94, %v2684, %v2685
    %v2687 = vrot.slane %v2655, 5
    %v2688 = vsel %vm94, %v2685, %v2687
    %v2692 = vmax.f32 %v2680, %v2686
    %v2693 = vmax.f32 %v2681, %v2688
    %v2694 = vmax.f32 %v2682, %v2687
    %v2696 = vrot.slane %v2654, 4
    %v2697 = vrot.slane %v2655, 4
    %v2698 = vsel %vm2631, %v2696, %v2697
    %v2699 = vrot.slane %v2656, 4
    %v2700 = vsel %vm2631, %v2697, %v2699
    %v2704 = vmax.f32 %v2692, %v2698
    %v2705 = vmax.f32 %v2693, %v2700
    %v2706 = vmax.f32 %v2694, %v2699
    %v2707 = vld [vmem:[%s7] sm:$0xff]
    %v2708 = vld [vmem:[%s7 + $0x8] sm:$0xff]
    %v2709 = vld [vmem:[%s7 + $0x10] sm:$0x1]
    %2711 = vset.pattern.permute.xlu0 3
    %2712 = vperm.xlu0 %2711, %v2707
    %v2713 = vpop.permute.xlu0 %2712
    %2716 = vset.pattern.permute.xlu0 3
    %2717 = vperm.xlu0 %2716, %v2708
    %v2718 = vpop.permute.xlu0 %2717
    %2721 = vset.pattern.permute.xlu0 3
    %2722 = vperm.xlu0 %2721, %v2709
    %v2723 = vpop.permute.xlu0 %2722
    %v2725 = vmul.f32 %v2704, %v2713
    %v2726 = vmul.f32 %v2705, %v2718
    %v2727 = vmul.f32 %v2706, %v2723
    %v2728 = vsel %vm1120, %v2725, 0.0
    %v2729 = vsel %vm1120, %v2726, 0.0
    %v2730 = vadd.f32 %v2728, %v2729
    %v2731 = vsel %vm2237, %v2727, 0.0
    %v2732 = vadd.f32 %v2730, %v2731
    %v2733 = vrot.slane %v2732, 4
    %v2734 = vadd.f32 %v2732, %v2733
    %v2735 = vrot.slane %v2734, 2
    %v2736 = vadd.f32 %v2734, %v2735
    %v2737 = vrot.slane %v2736, 1
    %v2738 = vadd.f32 %v2736, %v2737
    %v2739 = vmax.f32 %v2738, 0.0
    %v2740 = vadd.f32 %v2739, 1.0
    %v2741 = vlog2.pop %v2740
    %v2742 = vmul.f32 %v2741, 0.6931472
    %v2743 = vmul.f32 %v2742, %v2374
    %v2745 = vmax.f32 %v2630, %v2641
    %v2746 = vrot.slane %v2213, 5
    %v2747 = vrot.slane %v2214, 5
    %v2748 = vsel %vm94, %v2746, %v2747
    %v2749 = vrot.slane %v2215, 5
    %v2750 = vsel %vm94, %v2747, %v2749
    %v2751 = vrot.slane %v2216, 5
    %v2752 = vsel %vm94, %v2749, %v2751
    %v2753 = vrot.slane %v2217, 5
    %v2754 = vsel %vm94, %v2751, %v2753
    %v2755 = vrot.slane %v2218, 5
    %v2756 = vsel %vm94, %v2753, %v2755
    %v2757 = vrot.slane %v2219, 5
    %v2758 = vsel %vm94, %v2755, %v2757
    %v2765 = vmax.f32 %v2651, %v2748
    %v2766 = vmax.f32 %v2652, %v2750
    %v2767 = vmax.f32 %v2653, %v2752
    %v2768 = vmax.f32 %v2654, %v2754
    %v2769 = vmax.f32 %v2655, %v2756
    %v2770 = vmax.f32 %v2745, %v2758
    %v2773 = vrot.slane %v2765, 7
    %v2774 = vrot.slane %v2766, 7
    %v2775 = vsel %vm2287, %v2773, %v2774
    %v2778 = vmax.f32 %v2765, %v2775
    %v2779 = vmax.f32 %v2766, %v2774
    %v2781 = vrot.slane %v2766, 6
    %v2782 = vrot.slane %v2767, 6
    %v2783 = vsel %vm2429, %v2781, %v2782
    %v2786 = vmax.f32 %v2778, %v2783
    %v2787 = vmax.f32 %v2779, %v2782
    %v2789 = vrot.slane %v2767, 5
    %v2790 = vrot.slane %v2768, 5
    %v2791 = vsel %vm94, %v2789, %v2790
    %v2794 = vmax.f32 %v2786, %v2791
    %v2795 = vmax.f32 %v2787, %v2790
    %v2797 = vrot.slane %v2768, 4
    %v2798 = vrot.slane %v2769, 4
    %v2799 = vsel %vm2631, %v2797, %v2798
    %v2802 = vmax.f32 %v2794, %v2799
    %v2803 = vmax.f32 %v2795, %v2798
    %v2805 = vrot.slane %v2769, 3
    %v2806 = vrot.slane %v2770, 3
    %v2807 = vsel %vm2506, %v2805, %v2806
    %v2810 = vmax.f32 %v2802, %v2807
    %v2811 = vmax.f32 %v2803, %v2806
    %v2812 = vld [vmem:[%s7] sm:$0xff]
    %v2813 = vld [vmem:[%s7 + $0x8] sm:$0x1]
    %2815 = vset.pattern.permute.xlu0 4
    %2816 = vperm.xlu0 %2815, %v2812
    %v2817 = vpop.permute.xlu0 %2816
    %2820 = vset.pattern.permute.xlu0 4
    %2821 = vperm.xlu0 %2820, %v2813
    %v2822 = vpop.permute.xlu0 %2821
    %v2824 = vmul.f32 %v2810, %v2817
    %v2825 = vmul.f32 %v2811, %v2822
    %v2826 = vsel %vm1120, %v2824, 0.0
    %v2827 = vsel %vm2237, %v2825, 0.0
    %v2828 = vadd.f32 %v2826, %v2827
    %v2829 = vrot.slane %v2828, 4
    %v2830 = vadd.f32 %v2828, %v2829
    %v2831 = vrot.slane %v2830, 2
    %v2832 = vadd.f32 %v2830, %v2831
    %v2833 = vrot.slane %v2832, 1
    %v2834 = vadd.f32 %v2832, %v2833
    %v2835 = vmax.f32 %v2834, 0.0
    %v2836 = vadd.f32 %v2835, 1.0
    %v2837 = vlog2.pop %v2836
    %v2838 = vmul.f32 %v2837, 0.6931472
    %v2839 = vmul.f32 %v2838, %v2374
    %v2840 = vadd.f32 %v2375, 0.0
    %v2841 = vadd.f32 %v2840, %v2503
    %v2842 = vadd.f32 %v2841, %v2628
    %v2843 = vadd.f32 %v2842, %v2743
    %v2844 = vadd.f32 %v2843, %v2839
    %v2845 = vmul.f32 %v2844, 0.2
    %v2846 = vsub.f32 %v2375, %v2845
    %v2847 = vmul.f32 %v2846, 0.8983706
    %v2848 = vadd.f32 %v2847, 0.0
    %v2849 = vsub.f32 %v2503, %v2845
    %v2850 = vmul.f32 %v2849, 0.3134081
    %v2851 = vadd.f32 %v2848, %v2850
    %v2852 = vsub.f32 %v2628, %v2845
    %v2853 = vmul.f32 %v2852, -0.101629384
    %v2854 = vadd.f32 %v2851, %v2853
    %v2855 = vsub.f32 %v2743, %v2845
    %v2856 = vmul.f32 %v2855, -0.4235575
    %v2857 = vadd.f32 %v2854, %v2856
    %v2858 = vsub.f32 %v2839, %v2845
    %v2859 = vmul.f32 %v2858, -0.68659186
    %v2860 = vadd.f32 %v2857, %v2859
    %v2861 = vrcp.pop 1.5664322
    %v2862 = vmul.f32 %v2860, %v2861
    %v2863 = vmul.f32 %v2247, %v2862
    %v2870 = vrot.slane %v2220, 1
    %v2871 = vsel %vm2255, %v2267, %v2870
    %v2872 = vrot.slane %v2221, 1
    %v2873 = vsel %vm2255, %v2870, %v2872
    %v2874 = vrot.slane %v2222, 1
    %v2875 = vsel %vm2255, %v2872, %v2874
    %v2876 = vrot.slane %v2223, 1
    %v2877 = vsel %vm2255, %v2874, %v2876
    %v2878 = vrot.slane %v2224, 1
    %v2879 = vsel %vm2255, %v2876, %v2878
    %v2880 = vrot.slane %v2225, 1
    %v2881 = vsel %vm2255, %v2878, %v2880
    %v2889 = vsel %vm1120, %v2871, 0.0
    %v2890 = vsel %vm1120, %v2873, 0.0
    %v2891 = vadd.f32 %v2889, %v2890
    %v2892 = vsel %vm1120, %v2875, 0.0
    %v2893 = vadd.f32 %v2891, %v2892
    %v2894 = vsel %vm1120, %v2877, 0.0
    %v2895 = vadd.f32 %v2893, %v2894
    %v2896 = vsel %vm1120, %v2879, 0.0
    %v2897 = vadd.f32 %v2895, %v2896
    %v2898 = vsel %vm1120, %v2881, 0.0
    %v2899 = vadd.f32 %v2897, %v2898
    %v2900 = vsel %vm2237, %v2880, 0.0
    %v2901 = vadd.f32 %v2899, %v2900
    %v2902 = vrot.slane %v2901, 4
    %v2903 = vadd.f32 %v2901, %v2902
    %v2904 = vrot.slane %v2903, 2
    %v2905 = vadd.f32 %v2903, %v2904
    %v2906 = vrot.slane %v2905, 1
    %v2907 = vadd.f32 %v2905, %v2906
    %v2908 = vmul.f32 %v2907, %v2246
    %v2909 = vmax.f32 %v2219, %v2871
    %v2910 = vmax.f32 %v2220, %v2873
    %v2911 = vmax.f32 %v2221, %v2875
    %v2912 = vmax.f32 %v2222, %v2877
    %v2913 = vmax.f32 %v2223, %v2879
    %v2914 = vmax.f32 %v2224, %v2881
    %v2915 = vmax.f32 %v2225, %v2880
    %v2922 = vrot.slane %v2910, 7
    %v2923 = vrot.slane %v2911, 7
    %v2924 = vsel %vm2287, %v2922, %v2923
    %v2925 = vrot.slane %v2912, 7
    %v2926 = vsel %vm2287, %v2923, %v2925
    %v2927 = vrot.slane %v2913, 7
    %v2928 = vsel %vm2287, %v2925, %v2927
    %v2929 = vrot.slane %v2914, 7
    %v2930 = vsel %vm2287, %v2927, %v2929
    %v2931 = vrot.slane %v2915, 7
    %v2932 = vsel %vm2287, %v2929, %v2931
    %v2939 = vmax.f32 %v2909, %v2922
    %v2940 = vmax.f32 %v2910, %v2924
    %v2941 = vmax.f32 %v2911, %v2926
    %v2942 = vmax.f32 %v2912, %v2928
    %v2943 = vmax.f32 %v2913, %v2930
    %v2944 = vmax.f32 %v2914, %v2932
    %v2945 = vrot.slane %v2320, 7
    %v2946 = vrot.slane %v2325, 7
    %v2947 = vsel %vm2287, %v2945, %v2946
    %v2948 = vrot.slane %v2330, 7
    %v2949 = vsel %vm2287, %v2946, %v2948
    %v2950 = vrot.slane %v2335, 7
    %v2951 = vsel %vm2287, %v2948, %v2950
    %v2952 = vrot.slane %v2340, 7
    %v2953 = vsel %vm2287, %v2950, %v2952
    %v2954 = vrot.slane %v2345, 7
    %v2955 = vsel %vm2287, %v2952, %v2954
    %v2962 = vmul.f32 %v2939, %v2945
    %v2963 = vmul.f32 %v2940, %v2947
    %v2964 = vmul.f32 %v2941, %v2949
    %v2965 = vmul.f32 %v2942, %v2951
    %v2966 = vmul.f32 %v2943, %v2953
    %v2967 = vmul.f32 %v2944, %v2955
    %v2974 = vrot.slane %v2962, 1
    %v2975 = vrot.slane %v2963, 1
    %v2976 = vsel %vm2255, %v2974, %v2975
    %v2977 = vrot.slane %v2964, 1
    %v2978 = vsel %vm2255, %v2975, %v2977
    %v2979 = vrot.slane %v2965, 1
    %v2980 = vsel %vm2255, %v2977, %v2979
    %v2981 = vrot.slane %v2966, 1
    %v2982 = vsel %vm2255, %v2979, %v2981
    %v2983 = vrot.slane %v2967, 1
    %v2984 = vsel %vm2255, %v2981, %v2983
    %v2991 = vsel %vm1120, %v2976, 0.0
    %v2992 = vsel %vm1120, %v2978, 0.0
    %v2993 = vadd.f32 %v2991, %v2992
    %v2994 = vsel %vm1120, %v2980, 0.0
    %v2995 = vadd.f32 %v2993, %v2994
    %v2996 = vsel %vm1120, %v2982, 0.0
    %v2997 = vadd.f32 %v2995, %v2996
    %v2998 = vsel %vm1120, %v2984, 0.0
    %v2999 = vadd.f32 %v2997, %v2998
    %v3000 = vsel %vm2237, %v2983, 0.0
    %v3001 = vadd.f32 %v2999, %v3000
    %v3002 = vrot.slane %v3001, 4
    %v3003 = vadd.f32 %v3001, %v3002
    %v3004 = vrot.slane %v3003, 2
    %v3005 = vadd.f32 %v3003, %v3004
    %v3006 = vrot.slane %v3005, 1
    %v3007 = vadd.f32 %v3005, %v3006
    %v3008 = vmax.f32 %v3007, 0.0
    %v3009 = vadd.f32 %v3008, 1.0
    %v3010 = vlog2.pop %v3009
    %v3011 = vmul.f32 %v3010, 0.6931472
    %v3012 = vmul.f32 %v3011, %v2374
    %v3013 = vrot.slane %v2220, 2
    %v3014 = vsel %vm2378, %v2390, %v3013
    %v3015 = vrot.slane %v2221, 2
    %v3016 = vsel %vm2378, %v3013, %v3015
    %v3017 = vrot.slane %v2222, 2
    %v3018 = vsel %vm2378, %v3015, %v3017
    %v3019 = vrot.slane %v2223, 2
    %v3020 = vsel %vm2378, %v3017, %v3019
    %v3021 = vrot.slane %v2224, 2
    %v3022 = vsel %vm2378, %v3019, %v3021
    %v3023 = vrot.slane %v2225, 2
    %v3024 = vsel %vm2378, %v3021, %v3023
    %v3031 = vmax.f32 %v2909, %v3014
    %v3032 = vmax.f32 %v2910, %v3016
    %v3033 = vmax.f32 %v2911, %v3018
    %v3034 = vmax.f32 %v2912, %v3020
    %v3035 = vmax.f32 %v2913, %v3022
    %v3036 = vmax.f32 %v2914, %v3024
    %v3042 = vrot.slane %v3032, 7
    %v3043 = vrot.slane %v3033, 7
    %v3044 = vsel %vm2287, %v3042, %v3043
    %v3045 = vrot.slane %v3034, 7
    %v3046 = vsel %vm2287, %v3043, %v3045
    %v3047 = vrot.slane %v3035, 7
    %v3048 = vsel %vm2287, %v3045, %v3047
    %v3049 = vrot.slane %v3036, 7
    %v3050 = vsel %vm2287, %v3047, %v3049
    %v3056 = vmax.f32 %v3031, %v3042
    %v3057 = vmax.f32 %v3032, %v3044
    %v3058 = vmax.f32 %v3033, %v3046
    %v3059 = vmax.f32 %v3034, %v3048
    %v3060 = vmax.f32 %v3035, %v3050
    %v3061 = vrot.slane %v3032, 6
    %v3062 = vrot.slane %v3033, 6
    %v3063 = vsel %vm2429, %v3061, %v3062
    %v3064 = vrot.slane %v3034, 6
    %v3065 = vsel %vm2429, %v3062, %v3064
    %v3066 = vrot.slane %v3035, 6
    %v3067 = vsel %vm2429, %v3064, %v3066
    %v3068 = vrot.slane %v3036, 6
    %v3069 = vsel %vm2429, %v3066, %v3068
    %v3075 = vmax.f32 %v3056, %v3063
    %v3076 = vmax.f32 %v3057, %v3065
    %v3077 = vmax.f32 %v3058, %v3067
    %v3078 = vmax.f32 %v3059, %v3069
    %v3079 = vmax.f32 %v3060, %v3068
    %v3080 = vrot.slane %v2457, 7
    %v3081 = vrot.slane %v2462, 7
    %v3082 = vsel %vm2287, %v3080, %v3081
    %v3083 = vrot.slane %v2467, 7
    %v3084 = vsel %vm2287, %v3081, %v3083
    %v3085 = vrot.slane %v2472, 7
    %v3086 = vsel %vm2287, %v3083, %v3085
    %v3087 = vrot.slane %v2477, 7
    %v3088 = vsel %vm2287, %v3085, %v3087
    %v3094 = vmul.f32 %v3075, %v3080
    %v3095 = vmul.f32 %v3076, %v3082
    %v3096 = vmul.f32 %v3077, %v3084
    %v3097 = vmul.f32 %v3078, %v3086
    %v3098 = vmul.f32 %v3079, %v3088
    %v3104 = vrot.slane %v3094, 1
    %v3105 = vrot.slane %v3095, 1
    %v3106 = vsel %vm2255, %v3104, %v3105
    %v3107 = vrot.slane %v3096, 1
    %v3108 = vsel %vm2255, %v3105, %v3107
    %v3109 = vrot.slane %v3097, 1
    %v3110 = vsel %vm2255, %v3107, %v3109
    %v3111 = vrot.slane %v3098, 1
    %v3112 = vsel %vm2255, %v3109, %v3111
    %v3118 = vsel %vm1120, %v3106, 0.0
    %v3119 = vsel %vm1120, %v3108, 0.0
    %v3120 = vadd.f32 %v3118, %v3119
    %v3121 = vsel %vm1120, %v3110, 0.0
    %v3122 = vadd.f32 %v3120, %v3121
    %v3123 = vsel %vm1120, %v3112, 0.0
    %v3124 = vadd.f32 %v3122, %v3123
    %v3125 = vsel %vm2237, %v3111, 0.0
    %v3126 = vadd.f32 %v3124, %v3125
    %v3127 = vrot.slane %v3126, 4
    %v3128 = vadd.f32 %v3126, %v3127
    %v3129 = vrot.slane %v3128, 2
    %v3130 = vadd.f32 %v3128, %v3129
    %v3131 = vrot.slane %v3130, 1
    %v3132 = vadd.f32 %v3130, %v3131
    %v3133 = vmax.f32 %v3132, 0.0
    %v3134 = vadd.f32 %v3133, 1.0
    %v3135 = vlog2.pop %v3134
    %v3136 = vmul.f32 %v3135, 0.6931472
    %v3137 = vmul.f32 %v3136, %v2374
    %v3139 = vmax.f32 %v2224, %v2878
    %v3140 = vmax.f32 %v3139, %v3024
    %v3141 = vrot.slane %v2220, 3
    %v3142 = vsel %vm2506, %v2518, %v3141
    %v3143 = vrot.slane %v2221, 3
    %v3144 = vsel %vm2506, %v3141, %v3143
    %v3145 = vrot.slane %v2222, 3
    %v3146 = vsel %vm2506, %v3143, %v3145
    %v3147 = vrot.slane %v2223, 3
    %v3148 = vsel %vm2506, %v3145, %v3147
    %v3149 = vrot.slane %v2224, 3
    %v3150 = vsel %vm2506, %v3147, %v3149
    %v3151 = vrot.slane %v2225, 3
    %v3152 = vsel %vm2506, %v3149, %v3151
    %v3159 = vmax.f32 %v3031, %v3142
    %v3160 = vmax.f32 %v3032, %v3144
    %v3161 = vmax.f32 %v3033, %v3146
    %v3162 = vmax.f32 %v3034, %v3148
    %v3163 = vmax.f32 %v3035, %v3150
    %v3164 = vmax.f32 %v3140, %v3152
    %v3169 = vrot.slane %v3160, 7
    %v3170 = vrot.slane %v3161, 7
    %v3171 = vsel %vm2287, %v3169, %v3170
    %v3172 = vrot.slane %v3162, 7
    %v3173 = vsel %vm2287, %v3170, %v3172
    %v3174 = vrot.slane %v3163, 7
    %v3175 = vsel %vm2287, %v3172, %v3174
    %v3180 = vmax.f32 %v3159, %v3169
    %v3181 = vmax.f32 %v3160, %v3171
    %v3182 = vmax.f32 %v3161, %v3173
    %v3183 = vmax.f32 %v3162, %v3175
    %v3184 = vrot.slane %v3160, 6
    %v3185 = vrot.slane %v3161, 6
    %v3186 = vsel %vm2429, %v3184, %v3185
    %v3187 = vrot.slane %v3162, 6
    %v3188 = vsel %vm2429, %v3185, %v3187
    %v3189 = vrot.slane %v3163, 6
    %v3190 = vsel %vm2429, %v3187, %v3189
    %v3195 = vmax.f32 %v3180, %v3186
    %v3196 = vmax.f32 %v3181, %v3188
    %v3197 = vmax.f32 %v3182, %v3190
    %v3198 = vmax.f32 %v3183, %v3189
    %v3200 = vrot.slane %v3161, 5
    %v3201 = vrot.slane %v3162, 5
    %v3202 = vsel %vm94, %v3200, %v3201
    %v3203 = vrot.slane %v3163, 5
    %v3204 = vsel %vm94, %v3201, %v3203
    %v3205 = vrot.slane %v3164, 5
    %v3206 = vsel %vm94, %v3203, %v3205
    %v3211 = vmax.f32 %v3195, %v3202
    %v3212 = vmax.f32 %v3196, %v3204
    %v3213 = vmax.f32 %v3197, %v3206
    %v3214 = vmax.f32 %v3198, %v3205
    %v3215 = vrot.slane %v2590, 7
    %v3216 = vrot.slane %v2595, 7
    %v3217 = vsel %vm2287, %v3215, %v3216
    %v3218 = vrot.slane %v2600, 7
    %v3219 = vsel %vm2287, %v3216, %v3218
    %v3220 = vrot.slane %v2605, 7
    %v3221 = vsel %vm2287, %v3218, %v3220
    %v3226 = vmul.f32 %v3211, %v3215
    %v3227 = vmul.f32 %v3212, %v3217
    %v3228 = vmul.f32 %v3213, %v3219
    %v3229 = vmul.f32 %v3214, %v3221
    %v3234 = vrot.slane %v3226, 1
    %v3235 = vrot.slane %v3227, 1
    %v3236 = vsel %vm2255, %v3234, %v3235
    %v3237 = vrot.slane %v3228, 1
    %v3238 = vsel %vm2255, %v3235, %v3237
    %v3239 = vrot.slane %v3229, 1
    %v3240 = vsel %vm2255, %v3237, %v3239
    %v3245 = vsel %vm1120, %v3236, 0.0
    %v3246 = vsel %vm1120, %v3238, 0.0
    %v3247 = vadd.f32 %v3245, %v3246
    %v3248 = vsel %vm1120, %v3240, 0.0
    %v3249 = vadd.f32 %v3247, %v3248
    %v3250 = vsel %vm2237, %v3239, 0.0
    %v3251 = vadd.f32 %v3249, %v3250
    %v3252 = vrot.slane %v3251, 4
    %v3253 = vadd.f32 %v3251, %v3252
    %v3254 = vrot.slane %v3253, 2
    %v3255 = vadd.f32 %v3253, %v3254
    %v3256 = vrot.slane %v3255, 1
    %v3257 = vadd.f32 %v3255, %v3256
    %v3258 = vmax.f32 %v3257, 0.0
    %v3259 = vadd.f32 %v3258, 1.0
    %v3260 = vlog2.pop %v3259
    %v3261 = vmul.f32 %v3260, 0.6931472
    %v3262 = vmul.f32 %v3261, %v2374
    %v3264 = vmax.f32 %v3139, %v3021
    %v3265 = vmax.f32 %v3264, %v3152
    %v3266 = vrot.slane %v2220, 4
    %v3267 = vsel %vm2631, %v2643, %v3266
    %v3268 = vrot.slane %v2221, 4
    %v3269 = vsel %vm2631, %v3266, %v3268
    %v3270 = vrot.slane %v2222, 4
    %v3271 = vsel %vm2631, %v3268, %v3270
    %v3272 = vrot.slane %v2223, 4
    %v3273 = vsel %vm2631, %v3270, %v3272
    %v3274 = vrot.slane %v2224, 4
    %v3275 = vsel %vm2631, %v3272, %v3274
    %v3276 = vrot.slane %v2225, 4
    %v3277 = vsel %vm2631, %v3274, %v3276
    %v3284 = vmax.f32 %v3159, %v3267
    %v3285 = vmax.f32 %v3160, %v3269
    %v3286 = vmax.f32 %v3161, %v3271
    %v3287 = vmax.f32 %v3162, %v3273
    %v3288 = vmax.f32 %v3163, %v3275
    %v3289 = vmax.f32 %v3265, %v3277
    %v3293 = vrot.slane %v3285, 7
    %v3294 = vrot.slane %v3286, 7
    %v3295 = vsel %vm2287, %v3293, %v3294
    %v3296 = vrot.slane %v3287, 7
    %v3297 = vsel %vm2287, %v3294, %v3296
    %v3301 = vmax.f32 %v3284, %v3293
    %v3302 = vmax.f32 %v3285, %v3295
    %v3303 = vmax.f32 %v3286, %v3297
    %v3304 = vrot.slane %v3285, 6
    %v3305 = vrot.slane %v3286, 6
    %v3306 = vsel %vm2429, %v3304, %v3305
    %v3307 = vrot.slane %v3287, 6
    %v3308 = vsel %vm2429, %v3305, %v3307
    %v3312 = vmax.f32 %v3301, %v3306
    %v3313 = vmax.f32 %v3302, %v3308
    %v3314 = vmax.f32 %v3303, %v3307
    %v3316 = vrot.slane %v3286, 5
    %v3317 = vrot.slane %v3287, 5
    %v3318 = vsel %vm94, %v3316, %v3317
    %v3319 = vrot.slane %v3288, 5
    %v3320 = vsel %vm94, %v3317, %v3319
    %v3324 = vmax.f32 %v3312, %v3318
    %v3325 = vmax.f32 %v3313, %v3320
    %v3326 = vmax.f32 %v3314, %v3319
    %v3328 = vrot.slane %v3287, 4
    %v3329 = vrot.slane %v3288, 4
    %v3330 = vsel %vm2631, %v3328, %v3329
    %v3331 = vrot.slane %v3289, 4
    %v3332 = vsel %vm2631, %v3329, %v3331
    %v3336 = vmax.f32 %v3324, %v3330
    %v3337 = vmax.f32 %v3325, %v3332
    %v3338 = vmax.f32 %v3326, %v3331
    %v3339 = vrot.slane %v2713, 7
    %v3340 = vrot.slane %v2718, 7
    %v3341 = vsel %vm2287, %v3339, %v3340
    %v3342 = vrot.slane %v2723, 7
    %v3343 = vsel %vm2287, %v3340, %v3342
    %v3347 = vmul.f32 %v3336, %v3339
    %v3348 = vmul.f32 %v3337, %v3341
    %v3349 = vmul.f32 %v3338, %v3343
    %v3353 = vrot.slane %v3347, 1
    %v3354 = vrot.slane %v3348, 1
    %v3355 = vsel %vm2255, %v3353, %v3354
    %v3356 = vrot.slane %v3349, 1
    %v3357 = vsel %vm2255, %v3354, %v3356
    %v3361 = vsel %vm1120, %v3355, 0.0
    %v3362 = vsel %vm1120, %v3357, 0.0
    %v3363 = vadd.f32 %v3361, %v3362
    %v3364 = vsel %vm2237, %v3356, 0.0
    %v3365 = vadd.f32 %v3363, %v3364
    %v3366 = vrot.slane %v3365, 4
    %v3367 = vadd.f32 %v3365, %v3366
    %v3368 = vrot.slane %v3367, 2
    %v3369 = vadd.f32 %v3367, %v3368
    %v3370 = vrot.slane %v3369, 1
    %v3371 = vadd.f32 %v3369, %v3370
    %v3372 = vmax.f32 %v3371, 0.0
    %v3373 = vadd.f32 %v3372, 1.0
    %v3374 = vlog2.pop %v3373
    %v3375 = vmul.f32 %v3374, 0.6931472
    %v3376 = vmul.f32 %v3375, %v2374
    %v3378 = vmax.f32 %v3264, %v3149
    %v3379 = vmax.f32 %v3378, %v3277
    %v3380 = vrot.slane %v2220, 5
    %v3381 = vsel %vm94, %v2757, %v3380
    %v3382 = vrot.slane %v2221, 5
    %v3383 = vsel %vm94, %v3380, %v3382
    %v3384 = vrot.slane %v2222, 5
    %v3385 = vsel %vm94, %v3382, %v3384
    %v3386 = vrot.slane %v2223, 5
    %v3387 = vsel %vm94, %v3384, %v3386
    %v3388 = vrot.slane %v2224, 5
    %v3389 = vsel %vm94, %v3386, %v3388
    %v3390 = vrot.slane %v2225, 5
    %v3391 = vsel %vm94, %v3388, %v3390
    %v3398 = vmax.f32 %v3284, %v3381
    %v3399 = vmax.f32 %v3285, %v3383
    %v3400 = vmax.f32 %v3286, %v3385
    %v3401 = vmax.f32 %v3287, %v3387
    %v3402 = vmax.f32 %v3288, %v3389
    %v3403 = vmax.f32 %v3379, %v3391
    %v3406 = vrot.slane %v3399, 7
    %v3407 = vrot.slane %v3400, 7
    %v3408 = vsel %vm2287, %v3406, %v3407
    %v3411 = vmax.f32 %v3398, %v3406
    %v3412 = vmax.f32 %v3399, %v3408
    %v3413 = vrot.slane %v3399, 6
    %v3414 = vrot.slane %v3400, 6
    %v3415 = vsel %vm2429, %v3413, %v3414
    %v3418 = vmax.f32 %v3411, %v3415
    %v3419 = vmax.f32 %v3412, %v3414
    %v3421 = vrot.slane %v3400, 5
    %v3422 = vrot.slane %v3401, 5
    %v3423 = vsel %vm94, %v3421, %v3422
    %v3426 = vmax.f32 %v3418, %v3423
    %v3427 = vmax.f32 %v3419, %v3422
    %v3429 = vrot.slane %v3401, 4
    %v3430 = vrot.slane %v3402, 4
    %v3431 = vsel %vm2631, %v3429, %v3430
    %v3434 = vmax.f32 %v3426, %v3431
    %v3435 = vmax.f32 %v3427, %v3430
    %v3437 = vrot.slane %v3402, 3
    %v3438 = vrot.slane %v3403, 3
    %v3439 = vsel %vm2506, %v3437, %v3438
    %v3442 = vmax.f32 %v3434, %v3439
    %v3443 = vmax.f32 %v3435, %v3438
    %v3444 = vrot.slane %v2817, 7
    %v3445 = vrot.slane %v2822, 7
    %v3446 = vsel %vm2287, %v3444, %v3445
    %v3449 = vmul.f32 %v3442, %v3444
    %v3450 = vmul.f32 %v3443, %v3446
    %v3453 = vrot.slane %v3449, 1
    %v3454 = vrot.slane %v3450, 1
    %v3455 = vsel %vm2255, %v3453, %v3454
    %v3458 = vsel %vm1120, %v3455, 0.0
    %v3459 = vsel %vm2237, %v3454, 0.0
    %v3460 = vadd.f32 %v3458, %v3459
    %v3461 = vrot.slane %v3460, 4
    %v3462 = vadd.f32 %v3460, %v3461
    %v3463 = vrot.slane %v3462, 2
    %v3464 = vadd.f32 %v3462, %v3463
    %v3465 = vrot.slane %v3464, 1
    %v3466 = vadd.f32 %v3464, %v3465
    %v3467 = vmax.f32 %v3466, 0.0
    %v3468 = vadd.f32 %v3467, 1.0
    %v3469 = vlog2.pop %v3468
    %v3470 = vmul.f32 %v3469, 0.6931472
    %v3471 = vmul.f32 %v3470, %v2374
    %v3472 = vadd.f32 %v3012, 0.0
    %v3473 = vadd.f32 %v3472, %v3137
    %v3474 = vadd.f32 %v3473, %v3262
    %v3475 = vadd.f32 %v3474, %v3376
    %v3476 = vadd.f32 %v3475, %v3471
    %v3477 = vmul.f32 %v3476, 0.2
    %v3478 = vsub.f32 %v3012, %v3477
    %v3479 = vmul.f32 %v3478, 0.8983706
    %v3480 = vadd.f32 %v3479, 0.0
    %v3481 = vsub.f32 %v3137, %v3477
    %v3482 = vmul.f32 %v3481, 0.3134081
    %v3483 = vadd.f32 %v3480, %v3482
    %v3484 = vsub.f32 %v3262, %v3477
    %v3485 = vmul.f32 %v3484, -0.101629384
    %v3486 = vadd.f32 %v3483, %v3485
    %v3487 = vsub.f32 %v3376, %v3477
    %v3488 = vmul.f32 %v3487, -0.4235575
    %v3489 = vadd.f32 %v3486, %v3488
    %v3490 = vsub.f32 %v3471, %v3477
    %v3491 = vmul.f32 %v3490, -0.68659186
    %v3492 = vadd.f32 %v3489, %v3491
    %v3493 = vmul.f32 %v3492, %v2861
    %v3494 = vmul.f32 %v2908, %v3493
    %v3495 = vsel %vm2287, %v2863, %v3494
    %v3496 = vld [vmem:[%s5] sm:$0xff]
    %v3497 = vld [vmem:[%s6] sm:$0x1]
    %v3499 = vlaneseq
    %v3500 = vshrl.u32 %v3499, 7
    %v3501 = vsub.s32 0, %v3500
    %v3502 = vrot.slane %v3497, %v3501
    %v3505 = vsel %vm1120, %v3495, 0
    %3507 = vmatprep.subr.mxu0 0.0
    %3508 = vmatpush1.msra.mxu0 0.0
    %3509 = vmatprep.subr.mxu0 0.0
    %3510 = vmatpush1.msra.mxu0 0.0
    %3511 = vmatprep.subr.mxu0 0.0
    %3512 = vmatpush1.msra.mxu0 0.0
    %3513 = vmatprep.subr.mxu0 0.0
    %3514 = vmatpush1.msra.mxu0 0.0
    %3515 = vmatprep.subr.mxu0 0.0
    %3516 = vmatpush1.msra.mxu0 0.0
    %3517 = vmatprep.subr.mxu0 0.0
    %3518 = vmatpush1.msra.mxu0 0.0
    %3519 = vmatprep.subr.mxu0 0.0
    %3520 = vmatpush1.msra.mxu0 0.0
    %3521 = vmatprep.subr.mxu0 0.0
    %3522 = vmatpush1.msra.mxu0 0.0
    %3523 = vmatprep.subr.mxu0 0.0
    %3524 = vmatpush1.msra.mxu0 0.0
    %3525 = vmatprep.subr.mxu0 0.0
    %3526 = vmatpush1.msra.mxu0 0.0
    %3527 = vmatprep.subr.mxu0 0.0
    %3528 = vmatpush1.msra.mxu0 0.0
    %3529 = vmatprep.subr.mxu0 0.0
    %3530 = vmatpush1.msra.mxu0 0.0
    %3531 = vmatprep.subr.mxu0 0.0
    %3532 = vmatpush1.msra.mxu0 0.0
    %3533 = vmatprep.subr.mxu0 0.0
    %3534 = vmatpush1.msra.mxu0 0.0
    %3535 = vmatprep.subr.mxu0 0.0
    %3536 = vmatpush1.msra.mxu0 0.0
    %3537 = vmatprep.subr.mxu0 0.0
    %v3538 = vand.u32 %v3496, 4294901760
    %3539 = vmatpush1.msra.mxu0 %v3538
    %3540 = vmatprep.subr.mxu0 0.0
    %3541 = vmatpush2.msra.mxu0 0.0
    %3542 = vmatprep.subr.mxu0 0.0
    %3543 = vmatpush2.msra.mxu0 0.0
    %3544 = vmatprep.subr.mxu0 0.0
    %3545 = vmatpush2.msra.mxu0 0.0
    %3546 = vmatprep.subr.mxu0 0.0
    %3547 = vmatpush2.msra.mxu0 0.0
    %3548 = vmatprep.subr.mxu0 0.0
    %3549 = vmatpush2.msra.mxu0 0.0
    %3550 = vmatprep.subr.mxu0 0.0
    %3551 = vmatpush2.msra.mxu0 0.0
    %3552 = vmatprep.subr.mxu0 0.0
    %3553 = vmatpush2.msra.mxu0 0.0
    %3554 = vmatprep.subr.mxu0 0.0
    %3555 = vmatpush2.msra.mxu0 0.0
    %3556 = vmatprep.subr.mxu0 0.0
    %3557 = vmatpush2.msra.mxu0 0.0
    %3558 = vmatprep.subr.mxu0 0.0
    %3559 = vmatpush2.msra.mxu0 0.0
    %3560 = vmatprep.subr.mxu0 0.0
    %3561 = vmatpush2.msra.mxu0 0.0
    %3562 = vmatprep.subr.mxu0 0.0
    %3563 = vmatpush2.msra.mxu0 0.0
    %3564 = vmatprep.subr.mxu0 0.0
    %3565 = vmatpush2.msra.mxu0 0.0
    %3566 = vmatprep.subr.mxu0 0.0
    %3567 = vmatpush2.msra.mxu0 0.0
    %3568 = vmatprep.subr.mxu0 0.0
    %3569 = vmatpush2.msra.mxu0 0.0
    %3570 = vmatprep.subr.mxu0 0.0
    %3571 = vmatpush2.msra.mxu0 0.0
    %3572 = vmatprep.mubr.f32.mxu0 0.0
    %v3573 = vand.u32 %v3505, 4294901760
    %v3574 = vsub.f32 %v3505, %v3573
    %v3575 = vand.u32 %v3574, 4294901760
    %v3576 = vsub.f32 %v3574, %v3575
    %v3577 = vand.u32 %v3576, 4294901760
    %3578 = vmatmul.mubr.f32.gmra.mxu0 %v3577
    %v3579 = vpop.f32.mrf.mxu0
    %v3580 = vadd.f32 %v3502, %v3579
    %v3581 = vpop.f32.mrf.mxu0
    %3582 = vdwg.mxu0
    %3583 = vmatprep.subr.mxu0 0.0
    %3584 = vmatpush1.msra.mxu0 0.0
    %3585 = vmatprep.subr.mxu0 0.0
    %3586 = vmatpush1.msra.mxu0 0.0
    %3587 = vmatprep.subr.mxu0 0.0
    %3588 = vmatpush1.msra.mxu0 0.0
    %3589 = vmatprep.subr.mxu0 0.0
    %3590 = vmatpush1.msra.mxu0 0.0
    %3591 = vmatprep.subr.mxu0 0.0
    %3592 = vmatpush1.msra.mxu0 0.0
    %3593 = vmatprep.subr.mxu0 0.0
    %3594 = vmatpush1.msra.mxu0 0.0
    %3595 = vmatprep.subr.mxu0 0.0
    %3596 = vmatpush1.msra.mxu0 0.0
    %3597 = vmatprep.subr.mxu0 0.0
    %3598 = vmatpush1.msra.mxu0 0.0
    %3599 = vmatprep.subr.mxu0 0.0
    %3600 = vmatpush1.msra.mxu0 0.0
    %3601 = vmatprep.subr.mxu0 0.0
    %3602 = vmatpush1.msra.mxu0 0.0
    %3603 = vmatprep.subr.mxu0 0.0
    %3604 = vmatpush1.msra.mxu0 0.0
    %3605 = vmatprep.subr.mxu0 0.0
    %3606 = vmatpush1.msra.mxu0 0.0
    %3607 = vmatprep.subr.mxu0 0.0
    %3608 = vmatpush1.msra.mxu0 0.0
    %3609 = vmatprep.subr.mxu0 0.0
    %3610 = vmatpush1.msra.mxu0 0.0
    %3611 = vmatprep.subr.mxu0 0.0
    %3612 = vmatpush1.msra.mxu0 0.0
    %3613 = vmatprep.subr.mxu0 0.0
    %v3614 = vand.u32 %v3496, 4294901760
    %v3615 = vsub.f32 %v3496, %v3614
    %v3616 = vand.u32 %v3615, 4294901760
    %v3617 = vsub.f32 %v3615, %v3616
    %v3618 = vand.u32 %v3617, 4294901760
    %3619 = vmatpush1.msra.mxu0 %v3618
    %3620 = vmatprep.subr.mxu0 0.0
    %3621 = vmatpush2.msra.mxu0 0.0
    %3622 = vmatprep.subr.mxu0 0.0
    %3623 = vmatpush2.msra.mxu0 0.0
    %3624 = vmatprep.subr.mxu0 0.0
    %3625 = vmatpush2.msra.mxu0 0.0
    %3626 = vmatprep.subr.mxu0 0.0
    %3627 = vmatpush2.msra.mxu0 0.0
    %3628 = vmatprep.subr.mxu0 0.0
    %3629 = vmatpush2.msra.mxu0 0.0
    %3630 = vmatprep.subr.mxu0 0.0
    %3631 = vmatpush2.msra.mxu0 0.0
    %3632 = vmatprep.subr.mxu0 0.0
    %3633 = vmatpush2.msra.mxu0 0.0
    %3634 = vmatprep.subr.mxu0 0.0
    %3635 = vmatpush2.msra.mxu0 0.0
    %3636 = vmatprep.subr.mxu0 0.0
    %3637 = vmatpush2.msra.mxu0 0.0
    %3638 = vmatprep.subr.mxu0 0.0
    %3639 = vmatpush2.msra.mxu0 0.0
    %3640 = vmatprep.subr.mxu0 0.0
    %3641 = vmatpush2.msra.mxu0 0.0
    %3642 = vmatprep.subr.mxu0 0.0
    %3643 = vmatpush2.msra.mxu0 0.0
    %3644 = vmatprep.subr.mxu0 0.0
    %3645 = vmatpush2.msra.mxu0 0.0
    %3646 = vmatprep.subr.mxu0 0.0
    %3647 = vmatpush2.msra.mxu0 0.0
    %3648 = vmatprep.subr.mxu0 0.0
    %3649 = vmatpush2.msra.mxu0 0.0
    %3650 = vmatprep.subr.mxu0 0.0
    %3651 = vmatpush2.msra.mxu0 0.0
    %3652 = vmatprep.mubr.f32.mxu0 0.0
    %v3653 = vand.u32 %v3505, 4294901760
    %3654 = vmatmul.mubr.f32.gmra.mxu0 %v3653
    %v3655 = vpop.f32.mrf.mxu0
    %v3656 = vadd.f32 %v3580, %v3655
    %v3657 = vpop.f32.mrf.mxu0
    %3658 = vdwg.mxu0
    %3659 = vmatprep.subr.mxu0 0.0
    %3660 = vmatpush1.msra.mxu0 0.0
    %3661 = vmatprep.subr.mxu0 0.0
    %3662 = vmatpush1.msra.mxu0 0.0
    %3663 = vmatprep.subr.mxu0 0.0
    %3664 = vmatpush1.msra.mxu0 0.0
    %3665 = vmatprep.subr.mxu0 0.0
    %3666 = vmatpush1.msra.mxu0 0.0
    %3667 = vmatprep.subr.mxu0 0.0
    %3668 = vmatpush1.msra.mxu0 0.0
    %3669 = vmatprep.subr.mxu0 0.0
    %3670 = vmatpush1.msra.mxu0 0.0
    %3671 = vmatprep.subr.mxu0 0.0
    %3672 = vmatpush1.msra.mxu0 0.0
    %3673 = vmatprep.subr.mxu0 0.0
    %3674 = vmatpush1.msra.mxu0 0.0
    %3675 = vmatprep.subr.mxu0 0.0
    %3676 = vmatpush1.msra.mxu0 0.0
    %3677 = vmatprep.subr.mxu0 0.0
    %3678 = vmatpush1.msra.mxu0 0.0
    %3679 = vmatprep.subr.mxu0 0.0
    %3680 = vmatpush1.msra.mxu0 0.0
    %3681 = vmatprep.subr.mxu0 0.0
    %3682 = vmatpush1.msra.mxu0 0.0
    %3683 = vmatprep.subr.mxu0 0.0
    %3684 = vmatpush1.msra.mxu0 0.0
    %3685 = vmatprep.subr.mxu0 0.0
    %3686 = vmatpush1.msra.mxu0 0.0
    %3687 = vmatprep.subr.mxu0 0.0
    %3688 = vmatpush1.msra.mxu0 0.0
    %3689 = vmatprep.subr.mxu0 0.0
    %v3690 = vand.u32 %v3496, 4294901760
    %v3691 = vsub.f32 %v3496, %v3690
    %3692 = vmatpush1.msra.mxu0 %v3691
    %3693 = vmatprep.subr.mxu0 0.0
    %3694 = vmatpush2.msra.mxu0 0.0
    %3695 = vmatprep.subr.mxu0 0.0
    %3696 = vmatpush2.msra.mxu0 0.0
    %3697 = vmatprep.subr.mxu0 0.0
    %3698 = vmatpush2.msra.mxu0 0.0
    %3699 = vmatprep.subr.mxu0 0.0
    %3700 = vmatpush2.msra.mxu0 0.0
    %3701 = vmatprep.subr.mxu0 0.0
    %3702 = vmatpush2.msra.mxu0 0.0
    %3703 = vmatprep.subr.mxu0 0.0
    %3704 = vmatpush2.msra.mxu0 0.0
    %3705 = vmatprep.subr.mxu0 0.0
    %3706 = vmatpush2.msra.mxu0 0.0
    %3707 = vmatprep.subr.mxu0 0.0
    %3708 = vmatpush2.msra.mxu0 0.0
    %3709 = vmatprep.subr.mxu0 0.0
    %3710 = vmatpush2.msra.mxu0 0.0
    %3711 = vmatprep.subr.mxu0 0.0
    %3712 = vmatpush2.msra.mxu0 0.0
    %3713 = vmatprep.subr.mxu0 0.0
    %3714 = vmatpush2.msra.mxu0 0.0
    %3715 = vmatprep.subr.mxu0 0.0
    %3716 = vmatpush2.msra.mxu0 0.0
    %3717 = vmatprep.subr.mxu0 0.0
    %3718 = vmatpush2.msra.mxu0 0.0
    %3719 = vmatprep.subr.mxu0 0.0
    %3720 = vmatpush2.msra.mxu0 0.0
    %3721 = vmatprep.subr.mxu0 0.0
    %3722 = vmatpush2.msra.mxu0 0.0
    %3723 = vmatprep.subr.mxu0 0.0
    %3724 = vmatpush2.msra.mxu0 0.0
    %3725 = vmatprep.mubr.f32.mxu0 0.0
    %v3726 = vand.u32 %v3505, 4294901760
    %v3727 = vsub.f32 %v3505, %v3726
    %3728 = vmatmul.mubr.f32.gmra.mxu0 %v3727
    %v3729 = vpop.f32.mrf.mxu0
    %v3730 = vadd.f32 %v3656, %v3729
    %v3731 = vpop.f32.mrf.mxu0
    %3732 = vdwg.mxu0
    %3733 = vmatprep.subr.mxu0 0.0
    %3734 = vmatpush1.msra.mxu0 0.0
    %3735 = vmatprep.subr.mxu0 0.0
    %3736 = vmatpush1.msra.mxu0 0.0
    %3737 = vmatprep.subr.mxu0 0.0
    %3738 = vmatpush1.msra.mxu0 0.0
    %3739 = vmatprep.subr.mxu0 0.0
    %3740 = vmatpush1.msra.mxu0 0.0
    %3741 = vmatprep.subr.mxu0 0.0
    %3742 = vmatpush1.msra.mxu0 0.0
    %3743 = vmatprep.subr.mxu0 0.0
    %3744 = vmatpush1.msra.mxu0 0.0
    %3745 = vmatprep.subr.mxu0 0.0
    %3746 = vmatpush1.msra.mxu0 0.0
    %3747 = vmatprep.subr.mxu0 0.0
    %3748 = vmatpush1.msra.mxu0 0.0
    %3749 = vmatprep.subr.mxu0 0.0
    %3750 = vmatpush1.msra.mxu0 0.0
    %3751 = vmatprep.subr.mxu0 0.0
    %3752 = vmatpush1.msra.mxu0 0.0
    %3753 = vmatprep.subr.mxu0 0.0
    %3754 = vmatpush1.msra.mxu0 0.0
    %3755 = vmatprep.subr.mxu0 0.0
    %3756 = vmatpush1.msra.mxu0 0.0
    %3757 = vmatprep.subr.mxu0 0.0
    %3758 = vmatpush1.msra.mxu0 0.0
    %3759 = vmatprep.subr.mxu0 0.0
    %3760 = vmatpush1.msra.mxu0 0.0
    %3761 = vmatprep.subr.mxu0 0.0
    %3762 = vmatpush1.msra.mxu0 0.0
    %3763 = vmatprep.subr.mxu0 0.0
    %v3764 = vand.u32 %v3496, 4294901760
    %3765 = vmatpush1.msra.mxu0 %v3764
    %3766 = vmatprep.subr.mxu0 0.0
    %3767 = vmatpush2.msra.mxu0 0.0
    %3768 = vmatprep.subr.mxu0 0.0
    %3769 = vmatpush2.msra.mxu0 0.0
    %3770 = vmatprep.subr.mxu0 0.0
    %3771 = vmatpush2.msra.mxu0 0.0
    %3772 = vmatprep.subr.mxu0 0.0
    %3773 = vmatpush2.msra.mxu0 0.0
    %3774 = vmatprep.subr.mxu0 0.0
    %3775 = vmatpush2.msra.mxu0 0.0
    %3776 = vmatprep.subr.mxu0 0.0
    %3777 = vmatpush2.msra.mxu0 0.0
    %3778 = vmatprep.subr.mxu0 0.0
    %3779 = vmatpush2.msra.mxu0 0.0
    %3780 = vmatprep.subr.mxu0 0.0
    %3781 = vmatpush2.msra.mxu0 0.0
    %3782 = vmatprep.subr.mxu0 0.0
    %3783 = vmatpush2.msra.mxu0 0.0
    %3784 = vmatprep.subr.mxu0 0.0
    %3785 = vmatpush2.msra.mxu0 0.0
    %3786 = vmatprep.subr.mxu0 0.0
    %3787 = vmatpush2.msra.mxu0 0.0
    %3788 = vmatprep.subr.mxu0 0.0
    %3789 = vmatpush2.msra.mxu0 0.0
    %3790 = vmatprep.subr.mxu0 0.0
    %3791 = vmatpush2.msra.mxu0 0.0
    %3792 = vmatprep.subr.mxu0 0.0
    %3793 = vmatpush2.msra.mxu0 0.0
    %3794 = vmatprep.subr.mxu0 0.0
    %3795 = vmatpush2.msra.mxu0 0.0
    %3796 = vmatprep.subr.mxu0 0.0
    %3797 = vmatpush2.msra.mxu0 0.0
    %3798 = vmatprep.mubr.f32.mxu0 0.0
    %v3799 = vand.u32 %v3505, 4294901760
    %v3800 = vsub.f32 %v3505, %v3799
    %v3801 = vand.u32 %v3800, 4294901760
    %3802 = vmatmul.mubr.f32.gmra.mxu0 %v3801
    %v3803 = vpop.f32.mrf.mxu0
    %v3804 = vadd.f32 %v3730, %v3803
    %v3805 = vpop.f32.mrf.mxu0
    %3806 = vdwg.mxu0
    %3807 = vmatprep.subr.mxu0 0.0
    %3808 = vmatpush1.msra.mxu0 0.0
    %3809 = vmatprep.subr.mxu0 0.0
    %3810 = vmatpush1.msra.mxu0 0.0
    %3811 = vmatprep.subr.mxu0 0.0
    %3812 = vmatpush1.msra.mxu0 0.0
    %3813 = vmatprep.subr.mxu0 0.0
    %3814 = vmatpush1.msra.mxu0 0.0
    %3815 = vmatprep.subr.mxu0 0.0
    %3816 = vmatpush1.msra.mxu0 0.0
    %3817 = vmatprep.subr.mxu0 0.0
    %3818 = vmatpush1.msra.mxu0 0.0
    %3819 = vmatprep.subr.mxu0 0.0
    %3820 = vmatpush1.msra.mxu0 0.0
    %3821 = vmatprep.subr.mxu0 0.0
    %3822 = vmatpush1.msra.mxu0 0.0
    %3823 = vmatprep.subr.mxu0 0.0
    %3824 = vmatpush1.msra.mxu0 0.0
    %3825 = vmatprep.subr.mxu0 0.0
    %3826 = vmatpush1.msra.mxu0 0.0
    %3827 = vmatprep.subr.mxu0 0.0
    %3828 = vmatpush1.msra.mxu0 0.0
    %3829 = vmatprep.subr.mxu0 0.0
    %3830 = vmatpush1.msra.mxu0 0.0
    %3831 = vmatprep.subr.mxu0 0.0
    %3832 = vmatpush1.msra.mxu0 0.0
    %3833 = vmatprep.subr.mxu0 0.0
    %3834 = vmatpush1.msra.mxu0 0.0
    %3835 = vmatprep.subr.mxu0 0.0
    %3836 = vmatpush1.msra.mxu0 0.0
    %3837 = vmatprep.subr.mxu0 0.0
    %v3838 = vand.u32 %v3496, 4294901760
    %v3839 = vsub.f32 %v3496, %v3838
    %v3840 = vand.u32 %v3839, 4294901760
    %3841 = vmatpush1.msra.mxu0 %v3840
    %3842 = vmatprep.subr.mxu0 0.0
    %3843 = vmatpush2.msra.mxu0 0.0
    %3844 = vmatprep.subr.mxu0 0.0
    %3845 = vmatpush2.msra.mxu0 0.0
    %3846 = vmatprep.subr.mxu0 0.0
    %3847 = vmatpush2.msra.mxu0 0.0
    %3848 = vmatprep.subr.mxu0 0.0
    %3849 = vmatpush2.msra.mxu0 0.0
    %3850 = vmatprep.subr.mxu0 0.0
    %3851 = vmatpush2.msra.mxu0 0.0
    %3852 = vmatprep.subr.mxu0 0.0
    %3853 = vmatpush2.msra.mxu0 0.0
    %3854 = vmatprep.subr.mxu0 0.0
    %3855 = vmatpush2.msra.mxu0 0.0
    %3856 = vmatprep.subr.mxu0 0.0
    %3857 = vmatpush2.msra.mxu0 0.0
    %3858 = vmatprep.subr.mxu0 0.0
    %3859 = vmatpush2.msra.mxu0 0.0
    %3860 = vmatprep.subr.mxu0 0.0
    %3861 = vmatpush2.msra.mxu0 0.0
    %3862 = vmatprep.subr.mxu0 0.0
    %3863 = vmatpush2.msra.mxu0 0.0
    %3864 = vmatprep.subr.mxu0 0.0
    %3865 = vmatpush2.msra.mxu0 0.0
    %3866 = vmatprep.subr.mxu0 0.0
    %3867 = vmatpush2.msra.mxu0 0.0
    %3868 = vmatprep.subr.mxu0 0.0
    %3869 = vmatpush2.msra.mxu0 0.0
    %3870 = vmatprep.subr.mxu0 0.0
    %3871 = vmatpush2.msra.mxu0 0.0
    %3872 = vmatprep.subr.mxu0 0.0
    %3873 = vmatpush2.msra.mxu0 0.0
    %3874 = vmatprep.mubr.f32.mxu0 0.0
    %v3875 = vand.u32 %v3505, 4294901760
    %3876 = vmatmul.mubr.f32.gmra.mxu0 %v3875
    %v3877 = vpop.f32.mrf.mxu0
    %v3878 = vadd.f32 %v3804, %v3877
    %v3879 = vpop.f32.mrf.mxu0
    %3880 = vdwg.mxu0
    %3881 = vmatprep.subr.mxu0 0.0
    %3882 = vmatpush1.msra.mxu0 0.0
    %3883 = vmatprep.subr.mxu0 0.0
    %3884 = vmatpush1.msra.mxu0 0.0
    %3885 = vmatprep.subr.mxu0 0.0
    %3886 = vmatpush1.msra.mxu0 0.0
    %3887 = vmatprep.subr.mxu0 0.0
    %3888 = vmatpush1.msra.mxu0 0.0
    %3889 = vmatprep.subr.mxu0 0.0
    %3890 = vmatpush1.msra.mxu0 0.0
    %3891 = vmatprep.subr.mxu0 0.0
    %3892 = vmatpush1.msra.mxu0 0.0
    %3893 = vmatprep.subr.mxu0 0.0
    %3894 = vmatpush1.msra.mxu0 0.0
    %3895 = vmatprep.subr.mxu0 0.0
    %3896 = vmatpush1.msra.mxu0 0.0
    %3897 = vmatprep.subr.mxu0 0.0
    %3898 = vmatpush1.msra.mxu0 0.0
    %3899 = vmatprep.subr.mxu0 0.0
    %3900 = vmatpush1.msra.mxu0 0.0
    %3901 = vmatprep.subr.mxu0 0.0
    %3902 = vmatpush1.msra.mxu0 0.0
    %3903 = vmatprep.subr.mxu0 0.0
    %3904 = vmatpush1.msra.mxu0 0.0
    %3905 = vmatprep.subr.mxu0 0.0
    %3906 = vmatpush1.msra.mxu0 0.0
    %3907 = vmatprep.subr.mxu0 0.0
    %3908 = vmatpush1.msra.mxu0 0.0
    %3909 = vmatprep.subr.mxu0 0.0
    %3910 = vmatpush1.msra.mxu0 0.0
    %3911 = vmatprep.subr.mxu0 0.0
    %v3912 = vand.u32 %v3496, 4294901760
    %3913 = vmatpush1.msra.mxu0 %v3912
    %3914 = vmatprep.subr.mxu0 0.0
    %3915 = vmatpush2.msra.mxu0 0.0
    %3916 = vmatprep.subr.mxu0 0.0
    %3917 = vmatpush2.msra.mxu0 0.0
    %3918 = vmatprep.subr.mxu0 0.0
    %3919 = vmatpush2.msra.mxu0 0.0
    %3920 = vmatprep.subr.mxu0 0.0
    %3921 = vmatpush2.msra.mxu0 0.0
    %3922 = vmatprep.subr.mxu0 0.0
    %3923 = vmatpush2.msra.mxu0 0.0
    %3924 = vmatprep.subr.mxu0 0.0
    %3925 = vmatpush2.msra.mxu0 0.0
    %3926 = vmatprep.subr.mxu0 0.0
    %3927 = vmatpush2.msra.mxu0 0.0
    %3928 = vmatprep.subr.mxu0 0.0
    %3929 = vmatpush2.msra.mxu0 0.0
    %3930 = vmatprep.subr.mxu0 0.0
    %3931 = vmatpush2.msra.mxu0 0.0
    %3932 = vmatprep.subr.mxu0 0.0
    %3933 = vmatpush2.msra.mxu0 0.0
    %3934 = vmatprep.subr.mxu0 0.0
    %3935 = vmatpush2.msra.mxu0 0.0
    %3936 = vmatprep.subr.mxu0 0.0
    %3937 = vmatpush2.msra.mxu0 0.0
    %3938 = vmatprep.subr.mxu0 0.0
    %3939 = vmatpush2.msra.mxu0 0.0
    %3940 = vmatprep.subr.mxu0 0.0
    %3941 = vmatpush2.msra.mxu0 0.0
    %3942 = vmatprep.subr.mxu0 0.0
    %3943 = vmatpush2.msra.mxu0 0.0
    %3944 = vmatprep.subr.mxu0 0.0
    %3945 = vmatpush2.msra.mxu0 0.0
    %3946 = vmatprep.mubr.f32.mxu0 0.0
    %v3947 = vand.u32 %v3505, 4294901760
    %3948 = vmatmul.mubr.f32.gmra.mxu0 %v3947
    %v3949 = vpop.f32.mrf.mxu0
    %v3950 = vadd.f32 %v3878, %v3949
    %v3951 = vpop.f32.mrf.mxu0
    %3952 = vdwg.mxu0
    %vm3953 = vcmask 33792
    %3954 = vst.msk [vmem:[#allocation2] sm:$0x3] %vm3953, %v3950
    // Predicated region
    $region34: #{my_model_forward.1} parent=1 // pred_check
      _
    $region35: #{my_model_forward.1} parent=1 // pred_check_branch
      %3956 = sbr.rel (0) target = $region37
    $region36: #{my_model_forward.1} parent=1 // pred_region
      %s3958 = ssub.s32 32, 32
      %3959 = vsyncadd [#allocation3], %s3958
      %s3961 = sshll.u32 [#allocation2], 4
      %s3962 = int_to_ptr.vmem [resolvable:$true] %s3961
      %3964 = dma.vmem_to_hbm [thread:$0]  %s3962, 32, %s8, [#allocation3]
    $region37: #{my_model_forward.1} parent=1 // pred_fallthru
      _
    // Predicated region
    $region38: #{my_model_forward.1} parent=1 // pred_check
      _
    $region39: #{my_model_forward.1} parent=1 // pred_check_branch
      %3966 = sbr.rel (0) target = $region41
    $region40: #{my_model_forward.1} parent=1 // pred_region
      %3967 = dma.done [#allocation3], 32
    $region41: #{my_model_forward.1} parent=1 // pred_fallthru
      _
    %3968 = vsyncpa [#allocation3], 1

</llo_original>
